<compile_context>
chip_gen: v7x
topology: tpu7x:2x2x1
jax: 0.10.0
libtpu: 0.0.40
codegen_flags: <defaults>
</compile_context>

<pallas_src>
import numpy as np
import jax
import jax.numpy as jnp
from jax.experimental import pallas as pl
from jax.experimental.pallas import tpu as pltpu

EPS = 1e-5


def _pick_tm(m, cap=512):
    """Largest row tile <= cap that divides m (multiple of 8), preferring >=2 blocks."""
    assert m % 8 == 0, m
    cand = [tm for tm in range(8, min(m, cap) + 1, 8) if m % tm == 0]
    multi = [tm for tm in cand if m // tm >= 2]
    return max(multi) if multi else max(cand)


# ----------------------------------------------------------------------------
# Kernel 1: bn0 + ReLU + conv1 (1x1) + BN + ReLU, fully fused
# ----------------------------------------------------------------------------
def _bn_conv1x1_kernel(x_ref, s0_ref, t0_ref, w_ref, s1_ref, t1_ref, o_ref):
    # prologue: standalone BN + ReLU (bn0) in f32 on the VPU
    x = jnp.maximum(x_ref[...] * s0_ref[...] + t0_ref[...], 0.0)
    # 1x1 conv as bf16 MXU matmul with f32 accumulation
    y = jnp.dot(x.astype(jnp.bfloat16), w_ref[...],
                preferred_element_type=jnp.float32)
    # epilogue: folded conv-bias + BN, then ReLU (f32)
    y = jnp.maximum(y * s1_ref[...] + t1_ref[...], 0.0)
    o_ref[...] = y.astype(o_ref.dtype)


def bn_relu_conv1x1_bn_relu(x2, s0, t0, w, s1, t1):
    """relu(bn1(conv1x1(relu(bn0(x2)))));  x2:(M,Cin) f32 -> (M,Cout) bf16."""
    M, Cin = x2.shape
    Cout = w.shape[1]
    TM = _pick_tm(M)
    return pl.pallas_call(
        _bn_conv1x1_kernel,
        out_shape=jax.ShapeDtypeStruct((M, Cout), jnp.bfloat16),
        grid=(M // TM,),
        in_specs=[
            pl.BlockSpec((TM, Cin), lambda i: (i, 0)),
            pl.BlockSpec((1, Cin), lambda i: (0, 0)),
            pl.BlockSpec((1, Cin), lambda i: (0, 0)),
            pl.BlockSpec((Cin, Cout), lambda i: (0, 0)),
            pl.BlockSpec((1, Cout), lambda i: (0, 0)),
            pl.BlockSpec((1, Cout), lambda i: (0, 0)),
        ],
        out_specs=pl.BlockSpec((TM, Cout), lambda i: (i, 0)),
        compiler_params=pltpu.CompilerParams(dimension_semantics=("parallel",)),
    )(x2, s0, t0, w, s1, t1)


# ----------------------------------------------------------------------------
# Kernel 2: conv2 (3x3, pad=1) + BN + ReLU, with in-kernel 3x3 gather
# ----------------------------------------------------------------------------
def _make_conv3x3_kernel(H, W, Cin, Cout):
    def kernel(x_ref, w_ref, s_ref, t_ref, o_ref):
        # x_ref: (H+2, W+2, Cin) zero-padded image tile (bf16), resident in VMEM.
        # The 3x3 "im2col" happens here: 9 shifted windows -> 9 accumulated dots.
        acc = jnp.zeros((H * W, Cout), jnp.float32)
        for di in range(3):
            for dj in range(3):
                win = x_ref[di:di + H, dj:dj + W, :].reshape(H * W, Cin)
                acc = acc + jnp.dot(win, w_ref[di * 3 + dj],
                                    preferred_element_type=jnp.float32)
        y = jnp.maximum(acc * s_ref[...] + t_ref[...], 0.0)
        o_ref[...] = y.astype(o_ref.dtype)

    return kernel


def conv3x3_bn_relu(h_nhwc, w9, s, t):
    """relu(bn(conv3x3(h, pad=1))) with in-kernel window gather; h:(N,H,W,C) bf16."""
    N, H, W, C = h_nhwc.shape
    Cout = w9.shape[-1]
    assert (H * W) % 8 == 0
    # single zero-pad of the (small, bf16) mid activation; the 9x window
    # expansion never touches HBM.
    xp = jnp.pad(h_nhwc, ((0, 0), (1, 1), (1, 1), (0, 0)))
    xp = xp.reshape(N * (H + 2), W + 2, C)
    return pl.pallas_call(
        _make_conv3x3_kernel(H, W, C, Cout),
        out_shape=jax.ShapeDtypeStruct((N * H * W, Cout), jnp.bfloat16),
        grid=(N,),
        in_specs=[
            pl.BlockSpec((H + 2, W + 2, C), lambda n: (n, 0, 0)),
            pl.BlockSpec((9, C, Cout), lambda n: (0, 0, 0)),
            pl.BlockSpec((1, Cout), lambda n: (0, 0)),
            pl.BlockSpec((1, Cout), lambda n: (0, 0)),
        ],
        out_specs=pl.BlockSpec((H * W, Cout), lambda n: (n, 0)),
        compiler_params=pltpu.CompilerParams(dimension_semantics=("parallel",)),
    )(xp, w9, s, t)


# ----------------------------------------------------------------------------
# Kernel 3: conv3 (1x1) + BN + ReLU + residual add (identity or fused conv_skip)
# ----------------------------------------------------------------------------
def _conv1x1_res_kernel(h_ref, w_ref, s_ref, t_ref, r_ref, o_ref):
    y = jnp.dot(h_ref[...], w_ref[...], preferred_element_type=jnp.float32)
    y = jnp.maximum(y * s_ref[...] + t_ref[...], 0.0)
    o_ref[...] = (y + r_ref[...]).astype(o_ref.dtype)


def _conv1x1_skip_kernel(h_ref, w_ref, s_ref, t_ref, x_ref, wsk_ref, bsk_ref, o_ref):
    y = jnp.dot(h_ref[...], w_ref[...], preferred_element_type=jnp.float32)
    y = jnp.maximum(y * s_ref[...] + t_ref[...], 0.0)
    r = jnp.dot(x_ref[...].astype(jnp.bfloat16), wsk_ref[...],
                preferred_element_type=jnp.float32) + bsk_ref[...]
    o_ref[...] = (y + r).astype(o_ref.dtype)


def conv1x1_bn_relu_add(h2, w, s, t, residual=None, skip=None):
    """relu(bn(conv1x1(h2))) + residual; residual is identity x or fused conv_skip."""
    M, Cmid = h2.shape
    Cout = w.shape[1]
    TM = _pick_tm(M)
    base_specs = [
        pl.BlockSpec((TM, Cmid), lambda i: (i, 0)),
        pl.BlockSpec((Cmid, Cout), lambda i: (0, 0)),
        pl.BlockSpec((1, Cout), lambda i: (0, 0)),
        pl.BlockSpec((1, Cout), lambda i: (0, 0)),
    ]
    if skip is None:
        in_specs = base_specs + [pl.BlockSpec((TM, Cout), lambda i: (i, 0))]
        args = (h2, w, s, t, residual)
        kernel = _conv1x1_res_kernel
    else:
        x2, wsk, bsk = skip
        Cin = x2.shape[1]
        in_specs = base_specs + [
            pl.BlockSpec((TM, Cin), lambda i: (i, 0)),
            pl.BlockSpec((Cin, Cout), lambda i: (0, 0)),
            pl.BlockSpec((1, Cout), lambda i: (0, 0)),
        ]
        args = (h2, w, s, t, x2, wsk, bsk)
        kernel = _conv1x1_skip_kernel
    return pl.pallas_call(
        kernel,
        out_shape=jax.ShapeDtypeStruct((M, Cout), jnp.float32),
        grid=(M // TM,),
        in_specs=in_specs,
        out_specs=pl.BlockSpec((TM, Cout), lambda i: (i, 0)),
        compiler_params=pltpu.CompilerParams(dimension_semantics=("parallel",)),
    )(*args)


# ----------------------------------------------------------------------------
# Forward pass (matches res.forward with stride=1, isbn=True)
# ----------------------------------------------------------------------------
def res_forward(x_nchw, p):
    N, Cin, H, W = x_nchw.shape
    x = jnp.transpose(x_nchw, (0, 2, 3, 1)).astype(jnp.float32)   # -> NHWC
    M = N * H * W
    x2 = x.reshape(M, Cin)

    # bn0 + relu + conv1(1x1) + bn + relu     (one fused kernel)
    h1 = bn_relu_conv1x1_bn_relu(x2, p["s0"], p["t0"], p["w1"], p["s1"], p["t1"])
    Cmid = h1.shape[1]

    # conv2(3x3, pad=1) + bn + relu           (in-kernel halo gather)
    h2 = conv3x3_bn_relu(h1.reshape(N, H, W, Cmid), p["w2"], p["s2"], p["t2"])

    # conv3(1x1) + bn + relu + residual add   (conv_skip fused when needed)
    if "wsk" in p:
        out2 = conv1x1_bn_relu_add(h2, p["w3"], p["s3"], p["t3"],
                                   skip=(x2, p["wsk"], p["bsk"]))
    else:
        out2 = conv1x1_bn_relu_add(h2, p["w3"], p["s3"], p["t3"], residual=x2)
    Cout = out2.shape[1]
    return jnp.transpose(out2.reshape(N, H, W, Cout), (0, 3, 1, 2))  # -> NCHW


# ----------------------------------------------------------------------------
# Parameters (PyTorch layout) + one-time preparation (folding / transposes)
# ----------------------------------------------------------------------------
class _KeyGen:
    def __init__(self, seed):
        self.key = jax.random.PRNGKey(seed)

    def __call__(self):
        self.key, sub = jax.random.split(self.key)
        return sub


def _conv(kg, cin, cout, k):
    w = jax.random.normal(kg(), (cout, cin, k, k), jnp.float32) / np.sqrt(cin * k * k)
    b = 0.05 * jax.random.normal(kg(), (cout,), jnp.float32)
    return {"w": w, "b": b}


def _bn(kg, c):
    return {
        "gamma": 1.0 + 0.1 * jax.random.normal(kg(), (c,), jnp.float32),
        "beta": 0.1 * jax.random.normal(kg(), (c,), jnp.float32),
        "mean": 0.1 * jax.random.normal(kg(), (c,), jnp.float32),
        "var": 1.0 + 0.1 * jnp.abs(jax.random.normal(kg(), (c,), jnp.float32)),
    }


def _conv_bn(kg, cin, cout, k):
    d = _conv(kg, cin, cout, k)
    d.update(_bn(kg, cout))
    return d


def make_res_params(inplanes, outplanes, seed=0):
    kg = _KeyGen(seed)
    mid = outplanes // 2
    raw = {
        "bn0": _bn(kg, inplanes),
        "conv1": _conv_bn(kg, inplanes, mid, 1),
        "conv2": _conv_bn(kg, mid, mid, 3),
        "conv3": _conv_bn(kg, mid, outplanes, 1),
    }
    if inplanes != outplanes:
        raw["conv_skip"] = _conv(kg, inplanes, outplanes, 1)
    return raw


def prepare_res_params(raw):
    """Fold BN into scale/shift and pre-transpose weights (done once, outside jit)."""
    def fold_conv_bn(q):
        s = q["gamma"] / jnp.sqrt(q["var"] + EPS)
        t = (q["b"] - q["mean"]) * s + q["beta"]
        return s.reshape(1, -1).astype(jnp.float32), t.reshape(1, -1).astype(jnp.float32)

    p = {}
    s0 = raw["bn0"]["gamma"] / jnp.sqrt(raw["bn0"]["var"] + EPS)
    t0 = raw["bn0"]["beta"] - raw["bn0"]["mean"] * s0
    p["s0"] = s0.reshape(1, -1).astype(jnp.float32)
    p["t0"] = t0.reshape(1, -1).astype(jnp.float32)

    p["w1"] = raw["conv1"]["w"][:, :, 0, 0].T.astype(jnp.bfloat16)
    p["s1"], p["t1"] = fold_conv_bn(raw["conv1"])

    cmid = raw["conv2"]["w"].shape[1]
    p["w2"] = jnp.transpose(raw["conv2"]["w"], (2, 3, 1, 0)).reshape(
        9, cmid, raw["conv2"]["w"].shape[0]).astype(jnp.bfloat16)
    p["s2"], p["t2"] = fold_conv_bn(raw["conv2"])

    p["w3"] = raw["conv3"]["w"][:, :, 0, 0].T.astype(jnp.bfloat16)
    p["s3"], p["t3"] = fold_conv_bn(raw["conv3"])

    if "conv_skip" in raw:
        p["wsk"] = raw["conv_skip"]["w"][:, :, 0, 0].T.astype(jnp.bfloat16)
        p["bsk"] = raw["conv_skip"]["b"].reshape(1, -1).astype(jnp.float32)
    return p


# ----------------------------------------------------------------------------
# Pure-JAX f32 reference (mirrors the PyTorch forward) for a sanity check
# ----------------------------------------------------------------------------
def res_reference(x_nchw, raw):
    x = jnp.transpose(x_nchw, (0, 2, 3, 1)).astype(jnp.float32)

    def bn(v, q):
        return (v - q["mean"]) / jnp.sqrt(q["var"] + EPS) * q["gamma"] + q["beta"]

    def c1(v, q):
        return jnp.einsum("nhwc,oc->nhwo", v, q["w"][:, :, 0, 0]) + q["b"]

    def c3(v, q):
        n, h, w, c = v.shape
        vp = jnp.pad(v, ((0, 0), (1, 1), (1, 1), (0, 0)))
        out = q["b"]
        for di in range(3):
            for dj in range(3):
                out = out + jnp.einsum("nhwc,oc->nhwo",
                                       vp[:, di:di + h, dj:dj + w, :],
                                       q["w"][:, :, di, dj])
        return out

    out = jnp.maximum(bn(x, raw["bn0"]), 0.0)
    out = jnp.maximum(bn(c1(out, raw["conv1"]), raw["conv1"]), 0.0)
    out = jnp.maximum(bn(c3(out, raw["conv2"]), raw["conv2"]), 0.0)
    out = jnp.maximum(bn(c1(out, raw["conv3"]), raw["conv3"]), 0.0)
    residual = c1(x, raw["conv_skip"]) if "conv_skip" in raw else x
    out = out + residual
    return jnp.transpose(out, (0, 3, 1, 2))


# ----------------------------------------------------------------------------
if __name__ == "__main__":
    N, H, W = 2, 16, 16
    fwd = jax.jit(res_forward)

    # Config A: inplanes == outplanes (identity skip).  Config B: conv_skip path.
    for (cin, cout) in [(64, 64), (32, 64)]:
        x = jax.random.normal(jax.random.PRNGKey(0), (N, cin, H, W), jnp.float32)
        raw = make_res_params(cin, cout, seed=0)
        prepped = prepare_res_params(raw)

        out = jax.block_until_ready(fwd(x, prepped))
        assert out.shape == (N, cout, H, W), out.shape
        assert bool(jnp.all(jnp.isfinite(out)))

        ref = res_reference(x, raw)
        err = float(jnp.max(jnp.abs(out - ref)))
        assert err < 0.25, f"max abs err vs reference too large: {err}"

    print("KERNEL_OK")
</pallas_src>

<mosaic_0001>
module attributes {stable_mosaic.version = 11 : i64} {
  func.func @_bn_conv1x1_kernel(%arg0: i32, %arg1: memref<256x64xf32, #tpu.memory_space<vmem>>, %arg2: memref<1x64xf32, #tpu.memory_space<vmem>>, %arg3: memref<1x64xf32, #tpu.memory_space<vmem>>, %arg4: memref<64x32xbf16, #tpu.memory_space<vmem>>, %arg5: memref<1x32xf32, #tpu.memory_space<vmem>>, %arg6: memref<1x32xf32, #tpu.memory_space<vmem>>, %arg7: memref<256x32xbf16, #tpu.memory_space<vmem>>) attributes {dimension_semantics = [#tpu.dimension_semantics<parallel>], iteration_bounds = array<i64: 2>, scalar_prefetch = 0 : i64, scratch_operands = 0 : i64, tpu.core_type = #tpu.core_type<tc>, window_params = [{transform_indices = @transform_0, window_bounds = array<i64: 256, 64>}, {pipeline_mode = #tpu.pipeline_mode<synchronous>, transform_indices = @transform_1, window_bounds = array<i64: 1, 64>}, {pipeline_mode = #tpu.pipeline_mode<synchronous>, transform_indices = @transform_2, window_bounds = array<i64: 1, 64>}, {pipeline_mode = #tpu.pipeline_mode<synchronous>, transform_indices = @transform_3, window_bounds = array<i64: 64, 32>}, {pipeline_mode = #tpu.pipeline_mode<synchronous>, transform_indices = @transform_4, window_bounds = array<i64: 1, 32>}, {pipeline_mode = #tpu.pipeline_mode<synchronous>, transform_indices = @transform_5, window_bounds = array<i64: 1, 32>}, {transform_indices = @transform_6, window_bounds = array<i64: 256, 32>}]} {
    %c0 = arith.constant 0 : index
    %c0_0 = arith.constant 0 : index
    %0 = vector.load %arg1[%c0, %c0_0] : memref<256x64xf32, #tpu.memory_space<vmem>>, vector<256x64xf32>
    %c0_1 = arith.constant 0 : index
    %c0_2 = arith.constant 0 : index
    %1 = vector.load %arg2[%c0_1, %c0_2] : memref<1x64xf32, #tpu.memory_space<vmem>>, vector<1x64xf32>
    %2 = vector.broadcast %1 : vector<1x64xf32> to vector<256x64xf32>
    %3 = arith.mulf %0, %2 : vector<256x64xf32>
    %c0_3 = arith.constant 0 : index
    %c0_4 = arith.constant 0 : index
    %4 = vector.load %arg3[%c0_3, %c0_4] : memref<1x64xf32, #tpu.memory_space<vmem>>, vector<1x64xf32>
    %5 = vector.broadcast %4 : vector<1x64xf32> to vector<256x64xf32>
    %6 = arith.addf %3, %5 : vector<256x64xf32>
    %cst = arith.constant 0.000000e+00 : f32
    %7 = vector.broadcast %cst : f32 to vector<256x64xf32>
    %8 = arith.maximumf %6, %7 : vector<256x64xf32>
    %9 = arith.truncf %8 : vector<256x64xf32> to vector<256x64xbf16>
    %c0_5 = arith.constant 0 : index
    %c0_6 = arith.constant 0 : index
    %10 = vector.load %arg4[%c0_5, %c0_6] : memref<64x32xbf16, #tpu.memory_space<vmem>>, vector<64x32xbf16>
    %cst_7 = arith.constant dense<0.000000e+00> : vector<256x32xf32>
    %11 = tpu.matmul %9, %10, %cst_7 {dimension_numbers = #tpu.dot_dimension_numbers<[1], [0], [0], [1], [0, 0, 1, 1], [], []>} : vector<256x64xbf16>, vector<64x32xbf16>, vector<256x32xf32> -> vector<256x32xf32>
    %c0_8 = arith.constant 0 : index
    %c0_9 = arith.constant 0 : index
    %12 = vector.load %arg5[%c0_8, %c0_9] : memref<1x32xf32, #tpu.memory_space<vmem>>, vector<1x32xf32>
    %13 = vector.broadcast %12 : vector<1x32xf32> to vector<256x32xf32>
    %14 = arith.mulf %11, %13 : vector<256x32xf32>
    %c0_10 = arith.constant 0 : index
    %c0_11 = arith.constant 0 : index
    %15 = vector.load %arg6[%c0_10, %c0_11] : memref<1x32xf32, #tpu.memory_space<vmem>>, vector<1x32xf32>
    %16 = vector.broadcast %15 : vector<1x32xf32> to vector<256x32xf32>
    %17 = arith.addf %14, %16 : vector<256x32xf32>
    %cst_12 = arith.constant 0.000000e+00 : f32
    %18 = vector.broadcast %cst_12 : f32 to vector<256x32xf32>
    %19 = arith.maximumf %17, %18 : vector<256x32xf32>
    %20 = arith.truncf %19 : vector<256x32xf32> to vector<256x32xbf16>
    %c0_13 = arith.constant 0 : index
    %c0_14 = arith.constant 0 : index
    %21 = vector.load %arg7[%c0_13, %c0_14] : memref<256x32xbf16, #tpu.memory_space<vmem>>, vector<256x32xbf16>
    tpu.vector_store %arg7[%c0_13, %c0_14], %20 {strides = array<i32>} : memref<256x32xbf16, #tpu.memory_space<vmem>>, vector<256x32xbf16>,
    return
  }
  func.func @transform_0(%arg0: i32) -> (i32, i32) {
    %c0_i32 = arith.constant 0 : i32
    %c0_i32_0 = arith.constant 0 : i32
    return %arg0, %c0_i32 : i32, i32
  }
  func.func @transform_1(%arg0: i32) -> (i32, i32) {
    %c0_i32 = arith.constant 0 : i32
    %c0_i32_0 = arith.constant 0 : i32
    %c0_i32_1 = arith.constant 0 : i32
    return %c0_i32, %c0_i32_0 : i32, i32
  }
  func.func @transform_2(%arg0: i32) -> (i32, i32) {
    %c0_i32 = arith.constant 0 : i32
    %c0_i32_0 = arith.constant 0 : i32
    %c0_i32_1 = arith.constant 0 : i32
    return %c0_i32, %c0_i32_0 : i32, i32
  }
  func.func @transform_3(%arg0: i32) -> (i32, i32) {
    %c0_i32 = arith.constant 0 : i32
    %c0_i32_0 = arith.constant 0 : i32
    %c0_i32_1 = arith.constant 0 : i32
    return %c0_i32, %c0_i32_0 : i32, i32
  }
  func.func @transform_4(%arg0: i32) -> (i32, i32) {
    %c0_i32 = arith.constant 0 : i32
    %c0_i32_0 = arith.constant 0 : i32
    %c0_i32_1 = arith.constant 0 : i32
    return %c0_i32, %c0_i32_0 : i32, i32
  }
  func.func @transform_5(%arg0: i32) -> (i32, i32) {
    %c0_i32 = arith.constant 0 : i32
    %c0_i32_0 = arith.constant 0 : i32
    %c0_i32_1 = arith.constant 0 : i32
    return %c0_i32, %c0_i32_0 : i32, i32
  }
  func.func @transform_6(%arg0: i32) -> (i32, i32) {
    %c0_i32 = arith.constant 0 : i32
    %c0_i32_0 = arith.constant 0 : i32
    return %arg0, %c0_i32 : i32, i32
  }
}

module attributes {stable_mosaic.version = 11 : i64} {
  func.func @kernel(%arg0: i32, %arg1: memref<18x18x32xbf16, #tpu.memory_space<vmem>>, %arg2: memref<9x32x32xbf16, #tpu.memory_space<vmem>>, %arg3: memref<1x32xf32, #tpu.memory_space<vmem>>, %arg4: memref<1x32xf32, #tpu.memory_space<vmem>>, %arg5: memref<256x32xbf16, #tpu.memory_space<vmem>>) attributes {dimension_semantics = [#tpu.dimension_semantics<parallel>], iteration_bounds = array<i64: 2>, scalar_prefetch = 0 : i64, scratch_operands = 0 : i64, tpu.core_type = #tpu.core_type<tc>, window_params = [{transform_indices = @transform_0, window_bounds = array<i64: 18, 18, 32>}, {pipeline_mode = #tpu.pipeline_mode<synchronous>, transform_indices = @transform_1, window_bounds = array<i64: 9, 32, 32>}, {pipeline_mode = #tpu.pipeline_mode<synchronous>, transform_indices = @transform_2, window_bounds = array<i64: 1, 32>}, {pipeline_mode = #tpu.pipeline_mode<synchronous>, transform_indices = @transform_3, window_bounds = array<i64: 1, 32>}, {transform_indices = @transform_4, window_bounds = array<i64: 256, 32>}]} {
    %cst = arith.constant 0.000000e+00 : f32
    %0 = vector.broadcast %cst : f32 to vector<256x32xf32>
    %c0 = arith.constant 0 : index
    %c0_0 = arith.constant 0 : index
    %c0_1 = arith.constant 0 : index
    %1 = vector.load %arg1[%c0, %c0_0, %c0_1] : memref<18x18x32xbf16, #tpu.memory_space<vmem>>, vector<16x16x32xbf16>
    %2 = vector.shape_cast %1 : vector<16x16x32xbf16> to vector<256x32xbf16>
    %c0_2 = arith.constant 0 : index
    %c0_3 = arith.constant 0 : index
    %c0_4 = arith.constant 0 : index
    %3 = vector.load %arg2[%c0_2, %c0_3, %c0_4] : memref<9x32x32xbf16, #tpu.memory_space<vmem>>, vector<1x32x32xbf16>
    %4 = vector.shape_cast %3 : vector<1x32x32xbf16> to vector<32x32xbf16>
    %cst_5 = arith.constant dense<0.000000e+00> : vector<256x32xf32>
    %5 = tpu.matmul %2, %4, %cst_5 {dimension_numbers = #tpu.dot_dimension_numbers<[1], [0], [0], [1], [0, 0, 1, 1], [], []>} : vector<256x32xbf16>, vector<32x32xbf16>, vector<256x32xf32> -> vector<256x32xf32>
    %6 = arith.addf %0, %5 : vector<256x32xf32>
    %c0_6 = arith.constant 0 : index
    %c1 = arith.constant 1 : index
    %c0_7 = arith.constant 0 : index
    %7 = vector.load %arg1[%c0_6, %c1, %c0_7] : memref<18x18x32xbf16, #tpu.memory_space<vmem>>, vector<16x16x32xbf16>
    %8 = vector.shape_cast %7 : vector<16x16x32xbf16> to vector<256x32xbf16>
    %c1_8 = arith.constant 1 : index
    %c0_9 = arith.constant 0 : index
    %c0_10 = arith.constant 0 : index
    %9 = vector.load %arg2[%c1_8, %c0_9, %c0_10] : memref<9x32x32xbf16, #tpu.memory_space<vmem>>, vector<1x32x32xbf16>
    %10 = vector.shape_cast %9 : vector<1x32x32xbf16> to vector<32x32xbf16>
    %cst_11 = arith.constant dense<0.000000e+00> : vector<256x32xf32>
    %11 = tpu.matmul %8, %10, %cst_11 {dimension_numbers = #tpu.dot_dimension_numbers<[1], [0], [0], [1], [0, 0, 1, 1], [], []>} : vector<256x32xbf16>, vector<32x32xbf16>, vector<256x32xf32> -> vector<256x32xf32>
    %12 = arith.addf %6, %11 : vector<256x32xf32>
    %c0_12 = arith.constant 0 : index
    %c2 = arith.constant 2 : index
    %c0_13 = arith.constant 0 : index
    %13 = vector.load %arg1[%c0_12, %c2, %c0_13] : memref<18x18x32xbf16, #tpu.memory_space<vmem>>, vector<16x16x32xbf16>
    %14 = vector.shape_cast %13 : vector<16x16x32xbf16> to vector<256x32xbf16>
    %c2_14 = arith.constant 2 : index
    %c0_15 = arith.constant 0 : index
    %c0_16 = arith.constant 0 : index
    %15 = vector.load %arg2[%c2_14, %c0_15, %c0_16] : memref<9x32x32xbf16, #tpu.memory_space<vmem>>, vector<1x32x32xbf16>
    %16 = vector.shape_cast %15 : vector<1x32x32xbf16> to vector<32x32xbf16>
    %cst_17 = arith.constant dense<0.000000e+00> : vector<256x32xf32>
    %17 = tpu.matmul %14, %16, %cst_17 {dimension_numbers = #tpu.dot_dimension_numbers<[1], [0], [0], [1], [0, 0, 1, 1], [], []>} : vector<256x32xbf16>, vector<32x32xbf16>, vector<256x32xf32> -> vector<256x32xf32>
    %18 = arith.addf %12, %17 : vector<256x32xf32>
    %c1_18 = arith.constant 1 : index
    %c0_19 = arith.constant 0 : index
    %c0_20 = arith.constant 0 : index
    %19 = vector.load %arg1[%c1_18, %c0_19, %c0_20] : memref<18x18x32xbf16, #tpu.memory_space<vmem>>, vector<16x16x32xbf16>
    %20 = vector.shape_cast %19 : vector<16x16x32xbf16> to vector<256x32xbf16>
    %c3 = arith.constant 3 : index
    %c0_21 = arith.constant 0 : index
    %c0_22 = arith.constant 0 : index
    %21 = vector.load %arg2[%c3, %c0_21, %c0_22] : memref<9x32x32xbf16, #tpu.memory_space<vmem>>, vector<1x32x32xbf16>
    %22 = vector.shape_cast %21 : vector<1x32x32xbf16> to vector<32x32xbf16>
    %cst_23 = arith.constant dense<0.000000e+00> : vector<256x32xf32>
    %23 = tpu.matmul %20, %22, %cst_23 {dimension_numbers = #tpu.dot_dimension_numbers<[1], [0], [0], [1], [0, 0, 1, 1], [], []>} : vector<256x32xbf16>, vector<32x32xbf16>, vector<256x32xf32> -> vector<256x32xf32>
    %24 = arith.addf %18, %23 : vector<256x32xf32>
    %c1_24 = arith.constant 1 : index
    %c1_25 = arith.constant 1 : index
    %c0_26 = arith.constant 0 : index
    %25 = vector.load %arg1[%c1_24, %c1_25, %c0_26] : memref<18x18x32xbf16, #tpu.memory_space<vmem>>, vector<16x16x32xbf16>
    %26 = vector.shape_cast %25 : vector<16x16x32xbf16> to vector<256x32xbf16>
    %c4 = arith.constant 4 : index
    %c0_27 = arith.constant 0 : index
    %c0_28 = arith.constant 0 : index
    %27 = vector.load %arg2[%c4, %c0_27, %c0_28] : memref<9x32x32xbf16, #tpu.memory_space<vmem>>, vector<1x32x32xbf16>
    %28 = vector.shape_cast %27 : vector<1x32x32xbf16> to vector<32x32xbf16>
    %cst_29 = arith.constant dense<0.000000e+00> : vector<256x32xf32>
    %29 = tpu.matmul %26, %28, %cst_29 {dimension_numbers = #tpu.dot_dimension_numbers<[1], [0], [0], [1], [0, 0, 1, 1], [], []>} : vector<256x32xbf16>, vector<32x32xbf16>, vector<256x32xf32> -> vector<256x32xf32>
    %30 = arith.addf %24, %29 : vector<256x32xf32>
    %c1_30 = arith.constant 1 : index
    %c2_31 = arith.constant 2 : index
    %c0_32 = arith.constant 0 : index
    %31 = vector.load %arg1[%c1_30, %c2_31, %c0_32] : memref<18x18x32xbf16, #tpu.memory_space<vmem>>, vector<16x16x32xbf16>
    %32 = vector.shape_cast %31 : vector<16x16x32xbf16> to vector<256x32xbf16>
    %c5 = arith.constant 5 : index
    %c0_33 = arith.constant 0 : index
    %c0_34 = arith.constant 0 : index
    %33 = vector.load %arg2[%c5, %c0_33, %c0_34] : memref<9x32x32xbf16, #tpu.memory_space<vmem>>, vector<1x32x32xbf16>
    %34 = vector.shape_cast %33 : vector<1x32x32xbf16> to vector<32x32xbf16>
    %cst_35 = arith.constant dense<0.000000e+00> : vector<256x32xf32>
    %35 = tpu.matmul %32, %34, %cst_35 {dimension_numbers = #tpu.dot_dimension_numbers<[1], [0], [0], [1], [0, 0, 1, 1], [], []>} : vector<256x32xbf16>, vector<32x32xbf16>, vector<256x32xf32> -> vector<256x32xf32>
    %36 = arith.addf %30, %35 : vector<256x32xf32>
    %c2_36 = arith.constant 2 : index
    %c0_37 = arith.constant 0 : index
    %c0_38 = arith.constant 0 : index
    %37 = vector.load %arg1[%c2_36, %c0_37, %c0_38] : memref<18x18x32xbf16, #tpu.memory_space<vmem>>, vector<16x16x32xbf16>
    %38 = vector.shape_cast %37 : vector<16x16x32xbf16> to vector<256x32xbf16>
    %c6 = arith.constant 6 : index
    %c0_39 = arith.constant 0 : index
    %c0_40 = arith.constant 0 : index
    %39 = vector.load %arg2[%c6, %c0_39, %c0_40] : memref<9x32x32xbf16, #tpu.memory_space<vmem>>, vector<1x32x32xbf16>
    %40 = vector.shape_cast %39 : vector<1x32x32xbf16> to vector<32x32xbf16>
    %cst_41 = arith.constant dense<0.000000e+00> : vector<256x32xf32>
    %41 = tpu.matmul %38, %40, %cst_41 {dimension_numbers = #tpu.dot_dimension_numbers<[1], [0], [0], [1], [0, 0, 1, 1], [], []>} : vector<256x32xbf16>, vector<32x32xbf16>, vector<256x32xf32> -> vector<256x32xf32>
    %42 = arith.addf %36, %41 : vector<256x32xf32>
    %c2_42 = arith.constant 2 : index
    %c1_43 = arith.constant 1 : index
    %c0_44 = arith.constant 0 : index
    %43 = vector.load %arg1[%c2_42, %c1_43, %c0_44] : memref<18x18x32xbf16, #tpu.memory_space<vmem>>, vector<16x16x32xbf16>
    %44 = vector.shape_cast %43 : vector<16x16x32xbf16> to vector<256x32xbf16>
    %c7 = arith.constant 7 : index
    %c0_45 = arith.constant 0 : index
    %c0_46 = arith.constant 0 : index
    %45 = vector.load %arg2[%c7, %c0_45, %c0_46] : memref<9x32x32xbf16, #tpu.memory_space<vmem>>, vector<1x32x32xbf16>
    %46 = vector.shape_cast %45 : vector<1x32x32xbf16> to vector<32x32xbf16>
    %cst_47 = arith.constant dense<0.000000e+00> : vector<256x32xf32>
    %47 = tpu.matmul %44, %46, %cst_47 {dimension_numbers = #tpu.dot_dimension_numbers<[1], [0], [0], [1], [0, 0, 1, 1], [], []>} : vector<256x32xbf16>, vector<32x32xbf16>, vector<256x32xf32> -> vector<256x32xf32>
    %48 = arith.addf %42, %47 : vector<256x32xf32>
    %c2_48 = arith.constant 2 : index
    %c2_49 = arith.constant 2 : index
    %c0_50 = arith.constant 0 : index
    %49 = vector.load %arg1[%c2_48, %c2_49, %c0_50] : memref<18x18x32xbf16, #tpu.memory_space<vmem>>, vector<16x16x32xbf16>
    %50 = vector.shape_cast %49 : vector<16x16x32xbf16> to vector<256x32xbf16>
    %c8 = arith.constant 8 : index
    %c0_51 = arith.constant 0 : index
    %c0_52 = arith.constant 0 : index
    %51 = vector.load %arg2[%c8, %c0_51, %c0_52] : memref<9x32x32xbf16, #tpu.memory_space<vmem>>, vector<1x32x32xbf16>
    %52 = vector.shape_cast %51 : vector<1x32x32xbf16> to vector<32x32xbf16>
    %cst_53 = arith.constant dense<0.000000e+00> : vector<256x32xf32>
    %53 = tpu.matmul %50, %52, %cst_53 {dimension_numbers = #tpu.dot_dimension_numbers<[1], [0], [0], [1], [0, 0, 1, 1], [], []>} : vector<256x32xbf16>, vector<32x32xbf16>, vector<256x32xf32> -> vector<256x32xf32>
    %54 = arith.addf %48, %53 : vector<256x32xf32>
    %c0_54 = arith.constant 0 : index
    %c0_55 = arith.constant 0 : index
    %55 = vector.load %arg3[%c0_54, %c0_55] : memref<1x32xf32, #tpu.memory_space<vmem>>, vector<1x32xf32>
    %56 = vector.broadcast %55 : vector<1x32xf32> to vector<256x32xf32>
    %57 = arith.mulf %54, %56 : vector<256x32xf32>
    %c0_56 = arith.constant 0 : index
    %c0_57 = arith.constant 0 : index
    %58 = vector.load %arg4[%c0_56, %c0_57] : memref<1x32xf32, #tpu.memory_space<vmem>>, vector<1x32xf32>
    %59 = vector.broadcast %58 : vector<1x32xf32> to vector<256x32xf32>
    %60 = arith.addf %57, %59 : vector<256x32xf32>
    %cst_58 = arith.constant 0.000000e+00 : f32
    %61 = vector.broadcast %cst_58 : f32 to vector<256x32xf32>
    %62 = arith.maximumf %60, %61 : vector<256x32xf32>
    %63 = arith.truncf %62 : vector<256x32xf32> to vector<256x32xbf16>
    %c0_59 = arith.constant 0 : index
    %c0_60 = arith.constant 0 : index
    %64 = vector.load %arg5[%c0_59, %c0_60] : memref<256x32xbf16, #tpu.memory_space<vmem>>, vector<256x32xbf16>
    tpu.vector_store %arg5[%c0_59, %c0_60], %63 {strides = array<i32>} : memref<256x32xbf16, #tpu.memory_space<vmem>>, vector<256x32xbf16>,
    return
  }
  func.func @transform_0(%arg0: i32) -> (i32, i32, i32) {
    %c0_i32 = arith.constant 0 : i32
    %c0_i32_0 = arith.constant 0 : i32
    %c0_i32_1 = arith.constant 0 : i32
    return %arg0, %c0_i32, %c0_i32_0 : i32, i32, i32
  }
  func.func @transform_1(%arg0: i32) -> (i32, i32, i32) {
    %c0_i32 = arith.constant 0 : i32
    %c0_i32_0 = arith.constant 0 : i32
    %c0_i32_1 = arith.constant 0 : i32
    %c0_i32_2 = arith.constant 0 : i32
    return %c0_i32, %c0_i32_0, %c0_i32_1 : i32, i32, i32
  }
  func.func @transform_2(%arg0: i32) -> (i32, i32) {
    %c0_i32 = arith.constant 0 : i32
    %c0_i32_0 = arith.constant 0 : i32
    %c0_i32_1 = arith.constant 0 : i32
    return %c0_i32, %c0_i32_0 : i32, i32
  }
  func.func @transform_3(%arg0: i32) -> (i32, i32) {
    %c0_i32 = arith.constant 0 : i32
    %c0_i32_0 = arith.constant 0 : i32
    %c0_i32_1 = arith.constant 0 : i32
    return %c0_i32, %c0_i32_0 : i32, i32
  }
  func.func @transform_4(%arg0: i32) -> (i32, i32) {
    %c0_i32 = arith.constant 0 : i32
    %c0_i32_0 = arith.constant 0 : i32
    return %arg0, %c0_i32 : i32, i32
  }
}

module attributes {stable_mosaic.version = 11 : i64} {
  func.func @_conv1x1_res_kernel(%arg0: i32, %arg1: memref<256x32xbf16, #tpu.memory_space<vmem>>, %arg2: memref<32x64xbf16, #tpu.memory_space<vmem>>, %arg3: memref<1x64xf32, #tpu.memory_space<vmem>>, %arg4: memref<1x64xf32, #tpu.memory_space<vmem>>, %arg5: memref<256x64xf32, #tpu.memory_space<vmem>>, %arg6: memref<256x64xf32, #tpu.memory_space<vmem>>) attributes {dimension_semantics = [#tpu.dimension_semantics<parallel>], iteration_bounds = array<i64: 2>, scalar_prefetch = 0 : i64, scratch_operands = 0 : i64, tpu.core_type = #tpu.core_type<tc>, window_params = [{transform_indices = @transform_0, window_bounds = array<i64: 256, 32>}, {pipeline_mode = #tpu.pipeline_mode<synchronous>, transform_indices = @transform_1, window_bounds = array<i64: 32, 64>}, {pipeline_mode = #tpu.pipeline_mode<synchronous>, transform_indices = @transform_2, window_bounds = array<i64: 1, 64>}, {pipeline_mode = #tpu.pipeline_mode<synchronous>, transform_indices = @transform_3, window_bounds = array<i64: 1, 64>}, {transform_indices = @transform_4, window_bounds = array<i64: 256, 64>}, {transform_indices = @transform_5, window_bounds = array<i64: 256, 64>}]} {
    %c0 = arith.constant 0 : index
    %c0_0 = arith.constant 0 : index
    %0 = vector.load %arg1[%c0, %c0_0] : memref<256x32xbf16, #tpu.memory_space<vmem>>, vector<256x32xbf16>
    %c0_1 = arith.constant 0 : index
    %c0_2 = arith.constant 0 : index
    %1 = vector.load %arg2[%c0_1, %c0_2] : memref<32x64xbf16, #tpu.memory_space<vmem>>, vector<32x64xbf16>
    %cst = arith.constant dense<0.000000e+00> : vector<256x64xf32>
    %2 = tpu.matmul %0, %1, %cst {dimension_numbers = #tpu.dot_dimension_numbers<[1], [0], [0], [1], [0, 0, 1, 1], [], []>} : vector<256x32xbf16>, vector<32x64xbf16>, vector<256x64xf32> -> vector<256x64xf32>
    %c0_3 = arith.constant 0 : index
    %c0_4 = arith.constant 0 : index
    %3 = vector.load %arg3[%c0_3, %c0_4] : memref<1x64xf32, #tpu.memory_space<vmem>>, vector<1x64xf32>
    %4 = vector.broadcast %3 : vector<1x64xf32> to vector<256x64xf32>
    %5 = arith.mulf %2, %4 : vector<256x64xf32>
    %c0_5 = arith.constant 0 : index
    %c0_6 = arith.constant 0 : index
    %6 = vector.load %arg4[%c0_5, %c0_6] : memref<1x64xf32, #tpu.memory_space<vmem>>, vector<1x64xf32>
    %7 = vector.broadcast %6 : vector<1x64xf32> to vector<256x64xf32>
    %8 = arith.addf %5, %7 : vector<256x64xf32>
    %cst_7 = arith.constant 0.000000e+00 : f32
    %9 = vector.broadcast %cst_7 : f32 to vector<256x64xf32>
    %10 = arith.maximumf %8, %9 : vector<256x64xf32>
    %c0_8 = arith.constant 0 : index
    %c0_9 = arith.constant 0 : index
    %11 = vector.load %arg5[%c0_8, %c0_9] : memref<256x64xf32, #tpu.memory_space<vmem>>, vector<256x64xf32>
    %12 = arith.addf %10, %11 : vector<256x64xf32>
    %c0_10 = arith.constant 0 : index
    %c0_11 = arith.constant 0 : index
    %13 = vector.load %arg6[%c0_10, %c0_11] : memref<256x64xf32, #tpu.memory_space<vmem>>, vector<256x64xf32>
    tpu.vector_store %arg6[%c0_10, %c0_11], %12 {strides = array<i32>} : memref<256x64xf32, #tpu.memory_space<vmem>>, vector<256x64xf32>,
    return
  }
  func.func @transform_0(%arg0: i32) -> (i32, i32) {
    %c0_i32 = arith.constant 0 : i32
    %c0_i32_0 = arith.constant 0 : i32
    return %arg0, %c0_i32 : i32, i32
  }
  func.func @transform_1(%arg0: i32) -> (i32, i32) {
    %c0_i32 = arith.constant 0 : i32
    %c0_i32_0 = arith.constant 0 : i32
    %c0_i32_1 = arith.constant 0 : i32
    return %c0_i32, %c0_i32_0 : i32, i32
  }
  func.func @transform_2(%arg0: i32) -> (i32, i32) {
    %c0_i32 = arith.constant 0 : i32
    %c0_i32_0 = arith.constant 0 : i32
    %c0_i32_1 = arith.constant 0 : i32
    return %c0_i32, %c0_i32_0 : i32, i32
  }
  func.func @transform_3(%arg0: i32) -> (i32, i32) {
    %c0_i32 = arith.constant 0 : i32
    %c0_i32_0 = arith.constant 0 : i32
    %c0_i32_1 = arith.constant 0 : i32
    return %c0_i32, %c0_i32_0 : i32, i32
  }
  func.func @transform_4(%arg0: i32) -> (i32, i32) {
    %c0_i32 = arith.constant 0 : i32
    %c0_i32_0 = arith.constant 0 : i32
    return %arg0, %c0_i32 : i32, i32
  }
  func.func @transform_5(%arg0: i32) -> (i32, i32) {
    %c0_i32 = arith.constant 0 : i32
    %c0_i32_0 = arith.constant 0 : i32
    return %arg0, %c0_i32 : i32, i32
  }
}

</mosaic_0001>

<llo_original>
// kernel: res_forward.3
$region0: #{res_forward.3}
  #allocation0 [shape = 'u32[]', space=smem, size = 0x4, offset = 0x4, fixed_abs, tag = 'smem constant byte address 0x4 - core index']
  #allocation1 [shape = 'u32[144,128]{1,0:T(1,128)}', space=vmem, size = 0x12000, scoped, tag = 'internal scratch']
  %s0 = inlined_call_operand.hbm [shape: f32[512,64], index: 0, kind: input, shape index: {}]
  %s1 = inlined_call_operand.vmem [shape: f32[1,64], index: 1, kind: input, shape index: {}]
  %s2 = inlined_call_operand.vmem [shape: f32[1,64], index: 2, kind: input, shape index: {}]
  %s3 = inlined_call_operand.vmem [shape: bf16[64,32], index: 3, kind: input, shape index: {}]
  %s4 = inlined_call_operand.vmem [shape: f32[1,32], index: 4, kind: input, shape index: {}]
  %s5 = inlined_call_operand.vmem [shape: f32[1,32], index: 5, kind: input, shape index: {}]
  %s6 = inlined_call_operand.vmem [shape: bf16[512,32], index: 6, kind: output, shape index: {}]
  %s7 = sld [smem:[#allocation0]]
  $region61: #{res_forward.3} parent=0
    _
  %s9 = ssub.s32 1, %s7
  %s10 = scalar_select 0, %s9, %s7
  $region1: #{res_forward.3} parent=0
    #allocation2 [shape = 'u8[262144]{0}', space=vmem, size = 0x40000, scoped, tag = 'input window, operand 0']
    #allocation3 [shape = 's32[2]{0}', space=sflag, size = 0x8, scoped, tag = 'scoped memory for res_forward.3']
    %11 = vsyncpa [#allocation3], 0
    %s12 = scalar_lea.sflag [#allocation3], 1
    %13 = vsyncpa %s12, 0
    loop: start=0, step=1, limit=4
    $region2: #{res_forward.3} parent=1 // loop_pre_header
      _
    $region3: #{res_forward.3} parent=1 // loop_header
      %s15 = sphi 0, %s19
      %p16 = scmp.ge.s32.totalorder %s15, 4
      %s25 = sphi 0, %s27
      %s28 = sphi 0, %s25
      %s29 = sphi 0, %s28
      %s45 = sphi 0, %s29
      %s49 = sphi 0, %s49
      %s51 = sphi 0, %s49
      %s52 = sphi 0, %s51
      %s66 = sphi 0, %s52
      %s70 = sphi 0, %s70
      %s72 = sphi 0, %s70
      %s73 = sphi 0, %s72
      %s87 = sphi 0, %s73
      %s91 = sphi 0, %s91
      %s93 = sphi 0, %s91
      %s94 = sphi 0, %s93
      %s108 = sphi 0, %s94
      %s112 = sphi 0, %s112
      %s114 = sphi 0, %s112
      %s115 = sphi 0, %s114
      %s129 = sphi 0, %s115
      %s133 = sphi 0, %s133
      %s135 = sphi 0, %s133
      %s136 = sphi 0, %s135
      %s150 = sphi 0, %s136
      %s156 = sphi 0, %s158
      %s159 = sphi 0, %s156
      %s160 = sphi 0, %s159
      %s176 = sphi 0, %s160
    $region4: #{res_forward.3} parent=1 // loop_header_branch
      %18 = sbr.rel (%p16) target = $region8
    $region5: #{res_forward.3} parent=1 // loop_body
      %s20 = ssub.s32 %s15, 1
      %s21 = ssub.s32 %s15, 2
      %s22 = sadd.s32 %s15, 1
      %s23 = ssub.s32 %s15, %s22
      %p24 = scmp.eq.s32.totalorder %s23, 0
      %s26 = sadd.s32 %s25, 1
      %s27 = scalar_select %p24, %s25, %s26
      %p30 = pneg %p24
      %p31 = scmp.eq.s32.totalorder %s15, 1
      %p32 = por %p30, %p31
      %p33 = scmp.ne.s32.totalorder %s25, %s28
      %p34 = scmp.eq.s32.totalorder %s15, 0
      %p35 = por %p33, %p34
      %p36 = scmp.ne.s32.totalorder %s25, %s28
      %p37 = scmp.eq.s32.totalorder %s20, 1
      %p38 = por %p36, %p37
      %p39 = scmp.ne.s32.totalorder %s28, %s29
      %p40 = scmp.eq.s32.totalorder %s20, 0
      %p41 = por %p39, %p40
      %p42 = scmp.ne.s32.totalorder %s28, %s29
      %p43 = scmp.eq.s32.totalorder %s21, 1
      %p44 = por %p42, %p43
      %p46 = scmp.ne.s32.totalorder %s29, %s45
      %p47 = scmp.eq.s32.totalorder %s21, 0
      %p48 = por %p46, %p47
      %s50 = sadd.s32 %s49, 1
      %p53 = scmp.eq.s32.totalorder %s15, 1
      %p54 = scmp.ne.s32.totalorder %s49, %s51
      %p55 = scmp.eq.s32.totalorder %s15, 0
      %p56 = por %p54, %p55
      %p57 = scmp.ne.s32.totalorder %s49, %s51
      %p58 = scmp.eq.s32.totalorder %s20, 1
      %p59 = por %p57, %p58
      %p60 = scmp.ne.s32.totalorder %s51, %s52
      %p61 = scmp.eq.s32.totalorder %s20, 0
      %p62 = por %p60, %p61
      %p63 = scmp.ne.s32.totalorder %s51, %s52
      %p64 = scmp.eq.s32.totalorder %s21, 1
      %p65 = por %p63, %p64
      %p67 = scmp.ne.s32.totalorder %s52, %s66
      %p68 = scmp.eq.s32.totalorder %s21, 0
      %p69 = por %p67, %p68
      %s71 = sadd.s32 %s70, 1
      %p74 = scmp.eq.s32.totalorder %s15, 1
      %p75 = scmp.ne.s32.totalorder %s70, %s72
      %p76 = scmp.eq.s32.totalorder %s15, 0
      %p77 = por %p75, %p76
      %p78 = scmp.ne.s32.totalorder %s70, %s72
      %p79 = scmp.eq.s32.totalorder %s20, 1
      %p80 = por %p78, %p79
      %p81 = scmp.ne.s32.totalorder %s72, %s73
      %p82 = scmp.eq.s32.totalorder %s20, 0
      %p83 = por %p81, %p82
      %p84 = scmp.ne.s32.totalorder %s72, %s73
      %p85 = scmp.eq.s32.totalorder %s21, 1
      %p86 = por %p84, %p85
      %p88 = scmp.ne.s32.totalorder %s73, %s87
      %p89 = scmp.eq.s32.totalorder %s21, 0
      %p90 = por %p88, %p89
      %s92 = sadd.s32 %s91, 1
      %p95 = scmp.eq.s32.totalorder %s15, 1
      %p96 = scmp.ne.s32.totalorder %s91, %s93
      %p97 = scmp.eq.s32.totalorder %s15, 0
      %p98 = por %p96, %p97
      %p99 = scmp.ne.s32.totalorder %s91, %s93
      %p100 = scmp.eq.s32.totalorder %s20, 1
      %p101 = por %p99, %p100
      %p102 = scmp.ne.s32.totalorder %s93, %s94
      %p103 = scmp.eq.s32.totalorder %s20, 0
      %p104 = por %p102, %p103
      %p105 = scmp.ne.s32.totalorder %s93, %s94
      %p106 = scmp.eq.s32.totalorder %s21, 1
      %p107 = por %p105, %p106
      %p109 = scmp.ne.s32.totalorder %s94, %s108
      %p110 = scmp.eq.s32.totalorder %s21, 0
      %p111 = por %p109, %p110
      %s113 = sadd.s32 %s112, 1
      %p116 = scmp.eq.s32.totalorder %s15, 1
      %p117 = scmp.ne.s32.totalorder %s112, %s114
      %p118 = scmp.eq.s32.totalorder %s15, 0
      %p119 = por %p117, %p118
      %p120 = scmp.ne.s32.totalorder %s112, %s114
      %p121 = scmp.eq.s32.totalorder %s20, 1
      %p122 = por %p120, %p121
      %p123 = scmp.ne.s32.totalorder %s114, %s115
      %p124 = scmp.eq.s32.totalorder %s20, 0
      %p125 = por %p123, %p124
      %p126 = scmp.ne.s32.totalorder %s114, %s115
      %p127 = scmp.eq.s32.totalorder %s21, 1
      %p128 = por %p126, %p127
      %p130 = scmp.ne.s32.totalorder %s115, %s129
      %p131 = scmp.eq.s32.totalorder %s21, 0
      %p132 = por %p130, %p131
      %s134 = sadd.s32 %s133, 1
      %p137 = scmp.eq.s32.totalorder %s15, 1
      %p138 = scmp.ne.s32.totalorder %s133, %s135
      %p139 = scmp.eq.s32.totalorder %s15, 0
      %p140 = por %p138, %p139
      %p141 = scmp.ne.s32.totalorder %s133, %s135
      %p142 = scmp.eq.s32.totalorder %s20, 1
      %p143 = por %p141, %p142
      %p144 = scmp.ne.s32.totalorder %s135, %s136
      %p145 = scmp.eq.s32.totalorder %s20, 0
      %p146 = por %p144, %p145
      %p147 = scmp.ne.s32.totalorder %s135, %s136
      %p148 = scmp.eq.s32.totalorder %s21, 1
      %p149 = por %p147, %p148
      %p151 = scmp.ne.s32.totalorder %s136, %s150
      %p152 = scmp.eq.s32.totalorder %s21, 0
      %p153 = por %p151, %p152
      %s154 = ssub.s32 %s15, %s22
      %p155 = scmp.eq.s32.totalorder %s154, 0
      %s157 = sadd.s32 %s156, 1
      %s158 = scalar_select %p155, %s156, %s157
      %p161 = pneg %p155
      %p162 = scmp.eq.s32.totalorder %s15, 1
      %p163 = por %p161, %p162
      %p164 = scmp.ne.s32.totalorder %s156, %s159
      %p165 = scmp.eq.s32.totalorder %s15, 0
      %p166 = por %p164, %p165
      %p167 = scmp.ne.s32.totalorder %s156, %s159
      %p168 = scmp.eq.s32.totalorder %s20, 1
      %p169 = por %p167, %p168
      %p170 = scmp.ne.s32.totalorder %s159, %s160
      %p171 = scmp.eq.s32.totalorder %s20, 0
      %p172 = por %p170, %p171
      %p173 = scmp.ne.s32.totalorder %s159, %s160
      %p174 = scmp.eq.s32.totalorder %s21, 1
      %p175 = por %p173, %p174
      %p177 = scmp.ne.s32.totalorder %s160, %s176
      %p178 = scmp.eq.s32.totalorder %s21, 0
      %p179 = por %p177, %p178
      %p180 = scmp.le.s32.totalorder 1, %s15
      %p181 = scmp.lt.s32.totalorder %s15, 3
      %p182 = pnand %p180, %p181
      %p183 = pneg %p182
      // Predicated region
      $region9: #{res_forward.3} parent=5 // pred_check
        _
      $region10: #{res_forward.3} parent=5 // pred_check_branch
        %185 = sbr.rel (%p182) target = $region12
      $region11: #{res_forward.3} parent=5 // pred_region
        %s186 = ssub.s32 %s15, 1
        // Predicated region
        $region13: #{res_forward.3} parent=11 // pred_check
          %p187 = pneg %p62
        $region14: #{res_forward.3} parent=11 // pred_check_branch
          %189 = sbr.rel (%p187) target = $region16
        $region15: #{res_forward.3} parent=11 // pred_region
          _
        $region16: #{res_forward.3} parent=11 // pred_fallthru
          _
        // Predicated region
        $region17: #{res_forward.3} parent=11 // pred_check
          %p190 = pneg %p83
        $region18: #{res_forward.3} parent=11 // pred_check_branch
          %192 = sbr.rel (%p190) target = $region20
        $region19: #{res_forward.3} parent=11 // pred_region
          _
        $region20: #{res_forward.3} parent=11 // pred_fallthru
          _
        // Predicated region
        $region21: #{res_forward.3} parent=11 // pred_check
          %p193 = pneg %p104
        $region22: #{res_forward.3} parent=11 // pred_check_branch
          %195 = sbr.rel (%p193) target = $region24
        $region23: #{res_forward.3} parent=11 // pred_region
          _
        $region24: #{res_forward.3} parent=11 // pred_fallthru
          _
        // Predicated region
        $region25: #{res_forward.3} parent=11 // pred_check
          %p196 = pneg %p125
        $region26: #{res_forward.3} parent=11 // pred_check_branch
          %198 = sbr.rel (%p196) target = $region28
        $region27: #{res_forward.3} parent=11 // pred_region
          _
        $region28: #{res_forward.3} parent=11 // pred_fallthru
          _
        // Predicated region
        $region29: #{res_forward.3} parent=11 // pred_check
          %p199 = pneg %p146
        $region30: #{res_forward.3} parent=11 // pred_check_branch
          %201 = sbr.rel (%p199) target = $region32
        $region31: #{res_forward.3} parent=11 // pred_region
          _
        $region32: #{res_forward.3} parent=11 // pred_fallthru
          _
      $region12: #{res_forward.3} parent=5 // pred_fallthru
        _
      %p202 = scmp.lt.s32.totalorder %s15, 2
      // Predicated region
      $region33: #{res_forward.3} parent=5 // pred_check
        %p203 = pneg %p202
      $region34: #{res_forward.3} parent=5 // pred_check_branch
        %205 = sbr.rel (%p203) target = $region36
      $region35: #{res_forward.3} parent=5 // pred_region
        // Predicated region
        $region37: #{res_forward.3} parent=35 // pred_check
          %p206 = pneg %p35
        $region38: #{res_forward.3} parent=35 // pred_check_branch
          %208 = sbr.rel (%p206) target = $region40
        $region39: #{res_forward.3} parent=35 // pred_region
          %s209 = sand.u32 %s25, 1
          %s210 = scalar_lea.sflag [#allocation3], %s209
          %s211 = sand.u32 %s25, 1
          %s212 = smul.addr %s211, 256
          %s213 = scalar_lea.vmem [#allocation2], %s212
          %s214 = smul.u32 32, %s15
          %s216 = ssub.s32 4096, 4096
          %217 = vsyncadd %s210, %s216
          %s218 = smul.addr %s214, 128
          %s219 = scalar_lea.hbm %s0, %s218
          %s220 = sshll.u32 %s213, 4
          %s221 = int_to_ptr.vmem [resolvable:$true] %s220
          %226 = dma.hbm_to_vmem [thread:$0]  %s219, 4096, %s221, %s210, 128, 128, 8
        $region40: #{res_forward.3} parent=35 // pred_fallthru
          _
      $region36: #{res_forward.3} parent=5 // pred_fallthru
        _
      %p227 = scmp.le.s32.totalorder 1, %s15
      %p228 = scmp.lt.s32.totalorder %s15, 3
      %p229 = pnand %p227, %p228
      %p230 = pneg %p229
      // Predicated region
      $region41: #{res_forward.3} parent=5 // pred_check
        _
      $region42: #{res_forward.3} parent=5 // pred_check_branch
        %232 = sbr.rel (%p229) target = $region44
      $region43: #{res_forward.3} parent=5 // pred_region
        %s233 = ssub.s32 %s15, 1
        %s234 = sand.u32 %s28, 1
        %s235 = scalar_lea.sflag [#allocation3], %s234
        %s236 = sand.u32 %s28, 1
        %s237 = smul.addr %s236, 256
        %s238 = scalar_lea.vmem [#allocation2], %s237
        // Predicated region
        $region45: #{res_forward.3} parent=43 // pred_check
          %p239 = pneg %p41
        $region46: #{res_forward.3} parent=43 // pred_check_branch
          %241 = sbr.rel (%p239) target = $region48
        $region47: #{res_forward.3} parent=43 // pred_region
          %242 = dma.done %s235, 4096
        $region48: #{res_forward.3} parent=43 // pred_fallthru
          _
        %s243 = sand.u32 %s28, 1
        %s244 = scalar_lea.sflag [#allocation3], %s243
        %s245 = sand.u32 %s28, 1
        %s246 = smul.addr %s245, 256
        %s247 = scalar_lea.vmem [#allocation2], %s246
        %p248 = pneg %p41
        %p249 = pneg %p38
        %p250 = pneg %p62
        %p251 = pneg %p59
        %p252 = pneg %p83
        %p253 = pneg %p80
        %p254 = pneg %p104
        %p255 = pneg %p101
        %p256 = pneg %p125
        %p257 = pneg %p122
        %p258 = pneg %p146
        %p259 = pneg %p143
        %p260 = pneg %p172
        %p261 = pneg %p169
        %s262 = smul.u32 32, %s20
        %p263 = scmp.lt.s32.totalorder %s262, 63
        %s264 = scalar_select %p263, %s262, 63
        %s265 = smul.addr %s264, 4
        %s266 = scalar_lea.vmem %s6, %s265
        %s267 = smul.u32 32, %s20
        %s268 = smul.u32 32, %s20
        %p269 = scmp.lt.s32.totalorder %s268, 63
        %s270 = scalar_select %p269, %s268, 63
        %s271 = smul.addr %s270, 4
        %s272 = scalar_lea.vmem %s6, %s271
        %s273 = smul.u32 32, %s20
        %v275 = vld [vmem:[%s238] sm:$0xff]
        %v276 = vld [vmem:[%s238 + $0x8] sm:$0xff]
        %v277 = vld [vmem:[%s238 + $0x10] sm:$0xff]
        %v278 = vld [vmem:[%s238 + $0x18] sm:$0xff]
        %v279 = vld [vmem:[%s238 + $0x20] sm:$0xff]
        %v280 = vld [vmem:[%s238 + $0x28] sm:$0xff]
        %v281 = vld [vmem:[%s238 + $0x30] sm:$0xff]
        %v282 = vld [vmem:[%s238 + $0x38] sm:$0xff]
        %v283 = vld [vmem:[%s238 + $0x40] sm:$0xff]
        %v284 = vld [vmem:[%s238 + $0x48] sm:$0xff]
        %v285 = vld [vmem:[%s238 + $0x50] sm:$0xff]
        %v286 = vld [vmem:[%s238 + $0x58] sm:$0xff]
        %v287 = vld [vmem:[%s238 + $0x60] sm:$0xff]
        %v288 = vld [vmem:[%s238 + $0x68] sm:$0xff]
        %v289 = vld [vmem:[%s238 + $0x70] sm:$0xff]
        %v290 = vld [vmem:[%s238 + $0x78] sm:$0xff]
        %v291 = vld [vmem:[%s238 + $0x80] sm:$0xff]
        %v292 = vld [vmem:[%s238 + $0x88] sm:$0xff]
        %v293 = vld [vmem:[%s238 + $0x90] sm:$0xff]
        %v294 = vld [vmem:[%s238 + $0x98] sm:$0xff]
        %v295 = vld [vmem:[%s238 + $0xa0] sm:$0xff]
        %v296 = vld [vmem:[%s238 + $0xa8] sm:$0xff]
        %v297 = vld [vmem:[%s238 + $0xb0] sm:$0xff]
        %v298 = vld [vmem:[%s238 + $0xb8] sm:$0xff]
        %v299 = vld [vmem:[%s238 + $0xc0] sm:$0xff]
        %v300 = vld [vmem:[%s238 + $0xc8] sm:$0xff]
        %v301 = vld [vmem:[%s238 + $0xd0] sm:$0xff]
        %v302 = vld [vmem:[%s238 + $0xd8] sm:$0xff]
        %v303 = vld [vmem:[%s238 + $0xe0] sm:$0xff]
        %v304 = vld [vmem:[%s238 + $0xe8] sm:$0xff]
        %v305 = vld [vmem:[%s238 + $0xf0] sm:$0xff]
        %v306 = vld [vmem:[%s238 + $0xf8] sm:$0xff]
        %v307 = vld [vmem:[%s1] sm:$0x1]
        %v309 = vlaneseq
        %v310 = vshrl.u32 %v309, 7
        %v311 = vsub.s32 0, %v310
        %v312 = vrot.slane %v307, %v311
        %v314 = vmul.f32 %v275, %v312
        %v315 = vmul.f32 %v276, %v312
        %v316 = vmul.f32 %v277, %v312
        %v317 = vmul.f32 %v278, %v312
        %v318 = vmul.f32 %v279, %v312
        %v319 = vmul.f32 %v280, %v312
        %v320 = vmul.f32 %v281, %v312
        %v321 = vmul.f32 %v282, %v312
        %v322 = vmul.f32 %v283, %v312
        %v323 = vmul.f32 %v284, %v312
        %v324 = vmul.f32 %v285, %v312
        %v325 = vmul.f32 %v286, %v312
        %v326 = vmul.f32 %v287, %v312
        %v327 = vmul.f32 %v288, %v312
        %v328 = vmul.f32 %v289, %v312
        %v329 = vmul.f32 %v290, %v312
        %v330 = vmul.f32 %v291, %v312
        %v331 = vmul.f32 %v292, %v312
        %v332 = vmul.f32 %v293, %v312
        %v333 = vmul.f32 %v294, %v312
        %v334 = vmul.f32 %v295, %v312
        %v335 = vmul.f32 %v296, %v312
        %v336 = vmul.f32 %v297, %v312
        %v337 = vmul.f32 %v298, %v312
        %v338 = vmul.f32 %v299, %v312
        %v339 = vmul.f32 %v300, %v312
        %v340 = vmul.f32 %v301, %v312
        %v341 = vmul.f32 %v302, %v312
        %v342 = vmul.f32 %v303, %v312
        %v343 = vmul.f32 %v304, %v312
        %v344 = vmul.f32 %v305, %v312
        %v345 = vmul.f32 %v306, %v312
        %v346 = vld [vmem:[%s2] sm:$0x1]
        %v348 = vlaneseq
        %v349 = vshrl.u32 %v348, 7
        %v350 = vsub.s32 0, %v349
        %v351 = vrot.slane %v346, %v350
        %v353 = vadd.f32 %v314, %v351
        %v354 = vadd.f32 %v315, %v351
        %v355 = vadd.f32 %v316, %v351
        %v356 = vadd.f32 %v317, %v351
        %v357 = vadd.f32 %v318, %v351
        %v358 = vadd.f32 %v319, %v351
        %v359 = vadd.f32 %v320, %v351
        %v360 = vadd.f32 %v321, %v351
        %v361 = vadd.f32 %v322, %v351
        %v362 = vadd.f32 %v323, %v351
        %v363 = vadd.f32 %v324, %v351
        %v364 = vadd.f32 %v325, %v351
        %v365 = vadd.f32 %v326, %v351
        %v366 = vadd.f32 %v327, %v351
        %v367 = vadd.f32 %v328, %v351
        %v368 = vadd.f32 %v329, %v351
        %v369 = vadd.f32 %v330, %v351
        %v370 = vadd.f32 %v331, %v351
        %v371 = vadd.f32 %v332, %v351
        %v372 = vadd.f32 %v333, %v351
        %v373 = vadd.f32 %v334, %v351
        %v374 = vadd.f32 %v335, %v351
        %v375 = vadd.f32 %v336, %v351
        %v376 = vadd.f32 %v337, %v351
        %v377 = vadd.f32 %v338, %v351
        %v378 = vadd.f32 %v339, %v351
        %v379 = vadd.f32 %v340, %v351
        %v380 = vadd.f32 %v341, %v351
        %v381 = vadd.f32 %v342, %v351
        %v382 = vadd.f32 %v343, %v351
        %v383 = vadd.f32 %v344, %v351
        %v384 = vadd.f32 %v345, %v351
        %v385 = vmax.f32 %v353, 0.0
        %v386 = vmax.f32 %v354, 0.0
        %v387 = vmax.f32 %v355, 0.0
        %v388 = vmax.f32 %v356, 0.0
        %v389 = vmax.f32 %v357, 0.0
        %v390 = vmax.f32 %v358, 0.0
        %v391 = vmax.f32 %v359, 0.0
        %v392 = vmax.f32 %v360, 0.0
        %v393 = vmax.f32 %v361, 0.0
        %v394 = vmax.f32 %v362, 0.0
        %v395 = vmax.f32 %v363, 0.0
        %v396 = vmax.f32 %v364, 0.0
        %v397 = vmax.f32 %v365, 0.0
        %v398 = vmax.f32 %v366, 0.0
        %v399 = vmax.f32 %v367, 0.0
        %v400 = vmax.f32 %v368, 0.0
        %v401 = vmax.f32 %v369, 0.0
        %v402 = vmax.f32 %v370, 0.0
        %v403 = vmax.f32 %v371, 0.0
        %v404 = vmax.f32 %v372, 0.0
        %v405 = vmax.f32 %v373, 0.0
        %v406 = vmax.f32 %v374, 0.0
        %v407 = vmax.f32 %v375, 0.0
        %v408 = vmax.f32 %v376, 0.0
        %v409 = vmax.f32 %v377, 0.0
        %v410 = vmax.f32 %v378, 0.0
        %v411 = vmax.f32 %v379, 0.0
        %v412 = vmax.f32 %v380, 0.0
        %v413 = vmax.f32 %v381, 0.0
        %v414 = vmax.f32 %v382, 0.0
        %v415 = vmax.f32 %v383, 0.0
        %v416 = vmax.f32 %v384, 0.0
        %v417 = vpack.c.bf16 %v386, %v385
        %v418 = vpack.c.bf16 %v388, %v387
        %v419 = vpack.c.bf16 %v390, %v389
        %v420 = vpack.c.bf16 %v392, %v391
        %v421 = vpack.c.bf16 %v394, %v393
        %v422 = vpack.c.bf16 %v396, %v395
        %v423 = vpack.c.bf16 %v398, %v397
        %v424 = vpack.c.bf16 %v400, %v399
        %v425 = vpack.c.bf16 %v402, %v401
        %v426 = vpack.c.bf16 %v404, %v403
        %v427 = vpack.c.bf16 %v406, %v405
        %v428 = vpack.c.bf16 %v408, %v407
        %v429 = vpack.c.bf16 %v410, %v409
        %v430 = vpack.c.bf16 %v412, %v411
        %v431 = vpack.c.bf16 %v414, %v413
        %v432 = vpack.c.bf16 %v416, %v415
        %v433 = vld [vmem:[%s3] sm:$0xf]
        %v434 = vld [vmem:[%s3 + $0x4] sm:$0xf]
        %v435 = vld [vmem:[%s3 + $0x8] sm:$0xf]
        %v436 = vld [vmem:[%s3 + $0xc] sm:$0xf]
        %v437 = vld [vmem:[%s3 + $0x10] sm:$0xf]
        %v438 = vld [vmem:[%s3 + $0x14] sm:$0xf]
        %v439 = vld [vmem:[%s3 + $0x18] sm:$0xf]
        %v440 = vld [vmem:[%s3 + $0x1c] sm:$0xf]
        %v449 = vunpack.c.l.b16 %v433
        %v450 = vunpack.c.l.b16 %v434
        %v451 = vunpack.c.l.b16 %v435
        %v452 = vunpack.c.l.b16 %v436
        %v453 = vunpack.c.l.b16 %v437
        %v454 = vunpack.c.l.b16 %v438
        %v455 = vunpack.c.l.b16 %v439
        %v456 = vunpack.c.l.b16 %v440
        %v457 = vpack.c.b16 %v450, %v449
        %v458 = vpack.c.b16 %v452, %v451
        %v459 = vpack.c.b16 %v454, %v453
        %v460 = vpack.c.b16 %v456, %v455
        %vm465 = vcmask 523264
        %v467 = vsel %vm465, %v417, 0
        %v470 = vsel %vm465, %v418, 0
        %v473 = vsel %vm465, %v419, 0
        %v476 = vsel %vm465, %v420, 0
        %v479 = vsel %vm465, %v421, 0
        %v482 = vsel %vm465, %v422, 0
        %v485 = vsel %vm465, %v423, 0
        %v488 = vsel %vm465, %v424, 0
        %v491 = vsel %vm465, %v425, 0
        %v494 = vsel %vm465, %v426, 0
        %v497 = vsel %vm465, %v427, 0
        %v500 = vsel %vm465, %v428, 0
        %v503 = vsel %vm465, %v429, 0
        %v506 = vsel %vm465, %v430, 0
        %v509 = vsel %vm465, %v431, 0
        %v512 = vsel %vm465, %v432, 0
        %514 = vmatprep.subr.bf16.mxu0 0
        %515 = vmatpush1.bf16.msra.mxu0 %v457
        %516 = vmatprep.subr.bf16.mxu0 0
        %517 = vmatpush1.bf16.msra.mxu0 %v458
        %518 = vmatprep.subr.bf16.mxu0 0
        %519 = vmatpush1.bf16.msra.mxu0 %v459
        %520 = vmatprep.subr.bf16.mxu0 0
        %521 = vmatpush1.bf16.msra.mxu0 %v460
        %522 = vmatprep.subr.bf16.mxu0 0
        %523 = vmatpush1.bf16.msra.mxu0 0
        %524 = vmatprep.subr.bf16.mxu0 0
        %525 = vmatpush1.bf16.msra.mxu0 0
        %526 = vmatprep.subr.bf16.mxu0 0
        %527 = vmatpush1.bf16.msra.mxu0 0
        %528 = vmatprep.subr.bf16.mxu0 0
        %529 = vmatpush1.bf16.msra.mxu0 0
        %530 = vmatprep.subr.bf16.mxu0 0
        %531 = vmatpush1.bf16.msra.mxu0 0
        %532 = vmatprep.subr.bf16.mxu0 0
        %533 = vmatpush1.bf16.msra.mxu0 0
        %534 = vmatprep.subr.bf16.mxu0 0
        %535 = vmatpush1.bf16.msra.mxu0 0
        %536 = vmatprep.subr.bf16.mxu0 0
        %537 = vmatpush1.bf16.msra.mxu0 0
        %538 = vmatprep.subr.bf16.mxu0 0
        %539 = vmatpush1.bf16.msra.mxu0 0
        %540 = vmatprep.subr.bf16.mxu0 0
        %541 = vmatpush1.bf16.msra.mxu0 0
        %542 = vmatprep.subr.bf16.mxu0 0
        %543 = vmatpush1.bf16.msra.mxu0 0
        %544 = vmatprep.subr.bf16.mxu0 0
        %545 = vmatpush1.bf16.msra.mxu0 0
        %546 = vmatprep.mubr.bf16.mxu0 0
        %547 = vmatmul.mubr.bf16.gmra.mrb[0].mxu0 %v467
        %v548 = vpop.f32.mrb[0].mxu0
        %v549 = vadd.f32 0.0, %v548
        %v550 = vpop.f32.mrb[0].mxu0
        %v551 = vpop.f32.mrb[0].mxu0
        %v552 = vadd.f32 0.0, %v551
        %v553 = vpop.f32.mrb[0].mxu0
        %554 = vmatprep.mubr.bf16.mxu0 0
        %555 = vmatmul.mubr.bf16.gmra.mrb[0].mxu0 %v470
        %v556 = vpop.f32.mrb[0].mxu0
        %v557 = vadd.f32 0.0, %v556
        %v558 = vpop.f32.mrb[0].mxu0
        %v559 = vpop.f32.mrb[0].mxu0
        %v560 = vadd.f32 0.0, %v559
        %v561 = vpop.f32.mrb[0].mxu0
        %562 = vmatprep.mubr.bf16.mxu0 0
        %563 = vmatmul.mubr.bf16.gmra.mrb[0].mxu0 %v473
        %v564 = vpop.f32.mrb[0].mxu0
        %v565 = vadd.f32 0.0, %v564
        %v566 = vpop.f32.mrb[0].mxu0
        %v567 = vpop.f32.mrb[0].mxu0
        %v568 = vadd.f32 0.0, %v567
        %v569 = vpop.f32.mrb[0].mxu0
        %570 = vmatprep.mubr.bf16.mxu0 0
        %571 = vmatmul.mubr.bf16.gmra.mrb[0].mxu0 %v476
        %v572 = vpop.f32.mrb[0].mxu0
        %v573 = vadd.f32 0.0, %v572
        %v574 = vpop.f32.mrb[0].mxu0
        %v575 = vpop.f32.mrb[0].mxu0
        %v576 = vadd.f32 0.0, %v575
        %v577 = vpop.f32.mrb[0].mxu0
        %578 = vmatprep.mubr.bf16.mxu0 0
        %579 = vmatmul.mubr.bf16.gmra.mrb[0].mxu0 %v479
        %v580 = vpop.f32.mrb[0].mxu0
        %v581 = vadd.f32 0.0, %v580
        %v582 = vpop.f32.mrb[0].mxu0
        %v583 = vpop.f32.mrb[0].mxu0
        %v584 = vadd.f32 0.0, %v583
        %v585 = vpop.f32.mrb[0].mxu0
        %586 = vmatprep.mubr.bf16.mxu0 0
        %587 = vmatmul.mubr.bf16.gmra.mrb[0].mxu0 %v482
        %v588 = vpop.f32.mrb[0].mxu0
        %v589 = vadd.f32 0.0, %v588
        %v590 = vpop.f32.mrb[0].mxu0
        %v591 = vpop.f32.mrb[0].mxu0
        %v592 = vadd.f32 0.0, %v591
        %v593 = vpop.f32.mrb[0].mxu0
        %594 = vmatprep.mubr.bf16.mxu0 0
        %595 = vmatmul.mubr.bf16.gmra.mrb[0].mxu0 %v485
        %v596 = vpop.f32.mrb[0].mxu0
        %v597 = vadd.f32 0.0, %v596
        %v598 = vpop.f32.mrb[0].mxu0
        %v599 = vpop.f32.mrb[0].mxu0
        %v600 = vadd.f32 0.0, %v599
        %v601 = vpop.f32.mrb[0].mxu0
        %602 = vmatprep.mubr.bf16.mxu0 0
        %603 = vmatmul.mubr.bf16.gmra.mrb[0].mxu0 %v488
        %v604 = vpop.f32.mrb[0].mxu0
        %v605 = vadd.f32 0.0, %v604
        %v606 = vpop.f32.mrb[0].mxu0
        %v607 = vpop.f32.mrb[0].mxu0
        %v608 = vadd.f32 0.0, %v607
        %v609 = vpop.f32.mrb[0].mxu0
        %610 = vmatprep.mubr.bf16.mxu0 0
        %611 = vmatmul.mubr.bf16.gmra.mrb[0].mxu0 %v491
        %v612 = vpop.f32.mrb[0].mxu0
        %v613 = vadd.f32 0.0, %v612
        %v614 = vpop.f32.mrb[0].mxu0
        %v615 = vpop.f32.mrb[0].mxu0
        %v616 = vadd.f32 0.0, %v615
        %v617 = vpop.f32.mrb[0].mxu0
        %618 = vmatprep.mubr.bf16.mxu0 0
        %619 = vmatmul.mubr.bf16.gmra.mrb[0].mxu0 %v494
        %v620 = vpop.f32.mrb[0].mxu0
        %v621 = vadd.f32 0.0, %v620
        %v622 = vpop.f32.mrb[0].mxu0
        %v623 = vpop.f32.mrb[0].mxu0
        %v624 = vadd.f32 0.0, %v623
        %v625 = vpop.f32.mrb[0].mxu0
        %626 = vmatprep.mubr.bf16.mxu0 0
        %627 = vmatmul.mubr.bf16.gmra.mrb[0].mxu0 %v497
        %v628 = vpop.f32.mrb[0].mxu0
        %v629 = vadd.f32 0.0, %v628
        %v630 = vpop.f32.mrb[0].mxu0
        %v631 = vpop.f32.mrb[0].mxu0
        %v632 = vadd.f32 0.0, %v631
        %v633 = vpop.f32.mrb[0].mxu0
        %634 = vmatprep.mubr.bf16.mxu0 0
        %635 = vmatmul.mubr.bf16.gmra.mrb[0].mxu0 %v500
        %v636 = vpop.f32.mrb[0].mxu0
        %v637 = vadd.f32 0.0, %v636
        %v638 = vpop.f32.mrb[0].mxu0
        %v639 = vpop.f32.mrb[0].mxu0
        %v640 = vadd.f32 0.0, %v639
        %v641 = vpop.f32.mrb[0].mxu0
        %642 = vmatprep.mubr.bf16.mxu0 0
        %643 = vmatmul.mubr.bf16.gmra.mrb[0].mxu0 %v503
        %v644 = vpop.f32.mrb[0].mxu0
        %v645 = vadd.f32 0.0, %v644
        %v646 = vpop.f32.mrb[0].mxu0
        %v647 = vpop.f32.mrb[0].mxu0
        %v648 = vadd.f32 0.0, %v647
        %v649 = vpop.f32.mrb[0].mxu0
        %650 = vmatprep.mubr.bf16.mxu0 0
        %651 = vmatmul.mubr.bf16.gmra.mrb[0].mxu0 %v506
        %v652 = vpop.f32.mrb[0].mxu0
        %v653 = vadd.f32 0.0, %v652
        %v654 = vpop.f32.mrb[0].mxu0
        %v655 = vpop.f32.mrb[0].mxu0
        %v656 = vadd.f32 0.0, %v655
        %v657 = vpop.f32.mrb[0].mxu0
        %658 = vmatprep.mubr.bf16.mxu0 0
        %659 = vmatmul.mubr.bf16.gmra.mrb[0].mxu0 %v509
        %v660 = vpop.f32.mrb[0].mxu0
        %v661 = vadd.f32 0.0, %v660
        %v662 = vpop.f32.mrb[0].mxu0
        %v663 = vpop.f32.mrb[0].mxu0
        %v664 = vadd.f32 0.0, %v663
        %v665 = vpop.f32.mrb[0].mxu0
        %666 = vmatprep.mubr.bf16.mxu0 0
        %667 = vmatmul.mubr.bf16.gmra.mrb[0].mxu0 %v512
        %v668 = vpop.f32.mrb[0].mxu0
        %v669 = vadd.f32 0.0, %v668
        %v670 = vpop.f32.mrb[0].mxu0
        %v671 = vpop.f32.mrb[0].mxu0
        %v672 = vadd.f32 0.0, %v671
        %v673 = vpop.f32.mrb[0].mxu0
        %674 = vdwg.mxu0
        %v675 = vld [vmem:[%s4] sm:$0x1]
        %v677 = vlaneseq
        %v678 = vshrl.u32 %v677, 7
        %v679 = vsub.s32 0, %v678
        %v680 = vrot.slane %v675, %v679
        %v682 = vmul.f32 %v549, %v680
        %v683 = vmul.f32 %v552, %v680
        %v684 = vmul.f32 %v557, %v680
        %v685 = vmul.f32 %v560, %v680
        %v686 = vmul.f32 %v565, %v680
        %v687 = vmul.f32 %v568, %v680
        %v688 = vmul.f32 %v573, %v680
        %v689 = vmul.f32 %v576, %v680
        %v690 = vmul.f32 %v581, %v680
        %v691 = vmul.f32 %v584, %v680
        %v692 = vmul.f32 %v589, %v680
        %v693 = vmul.f32 %v592, %v680
        %v694 = vmul.f32 %v597, %v680
        %v695 = vmul.f32 %v600, %v680
        %v696 = vmul.f32 %v605, %v680
        %v697 = vmul.f32 %v608, %v680
        %v698 = vmul.f32 %v613, %v680
        %v699 = vmul.f32 %v616, %v680
        %v700 = vmul.f32 %v621, %v680
        %v701 = vmul.f32 %v624, %v680
        %v702 = vmul.f32 %v629, %v680
        %v703 = vmul.f32 %v632, %v680
        %v704 = vmul.f32 %v637, %v680
        %v705 = vmul.f32 %v640, %v680
        %v706 = vmul.f32 %v645, %v680
        %v707 = vmul.f32 %v648, %v680
        %v708 = vmul.f32 %v653, %v680
        %v709 = vmul.f32 %v656, %v680
        %v710 = vmul.f32 %v661, %v680
        %v711 = vmul.f32 %v664, %v680
        %v712 = vmul.f32 %v669, %v680
        %v713 = vmul.f32 %v672, %v680
        %v714 = vld [vmem:[%s5] sm:$0x1]
        %v716 = vlaneseq
        %v717 = vshrl.u32 %v716, 7
        %v718 = vsub.s32 0, %v717
        %v719 = vrot.slane %v714, %v718
        %v721 = vadd.f32 %v682, %v719
        %v722 = vadd.f32 %v683, %v719
        %v723 = vadd.f32 %v684, %v719
        %v724 = vadd.f32 %v685, %v719
        %v725 = vadd.f32 %v686, %v719
        %v726 = vadd.f32 %v687, %v719
        %v727 = vadd.f32 %v688, %v719
        %v728 = vadd.f32 %v689, %v719
        %v729 = vadd.f32 %v690, %v719
        %v730 = vadd.f32 %v691, %v719
        %v731 = vadd.f32 %v692, %v719
        %v732 = vadd.f32 %v693, %v719
        %v733 = vadd.f32 %v694, %v719
        %v734 = vadd.f32 %v695, %v719
        %v735 = vadd.f32 %v696, %v719
        %v736 = vadd.f32 %v697, %v719
        %v737 = vadd.f32 %v698, %v719
        %v738 = vadd.f32 %v699, %v719
        %v739 = vadd.f32 %v700, %v719
        %v740 = vadd.f32 %v701, %v719
        %v741 = vadd.f32 %v702, %v719
        %v742 = vadd.f32 %v703, %v719
        %v743 = vadd.f32 %v704, %v719
        %v744 = vadd.f32 %v705, %v719
        %v745 = vadd.f32 %v706, %v719
        %v746 = vadd.f32 %v707, %v719
        %v747 = vadd.f32 %v708, %v719
        %v748 = vadd.f32 %v709, %v719
        %v749 = vadd.f32 %v710, %v719
        %v750 = vadd.f32 %v711, %v719
        %v751 = vadd.f32 %v712, %v719
        %v752 = vadd.f32 %v713, %v719
        %v753 = vmax.f32 %v721, 0.0
        %v754 = vmax.f32 %v722, 0.0
        %v755 = vmax.f32 %v723, 0.0
        %v756 = vmax.f32 %v724, 0.0
        %v757 = vmax.f32 %v725, 0.0
        %v758 = vmax.f32 %v726, 0.0
        %v759 = vmax.f32 %v727, 0.0
        %v760 = vmax.f32 %v728, 0.0
        %v761 = vmax.f32 %v729, 0.0
        %v762 = vmax.f32 %v730, 0.0
        %v763 = vmax.f32 %v731, 0.0
        %v764 = vmax.f32 %v732, 0.0
        %v765 = vmax.f32 %v733, 0.0
        %v766 = vmax.f32 %v734, 0.0
        %v767 = vmax.f32 %v735, 0.0
        %v768 = vmax.f32 %v736, 0.0
        %v769 = vmax.f32 %v737, 0.0
        %v770 = vmax.f32 %v738, 0.0
        %v771 = vmax.f32 %v739, 0.0
        %v772 = vmax.f32 %v740, 0.0
        %v773 = vmax.f32 %v741, 0.0
        %v774 = vmax.f32 %v742, 0.0
        %v775 = vmax.f32 %v743, 0.0
        %v776 = vmax.f32 %v744, 0.0
        %v777 = vmax.f32 %v745, 0.0
        %v778 = vmax.f32 %v746, 0.0
        %v779 = vmax.f32 %v747, 0.0
        %v780 = vmax.f32 %v748, 0.0
        %v781 = vmax.f32 %v749, 0.0
        %v782 = vmax.f32 %v750, 0.0
        %v783 = vmax.f32 %v751, 0.0
        %v784 = vmax.f32 %v752, 0.0
        %v785 = vpack.c.bf16 %v754, %v753
        %v786 = vpack.c.bf16 %v756, %v755
        %v787 = vpack.c.bf16 %v758, %v757
        %v788 = vpack.c.bf16 %v760, %v759
        %v789 = vpack.c.bf16 %v762, %v761
        %v790 = vpack.c.bf16 %v764, %v763
        %v791 = vpack.c.bf16 %v766, %v765
        %v792 = vpack.c.bf16 %v768, %v767
        %v793 = vpack.c.bf16 %v770, %v769
        %v794 = vpack.c.bf16 %v772, %v771
        %v795 = vpack.c.bf16 %v774, %v773
        %v796 = vpack.c.bf16 %v776, %v775
        %v797 = vpack.c.bf16 %v778, %v777
        %v798 = vpack.c.bf16 %v780, %v779
        %v799 = vpack.c.bf16 %v782, %v781
        %v800 = vpack.c.bf16 %v784, %v783
        %v817 = vunpack.c.l.b16 %v785
        %v818 = vunpack.c.h.b16 %v785
        %v819 = vunpack.c.l.b16 %v786
        %v820 = vunpack.c.h.b16 %v786
        %v821 = vunpack.c.l.b16 %v787
        %v822 = vunpack.c.h.b16 %v787
        %v823 = vunpack.c.l.b16 %v788
        %v824 = vunpack.c.h.b16 %v788
        %v825 = vunpack.c.l.b16 %v789
        %v826 = vunpack.c.h.b16 %v789
        %v827 = vunpack.c.l.b16 %v790
        %v828 = vunpack.c.h.b16 %v790
        %v829 = vunpack.c.l.b16 %v791
        %v830 = vunpack.c.h.b16 %v791
        %v831 = vunpack.c.l.b16 %v792
        %v832 = vunpack.c.h.b16 %v792
        %v833 = vunpack.c.l.b16 %v793
        %v834 = vunpack.c.h.b16 %v793
        %v835 = vunpack.c.l.b16 %v794
        %v836 = vunpack.c.h.b16 %v794
        %v837 = vunpack.c.l.b16 %v795
        %v838 = vunpack.c.h.b16 %v795
        %v839 = vunpack.c.l.b16 %v796
        %v840 = vunpack.c.h.b16 %v796
        %v841 = vunpack.c.l.b16 %v797
        %v842 = vunpack.c.h.b16 %v797
        %v843 = vunpack.c.l.b16 %v798
        %v844 = vunpack.c.h.b16 %v798
        %v845 = vunpack.c.l.b16 %v799
        %v846 = vunpack.c.h.b16 %v799
        %v847 = vunpack.c.l.b16 %v800
        %v848 = vunpack.c.h.b16 %v800
        %v849 = vpack.c.b16 %v817, %v817
        %v850 = vpack.c.b16 %v818, %v818
        %v851 = vpack.c.b16 %v819, %v819
        %v852 = vpack.c.b16 %v820, %v820
        %v853 = vpack.c.b16 %v821, %v821
        %v854 = vpack.c.b16 %v822, %v822
        %v855 = vpack.c.b16 %v823, %v823
        %v856 = vpack.c.b16 %v824, %v824
        %v857 = vpack.c.b16 %v825, %v825
        %v858 = vpack.c.b16 %v826, %v826
        %v859 = vpack.c.b16 %v827, %v827
        %v860 = vpack.c.b16 %v828, %v828
        %v861 = vpack.c.b16 %v829, %v829
        %v862 = vpack.c.b16 %v830, %v830
        %v863 = vpack.c.b16 %v831, %v831
        %v864 = vpack.c.b16 %v832, %v832
        %v865 = vpack.c.b16 %v833, %v833
        %v866 = vpack.c.b16 %v834, %v834
        %v867 = vpack.c.b16 %v835, %v835
        %v868 = vpack.c.b16 %v836, %v836
        %v869 = vpack.c.b16 %v837, %v837
        %v870 = vpack.c.b16 %v838, %v838
        %v871 = vpack.c.b16 %v839, %v839
        %v872 = vpack.c.b16 %v840, %v840
        %v873 = vpack.c.b16 %v841, %v841
        %v874 = vpack.c.b16 %v842, %v842
        %v875 = vpack.c.b16 %v843, %v843
        %v876 = vpack.c.b16 %v844, %v844
        %v877 = vpack.c.b16 %v845, %v845
        %v878 = vpack.c.b16 %v846, %v846
        %v879 = vpack.c.b16 %v847, %v847
        %v880 = vpack.c.b16 %v848, %v848
        %vm913 = vcmask 257024
        %914 = vst.msk [vmem:[%s272] sm:$0xf] %vm913, %v849
        %915 = vst.msk [vmem:[%s272 + $0x4] sm:$0xf] %vm913, %v850
        %916 = vst.msk [vmem:[%s272 + $0x8] sm:$0xf] %vm913, %v851
        %917 = vst.msk [vmem:[%s272 + $0xc] sm:$0xf] %vm913, %v852
        %918 = vst.msk [vmem:[%s272 + $0x10] sm:$0xf] %vm913, %v853
        %919 = vst.msk [vmem:[%s272 + $0x14] sm:$0xf] %vm913, %v854
        %920 = vst.msk [vmem:[%s272 + $0x18] sm:$0xf] %vm913, %v855
        %921 = vst.msk [vmem:[%s272 + $0x1c] sm:$0xf] %vm913, %v856
        %922 = vst.msk [vmem:[%s272 + $0x20] sm:$0xf] %vm913, %v857
        %923 = vst.msk [vmem:[%s272 + $0x24] sm:$0xf] %vm913, %v858
        %924 = vst.msk [vmem:[%s272 + $0x28] sm:$0xf] %vm913, %v859
        %925 = vst.msk [vmem:[%s272 + $0x2c] sm:$0xf] %vm913, %v860
        %926 = vst.msk [vmem:[%s272 + $0x30] sm:$0xf] %vm913, %v861
        %927 = vst.msk [vmem:[%s272 + $0x34] sm:$0xf] %vm913, %v862
        %928 = vst.msk [vmem:[%s272 + $0x38] sm:$0xf] %vm913, %v863
        %929 = vst.msk [vmem:[%s272 + $0x3c] sm:$0xf] %vm913, %v864
        %930 = vst.msk [vmem:[%s272 + $0x40] sm:$0xf] %vm913, %v865
        %931 = vst.msk [vmem:[%s272 + $0x44] sm:$0xf] %vm913, %v866
        %932 = vst.msk [vmem:[%s272 + $0x48] sm:$0xf] %vm913, %v867
        %933 = vst.msk [vmem:[%s272 + $0x4c] sm:$0xf] %vm913, %v868
        %934 = vst.msk [vmem:[%s272 + $0x50] sm:$0xf] %vm913, %v869
        %935 = vst.msk [vmem:[%s272 + $0x54] sm:$0xf] %vm913, %v870
        %936 = vst.msk [vmem:[%s272 + $0x58] sm:$0xf] %vm913, %v871
        %937 = vst.msk [vmem:[%s272 + $0x5c] sm:$0xf] %vm913, %v872
        %938 = vst.msk [vmem:[%s272 + $0x60] sm:$0xf] %vm913, %v873
        %939 = vst.msk [vmem:[%s272 + $0x64] sm:$0xf] %vm913, %v874
        %940 = vst.msk [vmem:[%s272 + $0x68] sm:$0xf] %vm913, %v875
        %941 = vst.msk [vmem:[%s272 + $0x6c] sm:$0xf] %vm913, %v876
        %942 = vst.msk [vmem:[%s272 + $0x70] sm:$0xf] %vm913, %v877
        %943 = vst.msk [vmem:[%s272 + $0x74] sm:$0xf] %vm913, %v878
        %944 = vst.msk [vmem:[%s272 + $0x78] sm:$0xf] %vm913, %v879
        %945 = vst.msk [vmem:[%s272 + $0x7c] sm:$0xf] %vm913, %v880
        %s946 = smul.u32 32, %s20
        %p947 = scmp.lt.s32.totalorder %s946, 63
        %s948 = scalar_select %p947, %s946, 63
        %s949 = smul.addr %s948, 4
        %s950 = scalar_lea.vmem %s6, %s949
        // Predicated region
        $region49: #{res_forward.3} parent=43 // pred_check
          %p951 = pneg %p169
        $region50: #{res_forward.3} parent=43 // pred_check_branch
          %953 = sbr.rel (%p951) target = $region52
        $region51: #{res_forward.3} parent=43 // pred_region
          %s954 = smul.u32 32, %s20
        $region52: #{res_forward.3} parent=43 // pred_fallthru
          _
      $region44: #{res_forward.3} parent=5 // pred_fallthru
        _
      %p955 = scmp.le.s32.totalorder 2, %s15
      // Predicated region
      $region53: #{res_forward.3} parent=5 // pred_check
        %p956 = pneg %p955
      $region54: #{res_forward.3} parent=5 // pred_check_branch
        %958 = sbr.rel (%p956) target = $region56
      $region55: #{res_forward.3} parent=5 // pred_region
        %s959 = ssub.s32 %s15, 2
        // Predicated region
        $region57: #{res_forward.3} parent=55 // pred_check
          %p960 = pneg %p175
        $region58: #{res_forward.3} parent=55 // pred_check_branch
          %962 = sbr.rel (%p960) target = $region60
        $region59: #{res_forward.3} parent=55 // pred_region
          %s963 = smul.u32 32, %s21
          %p964 = scmp.lt.s32.totalorder %s963, 63
          %s965 = scalar_select %p964, %s963, 63
          %s966 = smul.addr %s965, 4
          %s967 = scalar_lea.vmem %s6, %s966
        $region60: #{res_forward.3} parent=55 // pred_fallthru
          _
      $region56: #{res_forward.3} parent=5 // pred_fallthru
        _
    $region6: #{res_forward.3} parent=1 // loop_footer
      %s19 = sadd.s32 1, %s15
    $region7: #{res_forward.3} parent=1 // loop_footer_branch
      %14 = sbr.rel target = $region3
    $region8: #{res_forward.3} parent=1 // loop_exit
      _
    %968 = vsyncpa [#allocation3], 1
    %s969 = scalar_lea.sflag [#allocation3], 1
    %970 = vsyncpa %s969, 1

// kernel: res_forward.5
$region0: #{res_forward.5}
  #allocation0 [shape = 'u32[]', space=smem, size = 0x4, offset = 0x4, fixed_abs, tag = 'smem constant byte address 0x4 - core index']
  #allocation1 [shape = 'u32[144,128]{1,0:T(1,128)}', space=vmem, size = 0x12000, scoped, tag = 'internal scratch']
  %s0 = inlined_call_operand.vmem [shape: bf16[512,32], index: 0, kind: input, shape index: {}]
  %s1 = inlined_call_operand.vmem [shape: bf16[32,64], index: 1, kind: input, shape index: {}]
  %s2 = inlined_call_operand.vmem [shape: f32[1,64], index: 2, kind: input, shape index: {}]
  %s3 = inlined_call_operand.vmem [shape: f32[1,64], index: 3, kind: input, shape index: {}]
  %s4 = inlined_call_operand.vmem [shape: f32[512,64], index: 4, kind: input, shape index: {}]
  %s5 = inlined_call_operand.hbm [shape: f32[512,64], index: 5, kind: output, shape index: {}]
  %s6 = sld [smem:[#allocation0]]
  $region53: #{res_forward.5} parent=0
    _
  %s8 = ssub.s32 1, %s6
  %s9 = scalar_select 0, %s8, %s6
  $region1: #{res_forward.5} parent=0
    #allocation2 [shape = 'u8[262144]{0}', space=vmem, size = 0x40000, scoped, tag = 'output window, operand 0']
    #allocation3 [shape = 's32[2]{0}', space=sflag, size = 0x8, scoped, tag = 'scoped memory for res_forward.5']
    %10 = vsyncpa [#allocation3], 0
    %s11 = scalar_lea.sflag [#allocation3], 1
    %12 = vsyncpa %s11, 0
    loop: start=0, step=1, limit=4
    $region2: #{res_forward.5} parent=1 // loop_pre_header
      _
    $region3: #{res_forward.5} parent=1 // loop_header
      %s14 = sphi 0, %s18
      %p15 = scmp.ge.s32.totalorder %s14, 4
      %s24 = sphi 0, %s26
      %s27 = sphi 0, %s24
      %s28 = sphi 0, %s27
      %s44 = sphi 0, %s28
      %s48 = sphi 0, %s48
      %s50 = sphi 0, %s48
      %s51 = sphi 0, %s50
      %s65 = sphi 0, %s51
      %s69 = sphi 0, %s69
      %s71 = sphi 0, %s69
      %s72 = sphi 0, %s71
      %s86 = sphi 0, %s72
      %s90 = sphi 0, %s90
      %s92 = sphi 0, %s90
      %s93 = sphi 0, %s92
      %s107 = sphi 0, %s93
      %s113 = sphi 0, %s115
      %s116 = sphi 0, %s113
      %s117 = sphi 0, %s116
      %s133 = sphi 0, %s117
      %s139 = sphi 0, %s141
      %s142 = sphi 0, %s139
      %s143 = sphi 0, %s142
      %s159 = sphi 0, %s143
    $region4: #{res_forward.5} parent=1 // loop_header_branch
      %17 = sbr.rel (%p15) target = $region8
    $region5: #{res_forward.5} parent=1 // loop_body
      %s19 = ssub.s32 %s14, 1
      %s20 = ssub.s32 %s14, 2
      %s21 = sadd.s32 %s14, 1
      %s22 = ssub.s32 %s14, %s21
      %p23 = scmp.eq.s32.totalorder %s22, 0
      %s25 = sadd.s32 %s24, 1
      %s26 = scalar_select %p23, %s24, %s25
      %p29 = pneg %p23
      %p30 = scmp.eq.s32.totalorder %s14, 1
      %p31 = por %p29, %p30
      %p32 = scmp.ne.s32.totalorder %s24, %s27
      %p33 = scmp.eq.s32.totalorder %s14, 0
      %p34 = por %p32, %p33
      %p35 = scmp.ne.s32.totalorder %s24, %s27
      %p36 = scmp.eq.s32.totalorder %s19, 1
      %p37 = por %p35, %p36
      %p38 = scmp.ne.s32.totalorder %s27, %s28
      %p39 = scmp.eq.s32.totalorder %s19, 0
      %p40 = por %p38, %p39
      %p41 = scmp.ne.s32.totalorder %s27, %s28
      %p42 = scmp.eq.s32.totalorder %s20, 1
      %p43 = por %p41, %p42
      %p45 = scmp.ne.s32.totalorder %s28, %s44
      %p46 = scmp.eq.s32.totalorder %s20, 0
      %p47 = por %p45, %p46
      %s49 = sadd.s32 %s48, 1
      %p52 = scmp.eq.s32.totalorder %s14, 1
      %p53 = scmp.ne.s32.totalorder %s48, %s50
      %p54 = scmp.eq.s32.totalorder %s14, 0
      %p55 = por %p53, %p54
      %p56 = scmp.ne.s32.totalorder %s48, %s50
      %p57 = scmp.eq.s32.totalorder %s19, 1
      %p58 = por %p56, %p57
      %p59 = scmp.ne.s32.totalorder %s50, %s51
      %p60 = scmp.eq.s32.totalorder %s19, 0
      %p61 = por %p59, %p60
      %p62 = scmp.ne.s32.totalorder %s50, %s51
      %p63 = scmp.eq.s32.totalorder %s20, 1
      %p64 = por %p62, %p63
      %p66 = scmp.ne.s32.totalorder %s51, %s65
      %p67 = scmp.eq.s32.totalorder %s20, 0
      %p68 = por %p66, %p67
      %s70 = sadd.s32 %s69, 1
      %p73 = scmp.eq.s32.totalorder %s14, 1
      %p74 = scmp.ne.s32.totalorder %s69, %s71
      %p75 = scmp.eq.s32.totalorder %s14, 0
      %p76 = por %p74, %p75
      %p77 = scmp.ne.s32.totalorder %s69, %s71
      %p78 = scmp.eq.s32.totalorder %s19, 1
      %p79 = por %p77, %p78
      %p80 = scmp.ne.s32.totalorder %s71, %s72
      %p81 = scmp.eq.s32.totalorder %s19, 0
      %p82 = por %p80, %p81
      %p83 = scmp.ne.s32.totalorder %s71, %s72
      %p84 = scmp.eq.s32.totalorder %s20, 1
      %p85 = por %p83, %p84
      %p87 = scmp.ne.s32.totalorder %s72, %s86
      %p88 = scmp.eq.s32.totalorder %s20, 0
      %p89 = por %p87, %p88
      %s91 = sadd.s32 %s90, 1
      %p94 = scmp.eq.s32.totalorder %s14, 1
      %p95 = scmp.ne.s32.totalorder %s90, %s92
      %p96 = scmp.eq.s32.totalorder %s14, 0
      %p97 = por %p95, %p96
      %p98 = scmp.ne.s32.totalorder %s90, %s92
      %p99 = scmp.eq.s32.totalorder %s19, 1
      %p100 = por %p98, %p99
      %p101 = scmp.ne.s32.totalorder %s92, %s93
      %p102 = scmp.eq.s32.totalorder %s19, 0
      %p103 = por %p101, %p102
      %p104 = scmp.ne.s32.totalorder %s92, %s93
      %p105 = scmp.eq.s32.totalorder %s20, 1
      %p106 = por %p104, %p105
      %p108 = scmp.ne.s32.totalorder %s93, %s107
      %p109 = scmp.eq.s32.totalorder %s20, 0
      %p110 = por %p108, %p109
      %s111 = ssub.s32 %s14, %s21
      %p112 = scmp.eq.s32.totalorder %s111, 0
      %s114 = sadd.s32 %s113, 1
      %s115 = scalar_select %p112, %s113, %s114
      %p118 = pneg %p112
      %p119 = scmp.eq.s32.totalorder %s14, 1
      %p120 = por %p118, %p119
      %p121 = scmp.ne.s32.totalorder %s113, %s116
      %p122 = scmp.eq.s32.totalorder %s14, 0
      %p123 = por %p121, %p122
      %p124 = scmp.ne.s32.totalorder %s113, %s116
      %p125 = scmp.eq.s32.totalorder %s19, 1
      %p126 = por %p124, %p125
      %p127 = scmp.ne.s32.totalorder %s116, %s117
      %p128 = scmp.eq.s32.totalorder %s19, 0
      %p129 = por %p127, %p128
      %p130 = scmp.ne.s32.totalorder %s116, %s117
      %p131 = scmp.eq.s32.totalorder %s20, 1
      %p132 = por %p130, %p131
      %p134 = scmp.ne.s32.totalorder %s117, %s133
      %p135 = scmp.eq.s32.totalorder %s20, 0
      %p136 = por %p134, %p135
      %s137 = ssub.s32 %s14, %s21
      %p138 = scmp.eq.s32.totalorder %s137, 0
      %s140 = sadd.s32 %s139, 1
      %s141 = scalar_select %p138, %s139, %s140
      %p144 = pneg %p138
      %p145 = scmp.eq.s32.totalorder %s14, 1
      %p146 = por %p144, %p145
      %p147 = scmp.ne.s32.totalorder %s139, %s142
      %p148 = scmp.eq.s32.totalorder %s14, 0
      %p149 = por %p147, %p148
      %p150 = scmp.ne.s32.totalorder %s139, %s142
      %p151 = scmp.eq.s32.totalorder %s19, 1
      %p152 = por %p150, %p151
      %p153 = scmp.ne.s32.totalorder %s142, %s143
      %p154 = scmp.eq.s32.totalorder %s19, 0
      %p155 = por %p153, %p154
      %p156 = scmp.ne.s32.totalorder %s142, %s143
      %p157 = scmp.eq.s32.totalorder %s20, 1
      %p158 = por %p156, %p157
      %p160 = scmp.ne.s32.totalorder %s143, %s159
      %p161 = scmp.eq.s32.totalorder %s20, 0
      %p162 = por %p160, %p161
      %p163 = scmp.le.s32.totalorder 1, %s14
      %p164 = scmp.lt.s32.totalorder %s14, 3
      %p165 = pnand %p163, %p164
      %p166 = pneg %p165
      // Predicated region
      $region9: #{res_forward.5} parent=5 // pred_check
        _
      $region10: #{res_forward.5} parent=5 // pred_check_branch
        %168 = sbr.rel (%p165) target = $region12
      $region11: #{res_forward.5} parent=5 // pred_region
        %s169 = ssub.s32 %s14, 1
        // Predicated region
        $region13: #{res_forward.5} parent=11 // pred_check
          %p170 = pneg %p61
        $region14: #{res_forward.5} parent=11 // pred_check_branch
          %172 = sbr.rel (%p170) target = $region16
        $region15: #{res_forward.5} parent=11 // pred_region
          _
        $region16: #{res_forward.5} parent=11 // pred_fallthru
          _
        // Predicated region
        $region17: #{res_forward.5} parent=11 // pred_check
          %p173 = pneg %p82
        $region18: #{res_forward.5} parent=11 // pred_check_branch
          %175 = sbr.rel (%p173) target = $region20
        $region19: #{res_forward.5} parent=11 // pred_region
          _
        $region20: #{res_forward.5} parent=11 // pred_fallthru
          _
        // Predicated region
        $region21: #{res_forward.5} parent=11 // pred_check
          %p176 = pneg %p103
        $region22: #{res_forward.5} parent=11 // pred_check_branch
          %178 = sbr.rel (%p176) target = $region24
        $region23: #{res_forward.5} parent=11 // pred_region
          _
        $region24: #{res_forward.5} parent=11 // pred_fallthru
          _
      $region12: #{res_forward.5} parent=5 // pred_fallthru
        _
      %p179 = scmp.lt.s32.totalorder %s14, 2
      // Predicated region
      $region25: #{res_forward.5} parent=5 // pred_check
        %p180 = pneg %p179
      $region26: #{res_forward.5} parent=5 // pred_check_branch
        %182 = sbr.rel (%p180) target = $region28
      $region27: #{res_forward.5} parent=5 // pred_region
        // Predicated region
        $region29: #{res_forward.5} parent=27 // pred_check
          %p183 = pneg %p34
        $region30: #{res_forward.5} parent=27 // pred_check_branch
          %185 = sbr.rel (%p183) target = $region32
        $region31: #{res_forward.5} parent=27 // pred_region
          %s186 = smul.u32 32, %s14
          %p187 = scmp.lt.s32.totalorder %s186, 63
          %s188 = scalar_select %p187, %s186, 63
          %s189 = smul.addr %s188, 4
          %s190 = scalar_lea.vmem %s0, %s189
          %s191 = smul.u32 32, %s14
        $region32: #{res_forward.5} parent=27 // pred_fallthru
          _
        // Predicated region
        $region33: #{res_forward.5} parent=27 // pred_check
          %p192 = pneg %p123
        $region34: #{res_forward.5} parent=27 // pred_check_branch
          %194 = sbr.rel (%p192) target = $region36
        $region35: #{res_forward.5} parent=27 // pred_region
          %s195 = smul.u32 32, %s14
          %p196 = scmp.lt.s32.totalorder %s195, 63
          %s197 = scalar_select %p196, %s195, 63
          %s198 = smul.addr %s197, 8
          %s199 = scalar_lea.vmem %s4, %s198
          %s200 = smul.u32 32, %s14
        $region36: #{res_forward.5} parent=27 // pred_fallthru
          _
      $region28: #{res_forward.5} parent=5 // pred_fallthru
        _
      %p201 = scmp.le.s32.totalorder 1, %s14
      %p202 = scmp.lt.s32.totalorder %s14, 3
      %p203 = pnand %p201, %p202
      %p204 = pneg %p203
      // Predicated region
      $region37: #{res_forward.5} parent=5 // pred_check
        _
      $region38: #{res_forward.5} parent=5 // pred_check_branch
        %206 = sbr.rel (%p203) target = $region40
      $region39: #{res_forward.5} parent=5 // pred_region
        %s207 = ssub.s32 %s14, 1
        %s208 = smul.u32 32, %s19
        %p209 = scmp.lt.s32.totalorder %s208, 63
        %s210 = scalar_select %p209, %s208, 63
        %s211 = smul.addr %s210, 4
        %s212 = scalar_lea.vmem %s0, %s211
        %p213 = pneg %p40
        %p214 = pneg %p37
        %p215 = pneg %p61
        %p216 = pneg %p58
        %p217 = pneg %p82
        %p218 = pneg %p79
        %p219 = pneg %p103
        %p220 = pneg %p100
        %s221 = smul.u32 32, %s19
        %p222 = scmp.lt.s32.totalorder %s221, 63
        %s223 = scalar_select %p222, %s221, 63
        %s224 = smul.addr %s223, 8
        %s225 = scalar_lea.vmem %s4, %s224
        %p226 = pneg %p129
        %p227 = pneg %p126
        %p228 = pneg %p155
        %p229 = pneg %p152
        %s230 = sand.u32 %s142, 1
        %s231 = scalar_lea.sflag [#allocation3], %s230
        %s232 = sand.u32 %s142, 1
        %s233 = smul.addr %s232, 256
        %s234 = scalar_lea.vmem [#allocation2], %s233
        %s235 = smul.u32 32, %s19
        %p236 = scmp.lt.s32.totalorder %s235, 63
        %s237 = scalar_select %p236, %s235, 63
        %s238 = smul.addr %s237, 4
        %s239 = scalar_lea.vmem %s0, %s238
        %s240 = smul.u32 32, %s19
        %s241 = smul.u32 32, %s19
        %p242 = scmp.lt.s32.totalorder %s241, 63
        %s243 = scalar_select %p242, %s241, 63
        %s244 = smul.addr %s243, 8
        %s245 = scalar_lea.vmem %s4, %s244
        %s246 = smul.u32 32, %s19
        %s247 = smul.u32 32, %s19
        %v249 = vld [vmem:[%s239] sm:$0xf]
        %v250 = vld [vmem:[%s239 + $0x4] sm:$0xf]
        %v251 = vld [vmem:[%s239 + $0x8] sm:$0xf]
        %v252 = vld [vmem:[%s239 + $0xc] sm:$0xf]
        %v253 = vld [vmem:[%s239 + $0x10] sm:$0xf]
        %v254 = vld [vmem:[%s239 + $0x14] sm:$0xf]
        %v255 = vld [vmem:[%s239 + $0x18] sm:$0xf]
        %v256 = vld [vmem:[%s239 + $0x1c] sm:$0xf]
        %v257 = vld [vmem:[%s239 + $0x20] sm:$0xf]
        %v258 = vld [vmem:[%s239 + $0x24] sm:$0xf]
        %v259 = vld [vmem:[%s239 + $0x28] sm:$0xf]
        %v260 = vld [vmem:[%s239 + $0x2c] sm:$0xf]
        %v261 = vld [vmem:[%s239 + $0x30] sm:$0xf]
        %v262 = vld [vmem:[%s239 + $0x34] sm:$0xf]
        %v263 = vld [vmem:[%s239 + $0x38] sm:$0xf]
        %v264 = vld [vmem:[%s239 + $0x3c] sm:$0xf]
        %v265 = vld [vmem:[%s239 + $0x40] sm:$0xf]
        %v266 = vld [vmem:[%s239 + $0x44] sm:$0xf]
        %v267 = vld [vmem:[%s239 + $0x48] sm:$0xf]
        %v268 = vld [vmem:[%s239 + $0x4c] sm:$0xf]
        %v269 = vld [vmem:[%s239 + $0x50] sm:$0xf]
        %v270 = vld [vmem:[%s239 + $0x54] sm:$0xf]
        %v271 = vld [vmem:[%s239 + $0x58] sm:$0xf]
        %v272 = vld [vmem:[%s239 + $0x5c] sm:$0xf]
        %v273 = vld [vmem:[%s239 + $0x60] sm:$0xf]
        %v274 = vld [vmem:[%s239 + $0x64] sm:$0xf]
        %v275 = vld [vmem:[%s239 + $0x68] sm:$0xf]
        %v276 = vld [vmem:[%s239 + $0x6c] sm:$0xf]
        %v277 = vld [vmem:[%s239 + $0x70] sm:$0xf]
        %v278 = vld [vmem:[%s239 + $0x74] sm:$0xf]
        %v279 = vld [vmem:[%s239 + $0x78] sm:$0xf]
        %v280 = vld [vmem:[%s239 + $0x7c] sm:$0xf]
        %v281 = vld [vmem:[%s1] sm:$0xf]
        %v282 = vld [vmem:[%s1 + $0x4] sm:$0xf]
        %v283 = vld [vmem:[%s1 + $0x8] sm:$0xf]
        %v284 = vld [vmem:[%s1 + $0xc] sm:$0xf]
        %v317 = vunpack.c.l.b16 %v249
        %v318 = vunpack.c.l.b16 %v250
        %v319 = vunpack.c.l.b16 %v251
        %v320 = vunpack.c.l.b16 %v252
        %v321 = vunpack.c.l.b16 %v253
        %v322 = vunpack.c.l.b16 %v254
        %v323 = vunpack.c.l.b16 %v255
        %v324 = vunpack.c.l.b16 %v256
        %v325 = vunpack.c.l.b16 %v257
        %v326 = vunpack.c.l.b16 %v258
        %v327 = vunpack.c.l.b16 %v259
        %v328 = vunpack.c.l.b16 %v260
        %v329 = vunpack.c.l.b16 %v261
        %v330 = vunpack.c.l.b16 %v262
        %v331 = vunpack.c.l.b16 %v263
        %v332 = vunpack.c.l.b16 %v264
        %v333 = vunpack.c.l.b16 %v265
        %v334 = vunpack.c.l.b16 %v266
        %v335 = vunpack.c.l.b16 %v267
        %v336 = vunpack.c.l.b16 %v268
        %v337 = vunpack.c.l.b16 %v269
        %v338 = vunpack.c.l.b16 %v270
        %v339 = vunpack.c.l.b16 %v271
        %v340 = vunpack.c.l.b16 %v272
        %v341 = vunpack.c.l.b16 %v273
        %v342 = vunpack.c.l.b16 %v274
        %v343 = vunpack.c.l.b16 %v275
        %v344 = vunpack.c.l.b16 %v276
        %v345 = vunpack.c.l.b16 %v277
        %v346 = vunpack.c.l.b16 %v278
        %v347 = vunpack.c.l.b16 %v279
        %v348 = vunpack.c.l.b16 %v280
        %v349 = vpack.c.b16 %v318, %v317
        %v350 = vpack.c.b16 %v320, %v319
        %v351 = vpack.c.b16 %v322, %v321
        %v352 = vpack.c.b16 %v324, %v323
        %v353 = vpack.c.b16 %v326, %v325
        %v354 = vpack.c.b16 %v328, %v327
        %v355 = vpack.c.b16 %v330, %v329
        %v356 = vpack.c.b16 %v332, %v331
        %v357 = vpack.c.b16 %v334, %v333
        %v358 = vpack.c.b16 %v336, %v335
        %v359 = vpack.c.b16 %v338, %v337
        %v360 = vpack.c.b16 %v340, %v339
        %v361 = vpack.c.b16 %v342, %v341
        %v362 = vpack.c.b16 %v344, %v343
        %v363 = vpack.c.b16 %v346, %v345
        %v364 = vpack.c.b16 %v348, %v347
        %v369 = vunpack.c.l.b16 %v281
        %v370 = vunpack.c.l.b16 %v282
        %v371 = vunpack.c.l.b16 %v283
        %v372 = vunpack.c.l.b16 %v284
        %v373 = vpack.c.b16 %v370, %v369
        %v374 = vpack.c.b16 %v372, %v371
        %vm377 = vcmask 261120
        %v379 = vsel %vm377, %v349, 0
        %v382 = vsel %vm377, %v350, 0
        %v385 = vsel %vm377, %v351, 0
        %v388 = vsel %vm377, %v352, 0
        %v391 = vsel %vm377, %v353, 0
        %v394 = vsel %vm377, %v354, 0
        %v397 = vsel %vm377, %v355, 0
        %v400 = vsel %vm377, %v356, 0
        %v403 = vsel %vm377, %v357, 0
        %v406 = vsel %vm377, %v358, 0
        %v409 = vsel %vm377, %v359, 0
        %v412 = vsel %vm377, %v360, 0
        %v415 = vsel %vm377, %v361, 0
        %v418 = vsel %vm377, %v362, 0
        %v421 = vsel %vm377, %v363, 0
        %v424 = vsel %vm377, %v364, 0
        %426 = vmatprep.subr.bf16.mxu0 0
        %427 = vmatpush1.bf16.msra.mxu0 %v373
        %428 = vmatprep.subr.bf16.mxu0 0
        %429 = vmatpush1.bf16.msra.mxu0 %v374
        %430 = vmatprep.subr.bf16.mxu0 0
        %431 = vmatpush1.bf16.msra.mxu0 0
        %432 = vmatprep.subr.bf16.mxu0 0
        %433 = vmatpush1.bf16.msra.mxu0 0
        %434 = vmatprep.subr.bf16.mxu0 0
        %435 = vmatpush1.bf16.msra.mxu0 0
        %436 = vmatprep.subr.bf16.mxu0 0
        %437 = vmatpush1.bf16.msra.mxu0 0
        %438 = vmatprep.subr.bf16.mxu0 0
        %439 = vmatpush1.bf16.msra.mxu0 0
        %440 = vmatprep.subr.bf16.mxu0 0
        %441 = vmatpush1.bf16.msra.mxu0 0
        %442 = vmatprep.subr.bf16.mxu0 0
        %443 = vmatpush1.bf16.msra.mxu0 0
        %444 = vmatprep.subr.bf16.mxu0 0
        %445 = vmatpush1.bf16.msra.mxu0 0
        %446 = vmatprep.subr.bf16.mxu0 0
        %447 = vmatpush1.bf16.msra.mxu0 0
        %448 = vmatprep.subr.bf16.mxu0 0
        %449 = vmatpush1.bf16.msra.mxu0 0
        %450 = vmatprep.subr.bf16.mxu0 0
        %451 = vmatpush1.bf16.msra.mxu0 0
        %452 = vmatprep.subr.bf16.mxu0 0
        %453 = vmatpush1.bf16.msra.mxu0 0
        %454 = vmatprep.subr.bf16.mxu0 0
        %455 = vmatpush1.bf16.msra.mxu0 0
        %456 = vmatprep.subr.bf16.mxu0 0
        %457 = vmatpush1.bf16.msra.mxu0 0
        %458 = vmatprep.mubr.bf16.mxu0 0
        %459 = vmatmul.mubr.bf16.gmra.mrb[0].mxu0 %v379
        %v460 = vpop.f32.mrb[0].mxu0
        %v461 = vadd.f32 0.0, %v460
        %v462 = vpop.f32.mrb[0].mxu0
        %v463 = vpop.f32.mrb[0].mxu0
        %v464 = vadd.f32 0.0, %v463
        %v465 = vpop.f32.mrb[0].mxu0
        %466 = vmatprep.mubr.bf16.mxu0 0
        %467 = vmatmul.mubr.bf16.gmra.mrb[0].mxu0 %v382
        %v468 = vpop.f32.mrb[0].mxu0
        %v469 = vadd.f32 0.0, %v468
        %v470 = vpop.f32.mrb[0].mxu0
        %v471 = vpop.f32.mrb[0].mxu0
        %v472 = vadd.f32 0.0, %v471
        %v473 = vpop.f32.mrb[0].mxu0
        %474 = vmatprep.mubr.bf16.mxu0 0
        %475 = vmatmul.mubr.bf16.gmra.mrb[0].mxu0 %v385
        %v476 = vpop.f32.mrb[0].mxu0
        %v477 = vadd.f32 0.0, %v476
        %v478 = vpop.f32.mrb[0].mxu0
        %v479 = vpop.f32.mrb[0].mxu0
        %v480 = vadd.f32 0.0, %v479
        %v481 = vpop.f32.mrb[0].mxu0
        %482 = vmatprep.mubr.bf16.mxu0 0
        %483 = vmatmul.mubr.bf16.gmra.mrb[0].mxu0 %v388
        %v484 = vpop.f32.mrb[0].mxu0
        %v485 = vadd.f32 0.0, %v484
        %v486 = vpop.f32.mrb[0].mxu0
        %v487 = vpop.f32.mrb[0].mxu0
        %v488 = vadd.f32 0.0, %v487
        %v489 = vpop.f32.mrb[0].mxu0
        %490 = vmatprep.mubr.bf16.mxu0 0
        %491 = vmatmul.mubr.bf16.gmra.mrb[0].mxu0 %v391
        %v492 = vpop.f32.mrb[0].mxu0
        %v493 = vadd.f32 0.0, %v492
        %v494 = vpop.f32.mrb[0].mxu0
        %v495 = vpop.f32.mrb[0].mxu0
        %v496 = vadd.f32 0.0, %v495
        %v497 = vpop.f32.mrb[0].mxu0
        %498 = vmatprep.mubr.bf16.mxu0 0
        %499 = vmatmul.mubr.bf16.gmra.mrb[0].mxu0 %v394
        %v500 = vpop.f32.mrb[0].mxu0
        %v501 = vadd.f32 0.0, %v500
        %v502 = vpop.f32.mrb[0].mxu0
        %v503 = vpop.f32.mrb[0].mxu0
        %v504 = vadd.f32 0.0, %v503
        %v505 = vpop.f32.mrb[0].mxu0
        %506 = vmatprep.mubr.bf16.mxu0 0
        %507 = vmatmul.mubr.bf16.gmra.mrb[0].mxu0 %v397
        %v508 = vpop.f32.mrb[0].mxu0
        %v509 = vadd.f32 0.0, %v508
        %v510 = vpop.f32.mrb[0].mxu0
        %v511 = vpop.f32.mrb[0].mxu0
        %v512 = vadd.f32 0.0, %v511
        %v513 = vpop.f32.mrb[0].mxu0
        %514 = vmatprep.mubr.bf16.mxu0 0
        %515 = vmatmul.mubr.bf16.gmra.mrb[0].mxu0 %v400
        %v516 = vpop.f32.mrb[0].mxu0
        %v517 = vadd.f32 0.0, %v516
        %v518 = vpop.f32.mrb[0].mxu0
        %v519 = vpop.f32.mrb[0].mxu0
        %v520 = vadd.f32 0.0, %v519
        %v521 = vpop.f32.mrb[0].mxu0
        %522 = vmatprep.mubr.bf16.mxu0 0
        %523 = vmatmul.mubr.bf16.gmra.mrb[0].mxu0 %v403
        %v524 = vpop.f32.mrb[0].mxu0
        %v525 = vadd.f32 0.0, %v524
        %v526 = vpop.f32.mrb[0].mxu0
        %v527 = vpop.f32.mrb[0].mxu0
        %v528 = vadd.f32 0.0, %v527
        %v529 = vpop.f32.mrb[0].mxu0
        %530 = vmatprep.mubr.bf16.mxu0 0
        %531 = vmatmul.mubr.bf16.gmra.mrb[0].mxu0 %v406
        %v532 = vpop.f32.mrb[0].mxu0
        %v533 = vadd.f32 0.0, %v532
        %v534 = vpop.f32.mrb[0].mxu0
        %v535 = vpop.f32.mrb[0].mxu0
        %v536 = vadd.f32 0.0, %v535
        %v537 = vpop.f32.mrb[0].mxu0
        %538 = vmatprep.mubr.bf16.mxu0 0
        %539 = vmatmul.mubr.bf16.gmra.mrb[0].mxu0 %v409
        %v540 = vpop.f32.mrb[0].mxu0
        %v541 = vadd.f32 0.0, %v540
        %v542 = vpop.f32.mrb[0].mxu0
        %v543 = vpop.f32.mrb[0].mxu0
        %v544 = vadd.f32 0.0, %v543
        %v545 = vpop.f32.mrb[0].mxu0
        %546 = vmatprep.mubr.bf16.mxu0 0
        %547 = vmatmul.mubr.bf16.gmra.mrb[0].mxu0 %v412
        %v548 = vpop.f32.mrb[0].mxu0
        %v549 = vadd.f32 0.0, %v548
        %v550 = vpop.f32.mrb[0].mxu0
        %v551 = vpop.f32.mrb[0].mxu0
        %v552 = vadd.f32 0.0, %v551
        %v553 = vpop.f32.mrb[0].mxu0
        %554 = vmatprep.mubr.bf16.mxu0 0
        %555 = vmatmul.mubr.bf16.gmra.mrb[0].mxu0 %v415
        %v556 = vpop.f32.mrb[0].mxu0
        %v557 = vadd.f32 0.0, %v556
        %v558 = vpop.f32.mrb[0].mxu0
        %v559 = vpop.f32.mrb[0].mxu0
        %v560 = vadd.f32 0.0, %v559
        %v561 = vpop.f32.mrb[0].mxu0
        %562 = vmatprep.mubr.bf16.mxu0 0
        %563 = vmatmul.mubr.bf16.gmra.mrb[0].mxu0 %v418
        %v564 = vpop.f32.mrb[0].mxu0
        %v565 = vadd.f32 0.0, %v564
        %v566 = vpop.f32.mrb[0].mxu0
        %v567 = vpop.f32.mrb[0].mxu0
        %v568 = vadd.f32 0.0, %v567
        %v569 = vpop.f32.mrb[0].mxu0
        %570 = vmatprep.mubr.bf16.mxu0 0
        %571 = vmatmul.mubr.bf16.gmra.mrb[0].mxu0 %v421
        %v572 = vpop.f32.mrb[0].mxu0
        %v573 = vadd.f32 0.0, %v572
        %v574 = vpop.f32.mrb[0].mxu0
        %v575 = vpop.f32.mrb[0].mxu0
        %v576 = vadd.f32 0.0, %v575
        %v577 = vpop.f32.mrb[0].mxu0
        %578 = vmatprep.mubr.bf16.mxu0 0
        %579 = vmatmul.mubr.bf16.gmra.mrb[0].mxu0 %v424
        %v580 = vpop.f32.mrb[0].mxu0
        %v581 = vadd.f32 0.0, %v580
        %v582 = vpop.f32.mrb[0].mxu0
        %v583 = vpop.f32.mrb[0].mxu0
        %v584 = vadd.f32 0.0, %v583
        %v585 = vpop.f32.mrb[0].mxu0
        %586 = vdwg.mxu0
        %v587 = vld [vmem:[%s2] sm:$0x1]
        %v589 = vlaneseq
        %v590 = vshrl.u32 %v589, 7
        %v591 = vsub.s32 0, %v590
        %v592 = vrot.slane %v587, %v591
        %v594 = vmul.f32 %v461, %v592
        %v595 = vmul.f32 %v464, %v592
        %v596 = vmul.f32 %v469, %v592
        %v597 = vmul.f32 %v472, %v592
        %v598 = vmul.f32 %v477, %v592
        %v599 = vmul.f32 %v480, %v592
        %v600 = vmul.f32 %v485, %v592
        %v601 = vmul.f32 %v488, %v592
        %v602 = vmul.f32 %v493, %v592
        %v603 = vmul.f32 %v496, %v592
        %v604 = vmul.f32 %v501, %v592
        %v605 = vmul.f32 %v504, %v592
        %v606 = vmul.f32 %v509, %v592
        %v607 = vmul.f32 %v512, %v592
        %v608 = vmul.f32 %v517, %v592
        %v609 = vmul.f32 %v520, %v592
        %v610 = vmul.f32 %v525, %v592
        %v611 = vmul.f32 %v528, %v592
        %v612 = vmul.f32 %v533, %v592
        %v613 = vmul.f32 %v536, %v592
        %v614 = vmul.f32 %v541, %v592
        %v615 = vmul.f32 %v544, %v592
        %v616 = vmul.f32 %v549, %v592
        %v617 = vmul.f32 %v552, %v592
        %v618 = vmul.f32 %v557, %v592
        %v619 = vmul.f32 %v560, %v592
        %v620 = vmul.f32 %v565, %v592
        %v621 = vmul.f32 %v568, %v592
        %v622 = vmul.f32 %v573, %v592
        %v623 = vmul.f32 %v576, %v592
        %v624 = vmul.f32 %v581, %v592
        %v625 = vmul.f32 %v584, %v592
        %v626 = vld [vmem:[%s3] sm:$0x1]
        %v628 = vlaneseq
        %v629 = vshrl.u32 %v628, 7
        %v630 = vsub.s32 0, %v629
        %v631 = vrot.slane %v626, %v630
        %v633 = vadd.f32 %v594, %v631
        %v634 = vadd.f32 %v595, %v631
        %v635 = vadd.f32 %v596, %v631
        %v636 = vadd.f32 %v597, %v631
        %v637 = vadd.f32 %v598, %v631
        %v638 = vadd.f32 %v599, %v631
        %v639 = vadd.f32 %v600, %v631
        %v640 = vadd.f32 %v601, %v631
        %v641 = vadd.f32 %v602, %v631
        %v642 = vadd.f32 %v603, %v631
        %v643 = vadd.f32 %v604, %v631
        %v644 = vadd.f32 %v605, %v631
        %v645 = vadd.f32 %v606, %v631
        %v646 = vadd.f32 %v607, %v631
        %v647 = vadd.f32 %v608, %v631
        %v648 = vadd.f32 %v609, %v631
        %v649 = vadd.f32 %v610, %v631
        %v650 = vadd.f32 %v611, %v631
        %v651 = vadd.f32 %v612, %v631
        %v652 = vadd.f32 %v613, %v631
        %v653 = vadd.f32 %v614, %v631
        %v654 = vadd.f32 %v615, %v631
        %v655 = vadd.f32 %v616, %v631
        %v656 = vadd.f32 %v617, %v631
        %v657 = vadd.f32 %v618, %v631
        %v658 = vadd.f32 %v619, %v631
        %v659 = vadd.f32 %v620, %v631
        %v660 = vadd.f32 %v621, %v631
        %v661 = vadd.f32 %v622, %v631
        %v662 = vadd.f32 %v623, %v631
        %v663 = vadd.f32 %v624, %v631
        %v664 = vadd.f32 %v625, %v631
        %v665 = vmax.f32 %v633, 0.0
        %v666 = vmax.f32 %v634, 0.0
        %v667 = vmax.f32 %v635, 0.0
        %v668 = vmax.f32 %v636, 0.0
        %v669 = vmax.f32 %v637, 0.0
        %v670 = vmax.f32 %v638, 0.0
        %v671 = vmax.f32 %v639, 0.0
        %v672 = vmax.f32 %v640, 0.0
        %v673 = vmax.f32 %v641, 0.0
        %v674 = vmax.f32 %v642, 0.0
        %v675 = vmax.f32 %v643, 0.0
        %v676 = vmax.f32 %v644, 0.0
        %v677 = vmax.f32 %v645, 0.0
        %v678 = vmax.f32 %v646, 0.0
        %v679 = vmax.f32 %v647, 0.0
        %v680 = vmax.f32 %v648, 0.0
        %v681 = vmax.f32 %v649, 0.0
        %v682 = vmax.f32 %v650, 0.0
        %v683 = vmax.f32 %v651, 0.0
        %v684 = vmax.f32 %v652, 0.0
        %v685 = vmax.f32 %v653, 0.0
        %v686 = vmax.f32 %v654, 0.0
        %v687 = vmax.f32 %v655, 0.0
        %v688 = vmax.f32 %v656, 0.0
        %v689 = vmax.f32 %v657, 0.0
        %v690 = vmax.f32 %v658, 0.0
        %v691 = vmax.f32 %v659, 0.0
        %v692 = vmax.f32 %v660, 0.0
        %v693 = vmax.f32 %v661, 0.0
        %v694 = vmax.f32 %v662, 0.0
        %v695 = vmax.f32 %v663, 0.0
        %v696 = vmax.f32 %v664, 0.0
        %v697 = vld [vmem:[%s245] sm:$0xff]
        %v698 = vld [vmem:[%s245 + $0x8] sm:$0xff]
        %v699 = vld [vmem:[%s245 + $0x10] sm:$0xff]
        %v700 = vld [vmem:[%s245 + $0x18] sm:$0xff]
        %v701 = vld [vmem:[%s245 + $0x20] sm:$0xff]
        %v702 = vld [vmem:[%s245 + $0x28] sm:$0xff]
        %v703 = vld [vmem:[%s245 + $0x30] sm:$0xff]
        %v704 = vld [vmem:[%s245 + $0x38] sm:$0xff]
        %v705 = vld [vmem:[%s245 + $0x40] sm:$0xff]
        %v706 = vld [vmem:[%s245 + $0x48] sm:$0xff]
        %v707 = vld [vmem:[%s245 + $0x50] sm:$0xff]
        %v708 = vld [vmem:[%s245 + $0x58] sm:$0xff]
        %v709 = vld [vmem:[%s245 + $0x60] sm:$0xff]
        %v710 = vld [vmem:[%s245 + $0x68] sm:$0xff]
        %v711 = vld [vmem:[%s245 + $0x70] sm:$0xff]
        %v712 = vld [vmem:[%s245 + $0x78] sm:$0xff]
        %v713 = vld [vmem:[%s245 + $0x80] sm:$0xff]
        %v714 = vld [vmem:[%s245 + $0x88] sm:$0xff]
        %v715 = vld [vmem:[%s245 + $0x90] sm:$0xff]
        %v716 = vld [vmem:[%s245 + $0x98] sm:$0xff]
        %v717 = vld [vmem:[%s245 + $0xa0] sm:$0xff]
        %v718 = vld [vmem:[%s245 + $0xa8] sm:$0xff]
        %v719 = vld [vmem:[%s245 + $0xb0] sm:$0xff]
        %v720 = vld [vmem:[%s245 + $0xb8] sm:$0xff]
        %v721 = vld [vmem:[%s245 + $0xc0] sm:$0xff]
        %v722 = vld [vmem:[%s245 + $0xc8] sm:$0xff]
        %v723 = vld [vmem:[%s245 + $0xd0] sm:$0xff]
        %v724 = vld [vmem:[%s245 + $0xd8] sm:$0xff]
        %v725 = vld [vmem:[%s245 + $0xe0] sm:$0xff]
        %v726 = vld [vmem:[%s245 + $0xe8] sm:$0xff]
        %v727 = vld [vmem:[%s245 + $0xf0] sm:$0xff]
        %v728 = vld [vmem:[%s245 + $0xf8] sm:$0xff]
        %v729 = vadd.f32 %v665, %v697
        %v730 = vadd.f32 %v666, %v698
        %v731 = vadd.f32 %v667, %v699
        %v732 = vadd.f32 %v668, %v700
        %v733 = vadd.f32 %v669, %v701
        %v734 = vadd.f32 %v670, %v702
        %v735 = vadd.f32 %v671, %v703
        %v736 = vadd.f32 %v672, %v704
        %v737 = vadd.f32 %v673, %v705
        %v738 = vadd.f32 %v674, %v706
        %v739 = vadd.f32 %v675, %v707
        %v740 = vadd.f32 %v676, %v708
        %v741 = vadd.f32 %v677, %v709
        %v742 = vadd.f32 %v678, %v710
        %v743 = vadd.f32 %v679, %v711
        %v744 = vadd.f32 %v680, %v712
        %v745 = vadd.f32 %v681, %v713
        %v746 = vadd.f32 %v682, %v714
        %v747 = vadd.f32 %v683, %v715
        %v748 = vadd.f32 %v684, %v716
        %v749 = vadd.f32 %v685, %v717
        %v750 = vadd.f32 %v686, %v718
        %v751 = vadd.f32 %v687, %v719
        %v752 = vadd.f32 %v688, %v720
        %v753 = vadd.f32 %v689, %v721
        %v754 = vadd.f32 %v690, %v722
        %v755 = vadd.f32 %v691, %v723
        %v756 = vadd.f32 %v692, %v724
        %v757 = vadd.f32 %v693, %v725
        %v758 = vadd.f32 %v694, %v726
        %v759 = vadd.f32 %v695, %v727
        %v760 = vadd.f32 %v696, %v728
        %vm761 = vcmask 523264
        %762 = vst.msk [vmem:[%s234] sm:$0xff] %vm761, %v729
        %763 = vst.msk [vmem:[%s234 + $0x8] sm:$0xff] %vm761, %v730
        %764 = vst.msk [vmem:[%s234 + $0x10] sm:$0xff] %vm761, %v731
        %765 = vst.msk [vmem:[%s234 + $0x18] sm:$0xff] %vm761, %v732
        %766 = vst.msk [vmem:[%s234 + $0x20] sm:$0xff] %vm761, %v733
        %767 = vst.msk [vmem:[%s234 + $0x28] sm:$0xff] %vm761, %v734
        %768 = vst.msk [vmem:[%s234 + $0x30] sm:$0xff] %vm761, %v735
        %769 = vst.msk [vmem:[%s234 + $0x38] sm:$0xff] %vm761, %v736
        %770 = vst.msk [vmem:[%s234 + $0x40] sm:$0xff] %vm761, %v737
        %771 = vst.msk [vmem:[%s234 + $0x48] sm:$0xff] %vm761, %v738
        %772 = vst.msk [vmem:[%s234 + $0x50] sm:$0xff] %vm761, %v739
        %773 = vst.msk [vmem:[%s234 + $0x58] sm:$0xff] %vm761, %v740
        %774 = vst.msk [vmem:[%s234 + $0x60] sm:$0xff] %vm761, %v741
        %775 = vst.msk [vmem:[%s234 + $0x68] sm:$0xff] %vm761, %v742
        %776 = vst.msk [vmem:[%s234 + $0x70] sm:$0xff] %vm761, %v743
        %777 = vst.msk [vmem:[%s234 + $0x78] sm:$0xff] %vm761, %v744
        %778 = vst.msk [vmem:[%s234 + $0x80] sm:$0xff] %vm761, %v745
        %779 = vst.msk [vmem:[%s234 + $0x88] sm:$0xff] %vm761, %v746
        %780 = vst.msk [vmem:[%s234 + $0x90] sm:$0xff] %vm761, %v747
        %781 = vst.msk [vmem:[%s234 + $0x98] sm:$0xff] %vm761, %v748
        %782 = vst.msk [vmem:[%s234 + $0xa0] sm:$0xff] %vm761, %v749
        %783 = vst.msk [vmem:[%s234 + $0xa8] sm:$0xff] %vm761, %v750
        %784 = vst.msk [vmem:[%s234 + $0xb0] sm:$0xff] %vm761, %v751
        %785 = vst.msk [vmem:[%s234 + $0xb8] sm:$0xff] %vm761, %v752
        %786 = vst.msk [vmem:[%s234 + $0xc0] sm:$0xff] %vm761, %v753
        %787 = vst.msk [vmem:[%s234 + $0xc8] sm:$0xff] %vm761, %v754
        %788 = vst.msk [vmem:[%s234 + $0xd0] sm:$0xff] %vm761, %v755
        %789 = vst.msk [vmem:[%s234 + $0xd8] sm:$0xff] %vm761, %v756
        %790 = vst.msk [vmem:[%s234 + $0xe0] sm:$0xff] %vm761, %v757
        %791 = vst.msk [vmem:[%s234 + $0xe8] sm:$0xff] %vm761, %v758
        %792 = vst.msk [vmem:[%s234 + $0xf0] sm:$0xff] %vm761, %v759
        %793 = vst.msk [vmem:[%s234 + $0xf8] sm:$0xff] %vm761, %v760
        %s794 = sand.u32 %s142, 1
        %s795 = scalar_lea.sflag [#allocation3], %s794
        %s796 = sand.u32 %s142, 1
        %s797 = smul.addr %s796, 256
        %s798 = scalar_lea.vmem [#allocation2], %s797
        // Predicated region
        $region41: #{res_forward.5} parent=39 // pred_check
          %p799 = pneg %p152
        $region42: #{res_forward.5} parent=39 // pred_check_branch
          %801 = sbr.rel (%p799) target = $region44
        $region43: #{res_forward.5} parent=39 // pred_region
          %s802 = smul.u32 32, %s19
          %s804 = ssub.s32 4096, 4096
          %805 = vsyncadd %s795, %s804
          %s806 = smul.addr %s802, 128
          %s807 = scalar_lea.hbm %s5, %s806
          %s808 = sshll.u32 %s798, 4
          %s809 = int_to_ptr.vmem [resolvable:$true] %s808
          %814 = dma.vmem_to_hbm [thread:$0]  %s809, 4096, %s807, %s795, 128, 128, 8
        $region44: #{res_forward.5} parent=39 // pred_fallthru
          _
      $region40: #{res_forward.5} parent=5 // pred_fallthru
        _
      %p815 = scmp.le.s32.totalorder 2, %s14
      // Predicated region
      $region45: #{res_forward.5} parent=5 // pred_check
        %p816 = pneg %p815
      $region46: #{res_forward.5} parent=5 // pred_check_branch
        %818 = sbr.rel (%p816) target = $region48
      $region47: #{res_forward.5} parent=5 // pred_region
        %s819 = ssub.s32 %s14, 2
        // Predicated region
        $region49: #{res_forward.5} parent=47 // pred_check
          %p820 = pneg %p158
        $region50: #{res_forward.5} parent=47 // pred_check_branch
          %822 = sbr.rel (%p820) target = $region52
        $region51: #{res_forward.5} parent=47 // pred_region
          %s823 = sand.u32 %s143, 1
          %s824 = scalar_lea.sflag [#allocation3], %s823
          %s825 = sand.u32 %s143, 1
          %s826 = smul.addr %s825, 256
          %s827 = scalar_lea.vmem [#allocation2], %s826
          %828 = dma.done %s824, 4096
        $region52: #{res_forward.5} parent=47 // pred_fallthru
          _
      $region48: #{res_forward.5} parent=5 // pred_fallthru
        _
    $region6: #{res_forward.5} parent=1 // loop_footer
      %s18 = sadd.s32 1, %s14
    $region7: #{res_forward.5} parent=1 // loop_footer_branch
      %13 = sbr.rel target = $region3
    $region8: #{res_forward.5} parent=1 // loop_exit
      _
    %829 = vsyncpa [#allocation3], 1
    %s830 = scalar_lea.sflag [#allocation3], 1
    %831 = vsyncpa %s830, 1

// kernel: res_forward.4
$region0: #{res_forward.4}
  #allocation0 [shape = 'u32[]', space=smem, size = 0x4, offset = 0x4, fixed_abs, tag = 'smem constant byte address 0x4 - core index']
  #allocation1 [shape = 'u32[144,128]{1,0:T(1,128)}', space=vmem, size = 0x12000, scoped, tag = 'internal scratch']
  %s0 = inlined_call_operand.vmem [shape: bf16[36,18,32], index: 0, kind: input, shape index: {}]
  %s1 = inlined_call_operand.vmem [shape: bf16[9,32,32], index: 1, kind: input, shape index: {}]
  %s2 = inlined_call_operand.vmem [shape: f32[1,32], index: 2, kind: input, shape index: {}]
  %s3 = inlined_call_operand.vmem [shape: f32[1,32], index: 3, kind: input, shape index: {}]
  %s4 = inlined_call_operand.vmem [shape: bf16[512,32], index: 4, kind: output, shape index: {}]
  %s5 = sld [smem:[#allocation0]]
  $region49: #{res_forward.4} parent=0
    _
  %s7 = ssub.s32 1, %s5
  %s8 = scalar_select 0, %s7, %s5
  loop: start=0, step=1, limit=4
  $region2: #{res_forward.4} parent=0 // loop_pre_header
    _
  $region3: #{res_forward.4} parent=0 // loop_header
    %s10 = sphi 0, %s14
    %p11 = scmp.ge.s32.totalorder %s10, 4
    %s20 = sphi 0, %s22
    %s23 = sphi 0, %s20
    %s24 = sphi 0, %s23
    %s40 = sphi 0, %s24
    %s44 = sphi 0, %s44
    %s46 = sphi 0, %s44
    %s47 = sphi 0, %s46
    %s61 = sphi 0, %s47
    %s65 = sphi 0, %s65
    %s67 = sphi 0, %s65
    %s68 = sphi 0, %s67
    %s82 = sphi 0, %s68
    %s86 = sphi 0, %s86
    %s88 = sphi 0, %s86
    %s89 = sphi 0, %s88
    %s103 = sphi 0, %s89
    %s109 = sphi 0, %s111
    %s112 = sphi 0, %s109
    %s113 = sphi 0, %s112
    %s129 = sphi 0, %s113
  $region4: #{res_forward.4} parent=0 // loop_header_branch
    %13 = sbr.rel (%p11) target = $region8
  $region5: #{res_forward.4} parent=0 // loop_body
    %s15 = ssub.s32 %s10, 1
    %s16 = ssub.s32 %s10, 2
    %s17 = sadd.s32 %s10, 1
    %s18 = ssub.s32 %s10, %s17
    %p19 = scmp.eq.s32.totalorder %s18, 0
    %s21 = sadd.s32 %s20, 1
    %s22 = scalar_select %p19, %s20, %s21
    %p25 = pneg %p19
    %p26 = scmp.eq.s32.totalorder %s10, 1
    %p27 = por %p25, %p26
    %p28 = scmp.ne.s32.totalorder %s20, %s23
    %p29 = scmp.eq.s32.totalorder %s10, 0
    %p30 = por %p28, %p29
    %p31 = scmp.ne.s32.totalorder %s20, %s23
    %p32 = scmp.eq.s32.totalorder %s15, 1
    %p33 = por %p31, %p32
    %p34 = scmp.ne.s32.totalorder %s23, %s24
    %p35 = scmp.eq.s32.totalorder %s15, 0
    %p36 = por %p34, %p35
    %p37 = scmp.ne.s32.totalorder %s23, %s24
    %p38 = scmp.eq.s32.totalorder %s16, 1
    %p39 = por %p37, %p38
    %p41 = scmp.ne.s32.totalorder %s24, %s40
    %p42 = scmp.eq.s32.totalorder %s16, 0
    %p43 = por %p41, %p42
    %s45 = sadd.s32 %s44, 1
    %p48 = scmp.eq.s32.totalorder %s10, 1
    %p49 = scmp.ne.s32.totalorder %s44, %s46
    %p50 = scmp.eq.s32.totalorder %s10, 0
    %p51 = por %p49, %p50
    %p52 = scmp.ne.s32.totalorder %s44, %s46
    %p53 = scmp.eq.s32.totalorder %s15, 1
    %p54 = por %p52, %p53
    %p55 = scmp.ne.s32.totalorder %s46, %s47
    %p56 = scmp.eq.s32.totalorder %s15, 0
    %p57 = por %p55, %p56
    %p58 = scmp.ne.s32.totalorder %s46, %s47
    %p59 = scmp.eq.s32.totalorder %s16, 1
    %p60 = por %p58, %p59
    %p62 = scmp.ne.s32.totalorder %s47, %s61
    %p63 = scmp.eq.s32.totalorder %s16, 0
    %p64 = por %p62, %p63
    %s66 = sadd.s32 %s65, 1
    %p69 = scmp.eq.s32.totalorder %s10, 1
    %p70 = scmp.ne.s32.totalorder %s65, %s67
    %p71 = scmp.eq.s32.totalorder %s10, 0
    %p72 = por %p70, %p71
    %p73 = scmp.ne.s32.totalorder %s65, %s67
    %p74 = scmp.eq.s32.totalorder %s15, 1
    %p75 = por %p73, %p74
    %p76 = scmp.ne.s32.totalorder %s67, %s68
    %p77 = scmp.eq.s32.totalorder %s15, 0
    %p78 = por %p76, %p77
    %p79 = scmp.ne.s32.totalorder %s67, %s68
    %p80 = scmp.eq.s32.totalorder %s16, 1
    %p81 = por %p79, %p80
    %p83 = scmp.ne.s32.totalorder %s68, %s82
    %p84 = scmp.eq.s32.totalorder %s16, 0
    %p85 = por %p83, %p84
    %s87 = sadd.s32 %s86, 1
    %p90 = scmp.eq.s32.totalorder %s10, 1
    %p91 = scmp.ne.s32.totalorder %s86, %s88
    %p92 = scmp.eq.s32.totalorder %s10, 0
    %p93 = por %p91, %p92
    %p94 = scmp.ne.s32.totalorder %s86, %s88
    %p95 = scmp.eq.s32.totalorder %s15, 1
    %p96 = por %p94, %p95
    %p97 = scmp.ne.s32.totalorder %s88, %s89
    %p98 = scmp.eq.s32.totalorder %s15, 0
    %p99 = por %p97, %p98
    %p100 = scmp.ne.s32.totalorder %s88, %s89
    %p101 = scmp.eq.s32.totalorder %s16, 1
    %p102 = por %p100, %p101
    %p104 = scmp.ne.s32.totalorder %s89, %s103
    %p105 = scmp.eq.s32.totalorder %s16, 0
    %p106 = por %p104, %p105
    %s107 = ssub.s32 %s10, %s17
    %p108 = scmp.eq.s32.totalorder %s107, 0
    %s110 = sadd.s32 %s109, 1
    %s111 = scalar_select %p108, %s109, %s110
    %p114 = pneg %p108
    %p115 = scmp.eq.s32.totalorder %s10, 1
    %p116 = por %p114, %p115
    %p117 = scmp.ne.s32.totalorder %s109, %s112
    %p118 = scmp.eq.s32.totalorder %s10, 0
    %p119 = por %p117, %p118
    %p120 = scmp.ne.s32.totalorder %s109, %s112
    %p121 = scmp.eq.s32.totalorder %s15, 1
    %p122 = por %p120, %p121
    %p123 = scmp.ne.s32.totalorder %s112, %s113
    %p124 = scmp.eq.s32.totalorder %s15, 0
    %p125 = por %p123, %p124
    %p126 = scmp.ne.s32.totalorder %s112, %s113
    %p127 = scmp.eq.s32.totalorder %s16, 1
    %p128 = por %p126, %p127
    %p130 = scmp.ne.s32.totalorder %s113, %s129
    %p131 = scmp.eq.s32.totalorder %s16, 0
    %p132 = por %p130, %p131
    %p133 = scmp.le.s32.totalorder 1, %s10
    %p134 = scmp.lt.s32.totalorder %s10, 3
    %p135 = pnand %p133, %p134
    %p136 = pneg %p135
    // Predicated region
    $region9: #{res_forward.4} parent=5 // pred_check
      _
    $region10: #{res_forward.4} parent=5 // pred_check_branch
      %138 = sbr.rel (%p135) target = $region12
    $region11: #{res_forward.4} parent=5 // pred_region
      %s139 = ssub.s32 %s10, 1
      // Predicated region
      $region13: #{res_forward.4} parent=11 // pred_check
        %p140 = pneg %p57
      $region14: #{res_forward.4} parent=11 // pred_check_branch
        %142 = sbr.rel (%p140) target = $region16
      $region15: #{res_forward.4} parent=11 // pred_region
        _
      $region16: #{res_forward.4} parent=11 // pred_fallthru
        _
      // Predicated region
      $region17: #{res_forward.4} parent=11 // pred_check
        %p143 = pneg %p78
      $region18: #{res_forward.4} parent=11 // pred_check_branch
        %145 = sbr.rel (%p143) target = $region20
      $region19: #{res_forward.4} parent=11 // pred_region
        _
      $region20: #{res_forward.4} parent=11 // pred_fallthru
        _
      // Predicated region
      $region21: #{res_forward.4} parent=11 // pred_check
        %p146 = pneg %p99
      $region22: #{res_forward.4} parent=11 // pred_check_branch
        %148 = sbr.rel (%p146) target = $region24
      $region23: #{res_forward.4} parent=11 // pred_region
        _
      $region24: #{res_forward.4} parent=11 // pred_fallthru
        _
    $region12: #{res_forward.4} parent=5 // pred_fallthru
      _
    %p149 = scmp.lt.s32.totalorder %s10, 2
    // Predicated region
    $region25: #{res_forward.4} parent=5 // pred_check
      %p150 = pneg %p149
    $region26: #{res_forward.4} parent=5 // pred_check_branch
      %152 = sbr.rel (%p150) target = $region28
    $region27: #{res_forward.4} parent=5 // pred_region
      // Predicated region
      $region29: #{res_forward.4} parent=27 // pred_check
        %p153 = pneg %p30
      $region30: #{res_forward.4} parent=27 // pred_check_branch
        %155 = sbr.rel (%p153) target = $region32
      $region31: #{res_forward.4} parent=27 // pred_region
        %s156 = smul.u32 18, %s10
        %p157 = scmp.lt.s32.totalorder %s156, 35
        %s158 = scalar_select %p157, %s156, 35
        %s159 = smul.addr %s158, 3
        %s160 = smul.addr %s159, 4
        %s161 = scalar_lea.vmem %s0, %s160
        %s162 = smul.u32 18, %s10
      $region32: #{res_forward.4} parent=27 // pred_fallthru
        _
    $region28: #{res_forward.4} parent=5 // pred_fallthru
      _
    %p163 = scmp.le.s32.totalorder 1, %s10
    %p164 = scmp.lt.s32.totalorder %s10, 3
    %p165 = pnand %p163, %p164
    %p166 = pneg %p165
    // Predicated region
    $region33: #{res_forward.4} parent=5 // pred_check
      _
    $region34: #{res_forward.4} parent=5 // pred_check_branch
      %168 = sbr.rel (%p165) target = $region36
    $region35: #{res_forward.4} parent=5 // pred_region
      %s169 = ssub.s32 %s10, 1
      %s170 = smul.u32 18, %s15
      %p171 = scmp.lt.s32.totalorder %s170, 35
      %s172 = scalar_select %p171, %s170, 35
      %s173 = smul.addr %s172, 3
      %s174 = smul.addr %s173, 4
      %s175 = scalar_lea.vmem %s0, %s174
      %p176 = pneg %p36
      %p177 = pneg %p33
      %p178 = pneg %p57
      %p179 = pneg %p54
      %p180 = pneg %p78
      %p181 = pneg %p75
      %p182 = pneg %p99
      %p183 = pneg %p96
      %p184 = pneg %p125
      %p185 = pneg %p122
      %s186 = smul.u32 32, %s15
      %p187 = scmp.lt.s32.totalorder %s186, 63
      %s188 = scalar_select %p187, %s186, 63
      %s189 = smul.addr %s188, 4
      %s190 = scalar_lea.vmem %s4, %s189
      %s191 = smul.u32 18, %s15
      %p192 = scmp.lt.s32.totalorder %s191, 35
      %s193 = scalar_select %p192, %s191, 35
      %s194 = smul.addr %s193, 3
      %s195 = smul.addr %s194, 4
      %s196 = scalar_lea.vmem %s0, %s195
      %s197 = smul.u32 18, %s15
      %s198 = smul.u32 32, %s15
      %p199 = scmp.lt.s32.totalorder %s198, 63
      %s200 = scalar_select %p199, %s198, 63
      %s201 = smul.addr %s200, 4
      %s202 = scalar_lea.vmem %s4, %s201
      %s203 = smul.u32 32, %s15
      %v205 = vld [vmem:[%s196] sm:$0xf]
      %v206 = vld [vmem:[%s196 + $0x4] sm:$0xf]
      %v207 = vld [vmem:[%s196 + $0xc] sm:$0xf]
      %v208 = vld [vmem:[%s196 + $0x10] sm:$0xf]
      %v209 = vld [vmem:[%s196 + $0x18] sm:$0xf]
      %v210 = vld [vmem:[%s196 + $0x1c] sm:$0xf]
      %v211 = vld [vmem:[%s196 + $0x24] sm:$0xf]
      %v212 = vld [vmem:[%s196 + $0x28] sm:$0xf]
      %v213 = vld [vmem:[%s196 + $0x30] sm:$0xf]
      %v214 = vld [vmem:[%s196 + $0x34] sm:$0xf]
      %v215 = vld [vmem:[%s196 + $0x3c] sm:$0xf]
      %v216 = vld [vmem:[%s196 + $0x40] sm:$0xf]
      %v217 = vld [vmem:[%s196 + $0x48] sm:$0xf]
      %v218 = vld [vmem:[%s196 + $0x4c] sm:$0xf]
      %v219 = vld [vmem:[%s196 + $0x54] sm:$0xf]
      %v220 = vld [vmem:[%s196 + $0x58] sm:$0xf]
      %v221 = vld [vmem:[%s196 + $0x60] sm:$0xf]
      %v222 = vld [vmem:[%s196 + $0x64] sm:$0xf]
      %v223 = vld [vmem:[%s196 + $0x6c] sm:$0xf]
      %v224 = vld [vmem:[%s196 + $0x70] sm:$0xf]
      %v225 = vld [vmem:[%s196 + $0x78] sm:$0xf]
      %v226 = vld [vmem:[%s196 + $0x7c] sm:$0xf]
      %v227 = vld [vmem:[%s196 + $0x84] sm:$0xf]
      %v228 = vld [vmem:[%s196 + $0x88] sm:$0xf]
      %v229 = vld [vmem:[%s196 + $0x90] sm:$0xf]
      %v230 = vld [vmem:[%s196 + $0x94] sm:$0xf]
      %v231 = vld [vmem:[%s196 + $0x9c] sm:$0xf]
      %v232 = vld [vmem:[%s196 + $0xa0] sm:$0xf]
      %v233 = vld [vmem:[%s196 + $0xa8] sm:$0xf]
      %v234 = vld [vmem:[%s196 + $0xac] sm:$0xf]
      %v235 = vld [vmem:[%s196 + $0xb4] sm:$0xf]
      %v236 = vld [vmem:[%s196 + $0xb8] sm:$0xf]
      %v237 = vld [vmem:[%s1] sm:$0xf]
      %v238 = vld [vmem:[%s1 + $0x4] sm:$0xf]
      %v239 = vld [vmem:[%s1 + $0x8] sm:$0xf]
      %v240 = vld [vmem:[%s1 + $0xc] sm:$0xf]
      %v241 = vld [vmem:[%s196 + $0x8] sm:$0x1]
      %v242 = vld [vmem:[%s196 + $0x14] sm:$0x1]
      %v243 = vld [vmem:[%s196 + $0x20] sm:$0x1]
      %v244 = vld [vmem:[%s196 + $0x2c] sm:$0x1]
      %v245 = vld [vmem:[%s196 + $0x38] sm:$0x1]
      %v246 = vld [vmem:[%s196 + $0x44] sm:$0x1]
      %v247 = vld [vmem:[%s196 + $0x50] sm:$0x1]
      %v248 = vld [vmem:[%s196 + $0x5c] sm:$0x1]
      %v249 = vld [vmem:[%s196 + $0x68] sm:$0x1]
      %v250 = vld [vmem:[%s196 + $0x74] sm:$0x1]
      %v251 = vld [vmem:[%s196 + $0x80] sm:$0x1]
      %v252 = vld [vmem:[%s196 + $0x8c] sm:$0x1]
      %v253 = vld [vmem:[%s196 + $0x98] sm:$0x1]
      %v254 = vld [vmem:[%s196 + $0xa4] sm:$0x1]
      %v255 = vld [vmem:[%s196 + $0xb0] sm:$0x1]
      %v256 = vld [vmem:[%s196 + $0xbc] sm:$0x1]
      %vm257 = vsmask.f32 3328
      %vm258 = vsmask.f32 7440
      %vm259 = vmor %vm257, %vm258
      %v261 = vshrl.u32 %v205, 16
      %v263 = vrot.slane %v261, 4
      %v264 = vshll.u32 %v205, 16
      %v266 = vrot.slane %v264, 5
      %v267 = vor.u32 %v263, %v266
      %v268 = vrot.slane %v267, 4
      %v270 = vshll.u32 %v206, 16
      %v272 = vrot.slane %v270, 5
      %v273 = vsel %vm259, %v268, %v272
      %v274 = vshrl.u32 %v206, 16
      %v276 = vrot.slane %v274, 4
      %v277 = vor.u32 %v276, %v272
      %v278 = vrot.slane %v277, 4
      %v280 = vshll.u32 %v241, 16
      %v282 = vrot.slane %v280, 5
      %v283 = vsel %vm259, %v278, %v282
      %v285 = vshrl.u32 %v207, 16
      %v287 = vrot.slane %v285, 4
      %v288 = vshll.u32 %v207, 16
      %v290 = vrot.slane %v288, 5
      %v291 = vor.u32 %v287, %v290
      %v292 = vrot.slane %v291, 4
      %v294 = vshll.u32 %v208, 16
      %v296 = vrot.slane %v294, 5
      %v297 = vsel %vm259, %v292, %v296
      %v298 = vshrl.u32 %v208, 16
      %v300 = vrot.slane %v298, 4
      %v301 = vor.u32 %v300, %v296
      %v302 = vrot.slane %v301, 4
      %v304 = vshll.u32 %v242, 16
      %v306 = vrot.slane %v304, 5
      %v307 = vsel %vm259, %v302, %v306
      %v309 = vshrl.u32 %v209, 16
      %v311 = vrot.slane %v309, 4
      %v312 = vshll.u32 %v209, 16
      %v314 = vrot.slane %v312, 5
      %v315 = vor.u32 %v311, %v314
      %v316 = vrot.slane %v315, 4
      %v318 = vshll.u32 %v210, 16
      %v320 = vrot.slane %v318, 5
      %v321 = vsel %vm259, %v316, %v320
      %v322 = vshrl.u32 %v210, 16
      %v324 = vrot.slane %v322, 4
      %v325 = vor.u32 %v324, %v320
      %v326 = vrot.slane %v325, 4
      %v328 = vshll.u32 %v243, 16
      %v330 = vrot.slane %v328, 5
      %v331 = vsel %vm259, %v326, %v330
      %v333 = vshrl.u32 %v211, 16
      %v335 = vrot.slane %v333, 4
      %v336 = vshll.u32 %v211, 16
      %v338 = vrot.slane %v336, 5
      %v339 = vor.u32 %v335, %v338
      %v340 = vrot.slane %v339, 4
      %v342 = vshll.u32 %v212, 16
      %v344 = vrot.slane %v342, 5
      %v345 = vsel %vm259, %v340, %v344
      %v346 = vshrl.u32 %v212, 16
      %v348 = vrot.slane %v346, 4
      %v349 = vor.u32 %v348, %v344
      %v350 = vrot.slane %v349, 4
      %v352 = vshll.u32 %v244, 16
      %v354 = vrot.slane %v352, 5
      %v355 = vsel %vm259, %v350, %v354
      %v357 = vshrl.u32 %v213, 16
      %v359 = vrot.slane %v357, 4
      %v360 = vshll.u32 %v213, 16
      %v362 = vrot.slane %v360, 5
      %v363 = vor.u32 %v359, %v362
      %v364 = vrot.slane %v363, 4
      %v366 = vshll.u32 %v214, 16
      %v368 = vrot.slane %v366, 5
      %v369 = vsel %vm259, %v364, %v368
      %v370 = vshrl.u32 %v214, 16
      %v372 = vrot.slane %v370, 4
      %v373 = vor.u32 %v372, %v368
      %v374 = vrot.slane %v373, 4
      %v376 = vshll.u32 %v245, 16
      %v378 = vrot.slane %v376, 5
      %v379 = vsel %vm259, %v374, %v378
      %v381 = vshrl.u32 %v215, 16
      %v383 = vrot.slane %v381, 4
      %v384 = vshll.u32 %v215, 16
      %v386 = vrot.slane %v384, 5
      %v387 = vor.u32 %v383, %v386
      %v388 = vrot.slane %v387, 4
      %v390 = vshll.u32 %v216, 16
      %v392 = vrot.slane %v390, 5
      %v393 = vsel %vm259, %v388, %v392
      %v394 = vshrl.u32 %v216, 16
      %v396 = vrot.slane %v394, 4
      %v397 = vor.u32 %v396, %v392
      %v398 = vrot.slane %v397, 4
      %v400 = vshll.u32 %v246, 16
      %v402 = vrot.slane %v400, 5
      %v403 = vsel %vm259, %v398, %v402
      %v405 = vshrl.u32 %v217, 16
      %v407 = vrot.slane %v405, 4
      %v408 = vshll.u32 %v217, 16
      %v410 = vrot.slane %v408, 5
      %v411 = vor.u32 %v407, %v410
      %v412 = vrot.slane %v411, 4
      %v414 = vshll.u32 %v218, 16
      %v416 = vrot.slane %v414, 5
      %v417 = vsel %vm259, %v412, %v416
      %v418 = vshrl.u32 %v218, 16
      %v420 = vrot.slane %v418, 4
      %v421 = vor.u32 %v420, %v416
      %v422 = vrot.slane %v421, 4
      %v424 = vshll.u32 %v247, 16
      %v426 = vrot.slane %v424, 5
      %v427 = vsel %vm259, %v422, %v426
      %v429 = vshrl.u32 %v219, 16
      %v431 = vrot.slane %v429, 4
      %v432 = vshll.u32 %v219, 16
      %v434 = vrot.slane %v432, 5
      %v435 = vor.u32 %v431, %v434
      %v436 = vrot.slane %v435, 4
      %v438 = vshll.u32 %v220, 16
      %v440 = vrot.slane %v438, 5
      %v441 = vsel %vm259, %v436, %v440
      %v442 = vshrl.u32 %v220, 16
      %v444 = vrot.slane %v442, 4
      %v445 = vor.u32 %v444, %v440
      %v446 = vrot.slane %v445, 4
      %v448 = vshll.u32 %v248, 16
      %v450 = vrot.slane %v448, 5
      %v451 = vsel %vm259, %v446, %v450
      %v453 = vshrl.u32 %v221, 16
      %v455 = vrot.slane %v453, 4
      %v456 = vshll.u32 %v221, 16
      %v458 = vrot.slane %v456, 5
      %v459 = vor.u32 %v455, %v458
      %v460 = vrot.slane %v459, 4
      %v462 = vshll.u32 %v222, 16
      %v464 = vrot.slane %v462, 5
      %v465 = vsel %vm259, %v460, %v464
      %v466 = vshrl.u32 %v222, 16
      %v468 = vrot.slane %v466, 4
      %v469 = vor.u32 %v468, %v464
      %v470 = vrot.slane %v469, 4
      %v472 = vshll.u32 %v249, 16
      %v474 = vrot.slane %v472, 5
      %v475 = vsel %vm259, %v470, %v474
      %v477 = vshrl.u32 %v223, 16
      %v479 = vrot.slane %v477, 4
      %v480 = vshll.u32 %v223, 16
      %v482 = vrot.slane %v480, 5
      %v483 = vor.u32 %v479, %v482
      %v484 = vrot.slane %v483, 4
      %v486 = vshll.u32 %v224, 16
      %v488 = vrot.slane %v486, 5
      %v489 = vsel %vm259, %v484, %v488
      %v490 = vshrl.u32 %v224, 16
      %v492 = vrot.slane %v490, 4
      %v493 = vor.u32 %v492, %v488
      %v494 = vrot.slane %v493, 4
      %v496 = vshll.u32 %v250, 16
      %v498 = vrot.slane %v496, 5
      %v499 = vsel %vm259, %v494, %v498
      %v501 = vshrl.u32 %v225, 16
      %v503 = vrot.slane %v501, 4
      %v504 = vshll.u32 %v225, 16
      %v506 = vrot.slane %v504, 5
      %v507 = vor.u32 %v503, %v506
      %v508 = vrot.slane %v507, 4
      %v510 = vshll.u32 %v226, 16
      %v512 = vrot.slane %v510, 5
      %v513 = vsel %vm259, %v508, %v512
      %v514 = vshrl.u32 %v226, 16
      %v516 = vrot.slane %v514, 4
      %v517 = vor.u32 %v516, %v512
      %v518 = vrot.slane %v517, 4
      %v520 = vshll.u32 %v251, 16
      %v522 = vrot.slane %v520, 5
      %v523 = vsel %vm259, %v518, %v522
      %v525 = vshrl.u32 %v227, 16
      %v527 = vrot.slane %v525, 4
      %v528 = vshll.u32 %v227, 16
      %v530 = vrot.slane %v528, 5
      %v531 = vor.u32 %v527, %v530
      %v532 = vrot.slane %v531, 4
      %v534 = vshll.u32 %v228, 16
      %v536 = vrot.slane %v534, 5
      %v537 = vsel %vm259, %v532, %v536
      %v538 = vshrl.u32 %v228, 16
      %v540 = vrot.slane %v538, 4
      %v541 = vor.u32 %v540, %v536
      %v542 = vrot.slane %v541, 4
      %v544 = vshll.u32 %v252, 16
      %v546 = vrot.slane %v544, 5
      %v547 = vsel %vm259, %v542, %v546
      %v549 = vshrl.u32 %v229, 16
      %v551 = vrot.slane %v549, 4
      %v552 = vshll.u32 %v229, 16
      %v554 = vrot.slane %v552, 5
      %v555 = vor.u32 %v551, %v554
      %v556 = vrot.slane %v555, 4
      %v558 = vshll.u32 %v230, 16
      %v560 = vrot.slane %v558, 5
      %v561 = vsel %vm259, %v556, %v560
      %v562 = vshrl.u32 %v230, 16
      %v564 = vrot.slane %v562, 4
      %v565 = vor.u32 %v564, %v560
      %v566 = vrot.slane %v565, 4
      %v568 = vshll.u32 %v253, 16
      %v570 = vrot.slane %v568, 5
      %v571 = vsel %vm259, %v566, %v570
      %v573 = vshrl.u32 %v231, 16
      %v575 = vrot.slane %v573, 4
      %v576 = vshll.u32 %v231, 16
      %v578 = vrot.slane %v576, 5
      %v579 = vor.u32 %v575, %v578
      %v580 = vrot.slane %v579, 4
      %v582 = vshll.u32 %v232, 16
      %v584 = vrot.slane %v582, 5
      %v585 = vsel %vm259, %v580, %v584
      %v586 = vshrl.u32 %v232, 16
      %v588 = vrot.slane %v586, 4
      %v589 = vor.u32 %v588, %v584
      %v590 = vrot.slane %v589, 4
      %v592 = vshll.u32 %v254, 16
      %v594 = vrot.slane %v592, 5
      %v595 = vsel %vm259, %v590, %v594
      %v597 = vshrl.u32 %v233, 16
      %v599 = vrot.slane %v597, 4
      %v600 = vshll.u32 %v233, 16
      %v602 = vrot.slane %v600, 5
      %v603 = vor.u32 %v599, %v602
      %v604 = vrot.slane %v603, 4
      %v606 = vshll.u32 %v234, 16
      %v608 = vrot.slane %v606, 5
      %v609 = vsel %vm259, %v604, %v608
      %v610 = vshrl.u32 %v234, 16
      %v612 = vrot.slane %v610, 4
      %v613 = vor.u32 %v612, %v608
      %v614 = vrot.slane %v613, 4
      %v616 = vshll.u32 %v255, 16
      %v618 = vrot.slane %v616, 5
      %v619 = vsel %vm259, %v614, %v618
      %v621 = vshrl.u32 %v235, 16
      %v623 = vrot.slane %v621, 4
      %v624 = vshll.u32 %v235, 16
      %v626 = vrot.slane %v624, 5
      %v627 = vor.u32 %v623, %v626
      %v628 = vrot.slane %v627, 4
      %v630 = vshll.u32 %v236, 16
      %v632 = vrot.slane %v630, 5
      %v633 = vsel %vm259, %v628, %v632
      %v634 = vshrl.u32 %v236, 16
      %v636 = vrot.slane %v634, 4
      %v637 = vor.u32 %v636, %v632
      %v638 = vrot.slane %v637, 4
      %v640 = vshll.u32 %v256, 16
      %v642 = vrot.slane %v640, 5
      %v643 = vsel %vm259, %v638, %v642
      %s644 = scalar_lea.vmem %s1, 16
      %v645 = vld [vmem:[%s644] sm:$0xf]
      %v646 = vld [vmem:[%s644 + $0x4] sm:$0xf]
      %v647 = vld [vmem:[%s644 + $0x8] sm:$0xf]
      %v648 = vld [vmem:[%s644 + $0xc] sm:$0xf]
      %v649 = vunpack.c.l.b16 %v273
      %v650 = vunpack.c.l.b16 %v283
      %v651 = vunpack.c.l.b16 %v297
      %v652 = vunpack.c.l.b16 %v307
      %v653 = vunpack.c.l.b16 %v321
      %v654 = vunpack.c.l.b16 %v331
      %v655 = vunpack.c.l.b16 %v345
      %v656 = vunpack.c.l.b16 %v355
      %v657 = vunpack.c.l.b16 %v369
      %v658 = vunpack.c.l.b16 %v379
      %v659 = vunpack.c.l.b16 %v393
      %v660 = vunpack.c.l.b16 %v403
      %v661 = vunpack.c.l.b16 %v417
      %v662 = vunpack.c.l.b16 %v427
      %v663 = vunpack.c.l.b16 %v441
      %v664 = vunpack.c.l.b16 %v451
      %v665 = vunpack.c.l.b16 %v465
      %v666 = vunpack.c.l.b16 %v475
      %v667 = vunpack.c.l.b16 %v489
      %v668 = vunpack.c.l.b16 %v499
      %v669 = vunpack.c.l.b16 %v513
      %v670 = vunpack.c.l.b16 %v523
      %v671 = vunpack.c.l.b16 %v537
      %v672 = vunpack.c.l.b16 %v547
      %v673 = vunpack.c.l.b16 %v561
      %v674 = vunpack.c.l.b16 %v571
      %v675 = vunpack.c.l.b16 %v585
      %v676 = vunpack.c.l.b16 %v595
      %v677 = vunpack.c.l.b16 %v609
      %v678 = vunpack.c.l.b16 %v619
      %v679 = vunpack.c.l.b16 %v633
      %v680 = vunpack.c.l.b16 %v643
      %v681 = vpack.c.b16 %v650, %v649
      %v682 = vpack.c.b16 %v652, %v651
      %v683 = vpack.c.b16 %v654, %v653
      %v684 = vpack.c.b16 %v656, %v655
      %v685 = vpack.c.b16 %v658, %v657
      %v686 = vpack.c.b16 %v660, %v659
      %v687 = vpack.c.b16 %v662, %v661
      %v688 = vpack.c.b16 %v664, %v663
      %v689 = vpack.c.b16 %v666, %v665
      %v690 = vpack.c.b16 %v668, %v667
      %v691 = vpack.c.b16 %v670, %v669
      %v692 = vpack.c.b16 %v672, %v671
      %v693 = vpack.c.b16 %v674, %v673
      %v694 = vpack.c.b16 %v676, %v675
      %v695 = vpack.c.b16 %v678, %v677
      %v696 = vpack.c.b16 %v680, %v679
      %v701 = vunpack.c.l.b16 %v645
      %v702 = vunpack.c.l.b16 %v646
      %v703 = vunpack.c.l.b16 %v647
      %v704 = vunpack.c.l.b16 %v648
      %v705 = vpack.c.b16 %v702, %v701
      %v706 = vpack.c.b16 %v704, %v703
      %vm709 = vcmask 261120
      %v711 = vsel %vm709, %v681, 0
      %v714 = vsel %vm709, %v682, 0
      %v717 = vsel %vm709, %v683, 0
      %v720 = vsel %vm709, %v684, 0
      %v723 = vsel %vm709, %v685, 0
      %v726 = vsel %vm709, %v686, 0
      %v729 = vsel %vm709, %v687, 0
      %v732 = vsel %vm709, %v688, 0
      %v735 = vsel %vm709, %v689, 0
      %v738 = vsel %vm709, %v690, 0
      %v741 = vsel %vm709, %v691, 0
      %v744 = vsel %vm709, %v692, 0
      %v747 = vsel %vm709, %v693, 0
      %v750 = vsel %vm709, %v694, 0
      %v753 = vsel %vm709, %v695, 0
      %v756 = vsel %vm709, %v696, 0
      %758 = vmatprep.subr.bf16.mxu0 0
      %759 = vmatpush1.bf16.msra.mxu0 %v705
      %760 = vmatprep.subr.bf16.mxu0 0
      %761 = vmatpush1.bf16.msra.mxu0 %v706
      %762 = vmatprep.subr.bf16.mxu0 0
      %763 = vmatpush1.bf16.msra.mxu0 0
      %764 = vmatprep.subr.bf16.mxu0 0
      %765 = vmatpush1.bf16.msra.mxu0 0
      %766 = vmatprep.subr.bf16.mxu0 0
      %767 = vmatpush1.bf16.msra.mxu0 0
      %768 = vmatprep.subr.bf16.mxu0 0
      %769 = vmatpush1.bf16.msra.mxu0 0
      %770 = vmatprep.subr.bf16.mxu0 0
      %771 = vmatpush1.bf16.msra.mxu0 0
      %772 = vmatprep.subr.bf16.mxu0 0
      %773 = vmatpush1.bf16.msra.mxu0 0
      %774 = vmatprep.subr.bf16.mxu0 0
      %775 = vmatpush1.bf16.msra.mxu0 0
      %776 = vmatprep.subr.bf16.mxu0 0
      %777 = vmatpush1.bf16.msra.mxu0 0
      %778 = vmatprep.subr.bf16.mxu0 0
      %779 = vmatpush1.bf16.msra.mxu0 0
      %780 = vmatprep.subr.bf16.mxu0 0
      %781 = vmatpush1.bf16.msra.mxu0 0
      %782 = vmatprep.subr.bf16.mxu0 0
      %783 = vmatpush1.bf16.msra.mxu0 0
      %784 = vmatprep.subr.bf16.mxu0 0
      %785 = vmatpush1.bf16.msra.mxu0 0
      %786 = vmatprep.subr.bf16.mxu0 0
      %787 = vmatpush1.bf16.msra.mxu0 0
      %788 = vmatprep.subr.bf16.mxu0 0
      %789 = vmatpush1.bf16.msra.mxu0 0
      %790 = vmatprep.mubr.bf16.mxu0 0
      %791 = vmatmul.mubr.bf16.gmra.mrb[0].mxu0 %v711
      %v792 = vpop.f32.mrb[0].mxu0
      %v793 = vadd.f32 0.0, %v792
      %v794 = vpop.f32.mrb[0].mxu0
      %v795 = vpop.f32.mrb[0].mxu0
      %v796 = vadd.f32 0.0, %v795
      %v797 = vpop.f32.mrb[0].mxu0
      %798 = vmatprep.mubr.bf16.mxu0 0
      %799 = vmatmul.mubr.bf16.gmra.mrb[0].mxu0 %v714
      %v800 = vpop.f32.mrb[0].mxu0
      %v801 = vadd.f32 0.0, %v800
      %v802 = vpop.f32.mrb[0].mxu0
      %v803 = vpop.f32.mrb[0].mxu0
      %v804 = vadd.f32 0.0, %v803
      %v805 = vpop.f32.mrb[0].mxu0
      %806 = vmatprep.mubr.bf16.mxu0 0
      %807 = vmatmul.mubr.bf16.gmra.mrb[0].mxu0 %v717
      %v808 = vpop.f32.mrb[0].mxu0
      %v809 = vadd.f32 0.0, %v808
      %v810 = vpop.f32.mrb[0].mxu0
      %v811 = vpop.f32.mrb[0].mxu0
      %v812 = vadd.f32 0.0, %v811
      %v813 = vpop.f32.mrb[0].mxu0
      %814 = vmatprep.mubr.bf16.mxu0 0
      %815 = vmatmul.mubr.bf16.gmra.mrb[0].mxu0 %v720
      %v816 = vpop.f32.mrb[0].mxu0
      %v817 = vadd.f32 0.0, %v816
      %v818 = vpop.f32.mrb[0].mxu0
      %v819 = vpop.f32.mrb[0].mxu0
      %v820 = vadd.f32 0.0, %v819
      %v821 = vpop.f32.mrb[0].mxu0
      %822 = vmatprep.mubr.bf16.mxu0 0
      %823 = vmatmul.mubr.bf16.gmra.mrb[0].mxu0 %v723
      %v824 = vpop.f32.mrb[0].mxu0
      %v825 = vadd.f32 0.0, %v824
      %v826 = vpop.f32.mrb[0].mxu0
      %v827 = vpop.f32.mrb[0].mxu0
      %v828 = vadd.f32 0.0, %v827
      %v829 = vpop.f32.mrb[0].mxu0
      %830 = vmatprep.mubr.bf16.mxu0 0
      %831 = vmatmul.mubr.bf16.gmra.mrb[0].mxu0 %v726
      %v832 = vpop.f32.mrb[0].mxu0
      %v833 = vadd.f32 0.0, %v832
      %v834 = vpop.f32.mrb[0].mxu0
      %v835 = vpop.f32.mrb[0].mxu0
      %v836 = vadd.f32 0.0, %v835
      %v837 = vpop.f32.mrb[0].mxu0
      %838 = vmatprep.mubr.bf16.mxu0 0
      %839 = vmatmul.mubr.bf16.gmra.mrb[0].mxu0 %v729
      %v840 = vpop.f32.mrb[0].mxu0
      %v841 = vadd.f32 0.0, %v840
      %v842 = vpop.f32.mrb[0].mxu0
      %v843 = vpop.f32.mrb[0].mxu0
      %v844 = vadd.f32 0.0, %v843
      %v845 = vpop.f32.mrb[0].mxu0
      %846 = vmatprep.mubr.bf16.mxu0 0
      %847 = vmatmul.mubr.bf16.gmra.mrb[0].mxu0 %v732
      %v848 = vpop.f32.mrb[0].mxu0
      %v849 = vadd.f32 0.0, %v848
      %v850 = vpop.f32.mrb[0].mxu0
      %v851 = vpop.f32.mrb[0].mxu0
      %v852 = vadd.f32 0.0, %v851
      %v853 = vpop.f32.mrb[0].mxu0
      %854 = vmatprep.mubr.bf16.mxu0 0
      %855 = vmatmul.mubr.bf16.gmra.mrb[0].mxu0 %v735
      %v856 = vpop.f32.mrb[0].mxu0
      %v857 = vadd.f32 0.0, %v856
      %v858 = vpop.f32.mrb[0].mxu0
      %v859 = vpop.f32.mrb[0].mxu0
      %v860 = vadd.f32 0.0, %v859
      %v861 = vpop.f32.mrb[0].mxu0
      %862 = vmatprep.mubr.bf16.mxu0 0
      %863 = vmatmul.mubr.bf16.gmra.mrb[0].mxu0 %v738
      %v864 = vpop.f32.mrb[0].mxu0
      %v865 = vadd.f32 0.0, %v864
      %v866 = vpop.f32.mrb[0].mxu0
      %v867 = vpop.f32.mrb[0].mxu0
      %v868 = vadd.f32 0.0, %v867
      %v869 = vpop.f32.mrb[0].mxu0
      %870 = vmatprep.mubr.bf16.mxu0 0
      %871 = vmatmul.mubr.bf16.gmra.mrb[0].mxu0 %v741
      %v872 = vpop.f32.mrb[0].mxu0
      %v873 = vadd.f32 0.0, %v872
      %v874 = vpop.f32.mrb[0].mxu0
      %v875 = vpop.f32.mrb[0].mxu0
      %v876 = vadd.f32 0.0, %v875
      %v877 = vpop.f32.mrb[0].mxu0
      %878 = vmatprep.mubr.bf16.mxu0 0
      %879 = vmatmul.mubr.bf16.gmra.mrb[0].mxu0 %v744
      %v880 = vpop.f32.mrb[0].mxu0
      %v881 = vadd.f32 0.0, %v880
      %v882 = vpop.f32.mrb[0].mxu0
      %v883 = vpop.f32.mrb[0].mxu0
      %v884 = vadd.f32 0.0, %v883
      %v885 = vpop.f32.mrb[0].mxu0
      %886 = vmatprep.mubr.bf16.mxu0 0
      %887 = vmatmul.mubr.bf16.gmra.mrb[0].mxu0 %v747
      %v888 = vpop.f32.mrb[0].mxu0
      %v889 = vadd.f32 0.0, %v888
      %v890 = vpop.f32.mrb[0].mxu0
      %v891 = vpop.f32.mrb[0].mxu0
      %v892 = vadd.f32 0.0, %v891
      %v893 = vpop.f32.mrb[0].mxu0
      %894 = vmatprep.mubr.bf16.mxu0 0
      %895 = vmatmul.mubr.bf16.gmra.mrb[0].mxu0 %v750
      %v896 = vpop.f32.mrb[0].mxu0
      %v897 = vadd.f32 0.0, %v896
      %v898 = vpop.f32.mrb[0].mxu0
      %v899 = vpop.f32.mrb[0].mxu0
      %v900 = vadd.f32 0.0, %v899
      %v901 = vpop.f32.mrb[0].mxu0
      %902 = vmatprep.mubr.bf16.mxu0 0
      %903 = vmatmul.mubr.bf16.gmra.mrb[0].mxu0 %v753
      %v904 = vpop.f32.mrb[0].mxu0
      %v905 = vadd.f32 0.0, %v904
      %v906 = vpop.f32.mrb[0].mxu0
      %v907 = vpop.f32.mrb[0].mxu0
      %v908 = vadd.f32 0.0, %v907
      %v909 = vpop.f32.mrb[0].mxu0
      %910 = vmatprep.mubr.bf16.mxu0 0
      %911 = vmatmul.mubr.bf16.gmra.mrb[0].mxu0 %v756
      %v912 = vpop.f32.mrb[0].mxu0
      %v913 = vadd.f32 0.0, %v912
      %v914 = vpop.f32.mrb[0].mxu0
      %v915 = vpop.f32.mrb[0].mxu0
      %v916 = vadd.f32 0.0, %v915
      %v917 = vpop.f32.mrb[0].mxu0
      %918 = vdwg.mxu0
      %v951 = vunpack.c.l.b16 %v205
      %v952 = vunpack.c.l.b16 %v206
      %v953 = vunpack.c.l.b16 %v207
      %v954 = vunpack.c.l.b16 %v208
      %v955 = vunpack.c.l.b16 %v209
      %v956 = vunpack.c.l.b16 %v210
      %v957 = vunpack.c.l.b16 %v211
      %v958 = vunpack.c.l.b16 %v212
      %v959 = vunpack.c.l.b16 %v213
      %v960 = vunpack.c.l.b16 %v214
      %v961 = vunpack.c.l.b16 %v215
      %v962 = vunpack.c.l.b16 %v216
      %v963 = vunpack.c.l.b16 %v217
      %v964 = vunpack.c.l.b16 %v218
      %v965 = vunpack.c.l.b16 %v219
      %v966 = vunpack.c.l.b16 %v220
      %v967 = vunpack.c.l.b16 %v221
      %v968 = vunpack.c.l.b16 %v222
      %v969 = vunpack.c.l.b16 %v223
      %v970 = vunpack.c.l.b16 %v224
      %v971 = vunpack.c.l.b16 %v225
      %v972 = vunpack.c.l.b16 %v226
      %v973 = vunpack.c.l.b16 %v227
      %v974 = vunpack.c.l.b16 %v228
      %v975 = vunpack.c.l.b16 %v229
      %v976 = vunpack.c.l.b16 %v230
      %v977 = vunpack.c.l.b16 %v231
      %v978 = vunpack.c.l.b16 %v232
      %v979 = vunpack.c.l.b16 %v233
      %v980 = vunpack.c.l.b16 %v234
      %v981 = vunpack.c.l.b16 %v235
      %v982 = vunpack.c.l.b16 %v236
      %v983 = vpack.c.b16 %v952, %v951
      %v984 = vpack.c.b16 %v954, %v953
      %v985 = vpack.c.b16 %v956, %v955
      %v986 = vpack.c.b16 %v958, %v957
      %v987 = vpack.c.b16 %v960, %v959
      %v988 = vpack.c.b16 %v962, %v961
      %v989 = vpack.c.b16 %v964, %v963
      %v990 = vpack.c.b16 %v966, %v965
      %v991 = vpack.c.b16 %v968, %v967
      %v992 = vpack.c.b16 %v970, %v969
      %v993 = vpack.c.b16 %v972, %v971
      %v994 = vpack.c.b16 %v974, %v973
      %v995 = vpack.c.b16 %v976, %v975
      %v996 = vpack.c.b16 %v978, %v977
      %v997 = vpack.c.b16 %v980, %v979
      %v998 = vpack.c.b16 %v982, %v981
      %v1003 = vunpack.c.l.b16 %v237
      %v1004 = vunpack.c.l.b16 %v238
      %v1005 = vunpack.c.l.b16 %v239
      %v1006 = vunpack.c.l.b16 %v240
      %v1007 = vpack.c.b16 %v1004, %v1003
      %v1008 = vpack.c.b16 %v1006, %v1005
      %v1012 = vsel %vm709, %v983, 0
      %v1015 = vsel %vm709, %v984, 0
      %v1018 = vsel %vm709, %v985, 0
      %v1021 = vsel %vm709, %v986, 0
      %v1024 = vsel %vm709, %v987, 0
      %v1027 = vsel %vm709, %v988, 0
      %v1030 = vsel %vm709, %v989, 0
      %v1033 = vsel %vm709, %v990, 0
      %v1036 = vsel %vm709, %v991, 0
      %v1039 = vsel %vm709, %v992, 0
      %v1042 = vsel %vm709, %v993, 0
      %v1045 = vsel %vm709, %v994, 0
      %v1048 = vsel %vm709, %v995, 0
      %v1051 = vsel %vm709, %v996, 0
      %v1054 = vsel %vm709, %v997, 0
      %v1057 = vsel %vm709, %v998, 0
      %1059 = vmatprep.subr.bf16.mxu0 0
      %1060 = vmatpush1.bf16.msra.mxu0 %v1007
      %1061 = vmatprep.subr.bf16.mxu0 0
      %1062 = vmatpush1.bf16.msra.mxu0 %v1008
      %1063 = vmatprep.subr.bf16.mxu0 0
      %1064 = vmatpush1.bf16.msra.mxu0 0
      %1065 = vmatprep.subr.bf16.mxu0 0
      %1066 = vmatpush1.bf16.msra.mxu0 0
      %1067 = vmatprep.subr.bf16.mxu0 0
      %1068 = vmatpush1.bf16.msra.mxu0 0
      %1069 = vmatprep.subr.bf16.mxu0 0
      %1070 = vmatpush1.bf16.msra.mxu0 0
      %1071 = vmatprep.subr.bf16.mxu0 0
      %1072 = vmatpush1.bf16.msra.mxu0 0
      %1073 = vmatprep.subr.bf16.mxu0 0
      %1074 = vmatpush1.bf16.msra.mxu0 0
      %1075 = vmatprep.subr.bf16.mxu0 0
      %1076 = vmatpush1.bf16.msra.mxu0 0
      %1077 = vmatprep.subr.bf16.mxu0 0
      %1078 = vmatpush1.bf16.msra.mxu0 0
      %1079 = vmatprep.subr.bf16.mxu0 0
      %1080 = vmatpush1.bf16.msra.mxu0 0
      %1081 = vmatprep.subr.bf16.mxu0 0
      %1082 = vmatpush1.bf16.msra.mxu0 0
      %1083 = vmatprep.subr.bf16.mxu0 0
      %1084 = vmatpush1.bf16.msra.mxu0 0
      %1085 = vmatprep.subr.bf16.mxu0 0
      %1086 = vmatpush1.bf16.msra.mxu0 0
      %1087 = vmatprep.subr.bf16.mxu0 0
      %1088 = vmatpush1.bf16.msra.mxu0 0
      %1089 = vmatprep.subr.bf16.mxu0 0
      %1090 = vmatpush1.bf16.msra.mxu0 0
      %1091 = vmatprep.mubr.bf16.mxu0 0
      %1092 = vmatmul.mubr.bf16.gmra.mrb[0].mxu0 %v1012
      %v1093 = vpop.f32.mrb[0].mxu0
      %v1094 = vadd.f32 %v793, %v1093
      %v1095 = vpop.f32.mrb[0].mxu0
      %v1096 = vpop.f32.mrb[0].mxu0
      %v1097 = vadd.f32 %v796, %v1096
      %v1098 = vpop.f32.mrb[0].mxu0
      %1099 = vmatprep.mubr.bf16.mxu0 0
      %1100 = vmatmul.mubr.bf16.gmra.mrb[0].mxu0 %v1015
      %v1101 = vpop.f32.mrb[0].mxu0
      %v1102 = vadd.f32 %v801, %v1101
      %v1103 = vpop.f32.mrb[0].mxu0
      %v1104 = vpop.f32.mrb[0].mxu0
      %v1105 = vadd.f32 %v804, %v1104
      %v1106 = vpop.f32.mrb[0].mxu0
      %1107 = vmatprep.mubr.bf16.mxu0 0
      %1108 = vmatmul.mubr.bf16.gmra.mrb[0].mxu0 %v1018
      %v1109 = vpop.f32.mrb[0].mxu0
      %v1110 = vadd.f32 %v809, %v1109
      %v1111 = vpop.f32.mrb[0].mxu0
      %v1112 = vpop.f32.mrb[0].mxu0
      %v1113 = vadd.f32 %v812, %v1112
      %v1114 = vpop.f32.mrb[0].mxu0
      %1115 = vmatprep.mubr.bf16.mxu0 0
      %1116 = vmatmul.mubr.bf16.gmra.mrb[0].mxu0 %v1021
      %v1117 = vpop.f32.mrb[0].mxu0
      %v1118 = vadd.f32 %v817, %v1117
      %v1119 = vpop.f32.mrb[0].mxu0
      %v1120 = vpop.f32.mrb[0].mxu0
      %v1121 = vadd.f32 %v820, %v1120
      %v1122 = vpop.f32.mrb[0].mxu0
      %1123 = vmatprep.mubr.bf16.mxu0 0
      %1124 = vmatmul.mubr.bf16.gmra.mrb[0].mxu0 %v1024
      %v1125 = vpop.f32.mrb[0].mxu0
      %v1126 = vadd.f32 %v825, %v1125
      %v1127 = vpop.f32.mrb[0].mxu0
      %v1128 = vpop.f32.mrb[0].mxu0
      %v1129 = vadd.f32 %v828, %v1128
      %v1130 = vpop.f32.mrb[0].mxu0
      %1131 = vmatprep.mubr.bf16.mxu0 0
      %1132 = vmatmul.mubr.bf16.gmra.mrb[0].mxu0 %v1027
      %v1133 = vpop.f32.mrb[0].mxu0
      %v1134 = vadd.f32 %v833, %v1133
      %v1135 = vpop.f32.mrb[0].mxu0
      %v1136 = vpop.f32.mrb[0].mxu0
      %v1137 = vadd.f32 %v836, %v1136
      %v1138 = vpop.f32.mrb[0].mxu0
      %1139 = vmatprep.mubr.bf16.mxu0 0
      %1140 = vmatmul.mubr.bf16.gmra.mrb[0].mxu0 %v1030
      %v1141 = vpop.f32.mrb[0].mxu0
      %v1142 = vadd.f32 %v841, %v1141
      %v1143 = vpop.f32.mrb[0].mxu0
      %v1144 = vpop.f32.mrb[0].mxu0
      %v1145 = vadd.f32 %v844, %v1144
      %v1146 = vpop.f32.mrb[0].mxu0
      %1147 = vmatprep.mubr.bf16.mxu0 0
      %1148 = vmatmul.mubr.bf16.gmra.mrb[0].mxu0 %v1033
      %v1149 = vpop.f32.mrb[0].mxu0
      %v1150 = vadd.f32 %v849, %v1149
      %v1151 = vpop.f32.mrb[0].mxu0
      %v1152 = vpop.f32.mrb[0].mxu0
      %v1153 = vadd.f32 %v852, %v1152
      %v1154 = vpop.f32.mrb[0].mxu0
      %1155 = vmatprep.mubr.bf16.mxu0 0
      %1156 = vmatmul.mubr.bf16.gmra.mrb[0].mxu0 %v1036
      %v1157 = vpop.f32.mrb[0].mxu0
      %v1158 = vadd.f32 %v857, %v1157
      %v1159 = vpop.f32.mrb[0].mxu0
      %v1160 = vpop.f32.mrb[0].mxu0
      %v1161 = vadd.f32 %v860, %v1160
      %v1162 = vpop.f32.mrb[0].mxu0
      %1163 = vmatprep.mubr.bf16.mxu0 0
      %1164 = vmatmul.mubr.bf16.gmra.mrb[0].mxu0 %v1039
      %v1165 = vpop.f32.mrb[0].mxu0
      %v1166 = vadd.f32 %v865, %v1165
      %v1167 = vpop.f32.mrb[0].mxu0
      %v1168 = vpop.f32.mrb[0].mxu0
      %v1169 = vadd.f32 %v868, %v1168
      %v1170 = vpop.f32.mrb[0].mxu0
      %1171 = vmatprep.mubr.bf16.mxu0 0
      %1172 = vmatmul.mubr.bf16.gmra.mrb[0].mxu0 %v1042
      %v1173 = vpop.f32.mrb[0].mxu0
      %v1174 = vadd.f32 %v873, %v1173
      %v1175 = vpop.f32.mrb[0].mxu0
      %v1176 = vpop.f32.mrb[0].mxu0
      %v1177 = vadd.f32 %v876, %v1176
      %v1178 = vpop.f32.mrb[0].mxu0
      %1179 = vmatprep.mubr.bf16.mxu0 0
      %1180 = vmatmul.mubr.bf16.gmra.mrb[0].mxu0 %v1045
      %v1181 = vpop.f32.mrb[0].mxu0
      %v1182 = vadd.f32 %v881, %v1181
      %v1183 = vpop.f32.mrb[0].mxu0
      %v1184 = vpop.f32.mrb[0].mxu0
      %v1185 = vadd.f32 %v884, %v1184
      %v1186 = vpop.f32.mrb[0].mxu0
      %1187 = vmatprep.mubr.bf16.mxu0 0
      %1188 = vmatmul.mubr.bf16.gmra.mrb[0].mxu0 %v1048
      %v1189 = vpop.f32.mrb[0].mxu0
      %v1190 = vadd.f32 %v889, %v1189
      %v1191 = vpop.f32.mrb[0].mxu0
      %v1192 = vpop.f32.mrb[0].mxu0
      %v1193 = vadd.f32 %v892, %v1192
      %v1194 = vpop.f32.mrb[0].mxu0
      %1195 = vmatprep.mubr.bf16.mxu0 0
      %1196 = vmatmul.mubr.bf16.gmra.mrb[0].mxu0 %v1051
      %v1197 = vpop.f32.mrb[0].mxu0
      %v1198 = vadd.f32 %v897, %v1197
      %v1199 = vpop.f32.mrb[0].mxu0
      %v1200 = vpop.f32.mrb[0].mxu0
      %v1201 = vadd.f32 %v900, %v1200
      %v1202 = vpop.f32.mrb[0].mxu0
      %1203 = vmatprep.mubr.bf16.mxu0 0
      %1204 = vmatmul.mubr.bf16.gmra.mrb[0].mxu0 %v1054
      %v1205 = vpop.f32.mrb[0].mxu0
      %v1206 = vadd.f32 %v905, %v1205
      %v1207 = vpop.f32.mrb[0].mxu0
      %v1208 = vpop.f32.mrb[0].mxu0
      %v1209 = vadd.f32 %v908, %v1208
      %v1210 = vpop.f32.mrb[0].mxu0
      %1211 = vmatprep.mubr.bf16.mxu0 0
      %1212 = vmatmul.mubr.bf16.gmra.mrb[0].mxu0 %v1057
      %v1213 = vpop.f32.mrb[0].mxu0
      %v1214 = vadd.f32 %v913, %v1213
      %v1215 = vpop.f32.mrb[0].mxu0
      %v1216 = vpop.f32.mrb[0].mxu0
      %v1217 = vadd.f32 %v916, %v1216
      %v1218 = vpop.f32.mrb[0].mxu0
      %1219 = vdwg.mxu0
      %v1220 = vld [vmem:[%s196] sm:$0xe]
      %v1221 = vld [vmem:[%s196 + $0xc] sm:$0xe]
      %v1222 = vld [vmem:[%s196 + $0x18] sm:$0xe]
      %v1223 = vld [vmem:[%s196 + $0x24] sm:$0xe]
      %v1224 = vld [vmem:[%s196 + $0x30] sm:$0xe]
      %v1225 = vld [vmem:[%s196 + $0x3c] sm:$0xe]
      %v1226 = vld [vmem:[%s196 + $0x48] sm:$0xe]
      %v1227 = vld [vmem:[%s196 + $0x54] sm:$0xe]
      %v1228 = vld [vmem:[%s196 + $0x60] sm:$0xe]
      %v1229 = vld [vmem:[%s196 + $0x6c] sm:$0xe]
      %v1230 = vld [vmem:[%s196 + $0x78] sm:$0xe]
      %v1231 = vld [vmem:[%s196 + $0x84] sm:$0xe]
      %v1232 = vld [vmem:[%s196 + $0x90] sm:$0xe]
      %v1233 = vld [vmem:[%s196 + $0x9c] sm:$0xe]
      %v1234 = vld [vmem:[%s196 + $0xa8] sm:$0xe]
      %v1235 = vld [vmem:[%s196 + $0xb4] sm:$0xe]
      %vm1268 = vcmask 1042432
      %vm1269 = vcmask 1046532
      %vm1270 = vmor %vm1268, %vm1269
      %v1271 = vrot.slane %v1220, 5
      %v1272 = vrot.slane %v1271, 4
      %v1273 = vrot.slane %v206, 5
      %v1274 = vsel %vm1270, %v1272, %v1273
      %v1275 = vrot.slane %v1273, 4
      %v1276 = vrot.slane %v241, 5
      %v1277 = vsel %vm1270, %v1275, %v1276
      %v1278 = vrot.slane %v1221, 5
      %v1279 = vrot.slane %v1278, 4
      %v1280 = vrot.slane %v208, 5
      %v1281 = vsel %vm1270, %v1279, %v1280
      %v1282 = vrot.slane %v1280, 4
      %v1283 = vrot.slane %v242, 5
      %v1284 = vsel %vm1270, %v1282, %v1283
      %v1285 = vrot.slane %v1222, 5
      %v1286 = vrot.slane %v1285, 4
      %v1287 = vrot.slane %v210, 5
      %v1288 = vsel %vm1270, %v1286, %v1287
      %v1289 = vrot.slane %v1287, 4
      %v1290 = vrot.slane %v243, 5
      %v1291 = vsel %vm1270, %v1289, %v1290
      %v1292 = vrot.slane %v1223, 5
      %v1293 = vrot.slane %v1292, 4
      %v1294 = vrot.slane %v212, 5
      %v1295 = vsel %vm1270, %v1293, %v1294
      %v1296 = vrot.slane %v1294, 4
      %v1297 = vrot.slane %v244, 5
      %v1298 = vsel %vm1270, %v1296, %v1297
      %v1299 = vrot.slane %v1224, 5
      %v1300 = vrot.slane %v1299, 4
      %v1301 = vrot.slane %v214, 5
      %v1302 = vsel %vm1270, %v1300, %v1301
      %v1303 = vrot.slane %v1301, 4
      %v1304 = vrot.slane %v245, 5
      %v1305 = vsel %vm1270, %v1303, %v1304
      %v1306 = vrot.slane %v1225, 5
      %v1307 = vrot.slane %v1306, 4
      %v1308 = vrot.slane %v216, 5
      %v1309 = vsel %vm1270, %v1307, %v1308
      %v1310 = vrot.slane %v1308, 4
      %v1311 = vrot.slane %v246, 5
      %v1312 = vsel %vm1270, %v1310, %v1311
      %v1313 = vrot.slane %v1226, 5
      %v1314 = vrot.slane %v1313, 4
      %v1315 = vrot.slane %v218, 5
      %v1316 = vsel %vm1270, %v1314, %v1315
      %v1317 = vrot.slane %v1315, 4
      %v1318 = vrot.slane %v247, 5
      %v1319 = vsel %vm1270, %v1317, %v1318
      %v1320 = vrot.slane %v1227, 5
      %v1321 = vrot.slane %v1320, 4
      %v1322 = vrot.slane %v220, 5
      %v1323 = vsel %vm1270, %v1321, %v1322
      %v1324 = vrot.slane %v1322, 4
      %v1325 = vrot.slane %v248, 5
      %v1326 = vsel %vm1270, %v1324, %v1325
      %v1327 = vrot.slane %v1228, 5
      %v1328 = vrot.slane %v1327, 4
      %v1329 = vrot.slane %v222, 5
      %v1330 = vsel %vm1270, %v1328, %v1329
      %v1331 = vrot.slane %v1329, 4
      %v1332 = vrot.slane %v249, 5
      %v1333 = vsel %vm1270, %v1331, %v1332
      %v1334 = vrot.slane %v1229, 5
      %v1335 = vrot.slane %v1334, 4
      %v1336 = vrot.slane %v224, 5
      %v1337 = vsel %vm1270, %v1335, %v1336
      %v1338 = vrot.slane %v1336, 4
      %v1339 = vrot.slane %v250, 5
      %v1340 = vsel %vm1270, %v1338, %v1339
      %v1341 = vrot.slane %v1230, 5
      %v1342 = vrot.slane %v1341, 4
      %v1343 = vrot.slane %v226, 5
      %v1344 = vsel %vm1270, %v1342, %v1343
      %v1345 = vrot.slane %v1343, 4
      %v1346 = vrot.slane %v251, 5
      %v1347 = vsel %vm1270, %v1345, %v1346
      %v1348 = vrot.slane %v1231, 5
      %v1349 = vrot.slane %v1348, 4
      %v1350 = vrot.slane %v228, 5
      %v1351 = vsel %vm1270, %v1349, %v1350
      %v1352 = vrot.slane %v1350, 4
      %v1353 = vrot.slane %v252, 5
      %v1354 = vsel %vm1270, %v1352, %v1353
      %v1355 = vrot.slane %v1232, 5
      %v1356 = vrot.slane %v1355, 4
      %v1357 = vrot.slane %v230, 5
      %v1358 = vsel %vm1270, %v1356, %v1357
      %v1359 = vrot.slane %v1357, 4
      %v1360 = vrot.slane %v253, 5
      %v1361 = vsel %vm1270, %v1359, %v1360
      %v1362 = vrot.slane %v1233, 5
      %v1363 = vrot.slane %v1362, 4
      %v1364 = vrot.slane %v232, 5
      %v1365 = vsel %vm1270, %v1363, %v1364
      %v1366 = vrot.slane %v1364, 4
      %v1367 = vrot.slane %v254, 5
      %v1368 = vsel %vm1270, %v1366, %v1367
      %v1369 = vrot.slane %v1234, 5
      %v1370 = vrot.slane %v1369, 4
      %v1371 = vrot.slane %v234, 5
      %v1372 = vsel %vm1270, %v1370, %v1371
      %v1373 = vrot.slane %v1371, 4
      %v1374 = vrot.slane %v255, 5
      %v1375 = vsel %vm1270, %v1373, %v1374
      %v1376 = vrot.slane %v1235, 5
      %v1377 = vrot.slane %v1376, 4
      %v1378 = vrot.slane %v236, 5
      %v1379 = vsel %vm1270, %v1377, %v1378
      %v1380 = vrot.slane %v1378, 4
      %v1381 = vrot.slane %v256, 5
      %v1382 = vsel %vm1270, %v1380, %v1381
      %s1383 = scalar_lea.vmem %s1, 32
      %v1384 = vld [vmem:[%s1383] sm:$0xf]
      %v1385 = vld [vmem:[%s1383 + $0x4] sm:$0xf]
      %v1386 = vld [vmem:[%s1383 + $0x8] sm:$0xf]
      %v1387 = vld [vmem:[%s1383 + $0xc] sm:$0xf]
      %v1388 = vunpack.c.l.b16 %v1274
      %v1389 = vunpack.c.l.b16 %v1277
      %v1390 = vunpack.c.l.b16 %v1281
      %v1391 = vunpack.c.l.b16 %v1284
      %v1392 = vunpack.c.l.b16 %v1288
      %v1393 = vunpack.c.l.b16 %v1291
      %v1394 = vunpack.c.l.b16 %v1295
      %v1395 = vunpack.c.l.b16 %v1298
      %v1396 = vunpack.c.l.b16 %v1302
      %v1397 = vunpack.c.l.b16 %v1305
      %v1398 = vunpack.c.l.b16 %v1309
      %v1399 = vunpack.c.l.b16 %v1312
      %v1400 = vunpack.c.l.b16 %v1316
      %v1401 = vunpack.c.l.b16 %v1319
      %v1402 = vunpack.c.l.b16 %v1323
      %v1403 = vunpack.c.l.b16 %v1326
      %v1404 = vunpack.c.l.b16 %v1330
      %v1405 = vunpack.c.l.b16 %v1333
      %v1406 = vunpack.c.l.b16 %v1337
      %v1407 = vunpack.c.l.b16 %v1340
      %v1408 = vunpack.c.l.b16 %v1344
      %v1409 = vunpack.c.l.b16 %v1347
      %v1410 = vunpack.c.l.b16 %v1351
      %v1411 = vunpack.c.l.b16 %v1354
      %v1412 = vunpack.c.l.b16 %v1358
      %v1413 = vunpack.c.l.b16 %v1361
      %v1414 = vunpack.c.l.b16 %v1365
      %v1415 = vunpack.c.l.b16 %v1368
      %v1416 = vunpack.c.l.b16 %v1372
      %v1417 = vunpack.c.l.b16 %v1375
      %v1418 = vunpack.c.l.b16 %v1379
      %v1419 = vunpack.c.l.b16 %v1382
      %v1420 = vpack.c.b16 %v1389, %v1388
      %v1421 = vpack.c.b16 %v1391, %v1390
      %v1422 = vpack.c.b16 %v1393, %v1392
      %v1423 = vpack.c.b16 %v1395, %v1394
      %v1424 = vpack.c.b16 %v1397, %v1396
      %v1425 = vpack.c.b16 %v1399, %v1398
      %v1426 = vpack.c.b16 %v1401, %v1400
      %v1427 = vpack.c.b16 %v1403, %v1402
      %v1428 = vpack.c.b16 %v1405, %v1404
      %v1429 = vpack.c.b16 %v1407, %v1406
      %v1430 = vpack.c.b16 %v1409, %v1408
      %v1431 = vpack.c.b16 %v1411, %v1410
      %v1432 = vpack.c.b16 %v1413, %v1412
      %v1433 = vpack.c.b16 %v1415, %v1414
      %v1434 = vpack.c.b16 %v1417, %v1416
      %v1435 = vpack.c.b16 %v1419, %v1418
      %v1440 = vunpack.c.l.b16 %v1384
      %v1441 = vunpack.c.l.b16 %v1385
      %v1442 = vunpack.c.l.b16 %v1386
      %v1443 = vunpack.c.l.b16 %v1387
      %v1444 = vpack.c.b16 %v1441, %v1440
      %v1445 = vpack.c.b16 %v1443, %v1442
      %v1449 = vsel %vm709, %v1420, 0
      %v1452 = vsel %vm709, %v1421, 0
      %v1455 = vsel %vm709, %v1422, 0
      %v1458 = vsel %vm709, %v1423, 0
      %v1461 = vsel %vm709, %v1424, 0
      %v1464 = vsel %vm709, %v1425, 0
      %v1467 = vsel %vm709, %v1426, 0
      %v1470 = vsel %vm709, %v1427, 0
      %v1473 = vsel %vm709, %v1428, 0
      %v1476 = vsel %vm709, %v1429, 0
      %v1479 = vsel %vm709, %v1430, 0
      %v1482 = vsel %vm709, %v1431, 0
      %v1485 = vsel %vm709, %v1432, 0
      %v1488 = vsel %vm709, %v1433, 0
      %v1491 = vsel %vm709, %v1434, 0
      %v1494 = vsel %vm709, %v1435, 0
      %1496 = vmatprep.subr.bf16.mxu0 0
      %1497 = vmatpush1.bf16.msra.mxu0 %v1444
      %1498 = vmatprep.subr.bf16.mxu0 0
      %1499 = vmatpush1.bf16.msra.mxu0 %v1445
      %1500 = vmatprep.subr.bf16.mxu0 0
      %1501 = vmatpush1.bf16.msra.mxu0 0
      %1502 = vmatprep.subr.bf16.mxu0 0
      %1503 = vmatpush1.bf16.msra.mxu0 0
      %1504 = vmatprep.subr.bf16.mxu0 0
      %1505 = vmatpush1.bf16.msra.mxu0 0
      %1506 = vmatprep.subr.bf16.mxu0 0
      %1507 = vmatpush1.bf16.msra.mxu0 0
      %1508 = vmatprep.subr.bf16.mxu0 0
      %1509 = vmatpush1.bf16.msra.mxu0 0
      %1510 = vmatprep.subr.bf16.mxu0 0
      %1511 = vmatpush1.bf16.msra.mxu0 0
      %1512 = vmatprep.subr.bf16.mxu0 0
      %1513 = vmatpush1.bf16.msra.mxu0 0
      %1514 = vmatprep.subr.bf16.mxu0 0
      %1515 = vmatpush1.bf16.msra.mxu0 0
      %1516 = vmatprep.subr.bf16.mxu0 0
      %1517 = vmatpush1.bf16.msra.mxu0 0
      %1518 = vmatprep.subr.bf16.mxu0 0
      %1519 = vmatpush1.bf16.msra.mxu0 0
      %1520 = vmatprep.subr.bf16.mxu0 0
      %1521 = vmatpush1.bf16.msra.mxu0 0
      %1522 = vmatprep.subr.bf16.mxu0 0
      %1523 = vmatpush1.bf16.msra.mxu0 0
      %1524 = vmatprep.subr.bf16.mxu0 0
      %1525 = vmatpush1.bf16.msra.mxu0 0
      %1526 = vmatprep.subr.bf16.mxu0 0
      %1527 = vmatpush1.bf16.msra.mxu0 0
      %1528 = vmatprep.mubr.bf16.mxu0 0
      %1529 = vmatmul.mubr.bf16.gmra.mrb[0].mxu0 %v1449
      %v1530 = vpop.f32.mrb[0].mxu0
      %v1531 = vadd.f32 0.0, %v1530
      %v1532 = vpop.f32.mrb[0].mxu0
      %v1533 = vpop.f32.mrb[0].mxu0
      %v1534 = vadd.f32 0.0, %v1533
      %v1535 = vpop.f32.mrb[0].mxu0
      %1536 = vmatprep.mubr.bf16.mxu0 0
      %1537 = vmatmul.mubr.bf16.gmra.mrb[0].mxu0 %v1452
      %v1538 = vpop.f32.mrb[0].mxu0
      %v1539 = vadd.f32 0.0, %v1538
      %v1540 = vpop.f32.mrb[0].mxu0
      %v1541 = vpop.f32.mrb[0].mxu0
      %v1542 = vadd.f32 0.0, %v1541
      %v1543 = vpop.f32.mrb[0].mxu0
      %1544 = vmatprep.mubr.bf16.mxu0 0
      %1545 = vmatmul.mubr.bf16.gmra.mrb[0].mxu0 %v1455
      %v1546 = vpop.f32.mrb[0].mxu0
      %v1547 = vadd.f32 0.0, %v1546
      %v1548 = vpop.f32.mrb[0].mxu0
      %v1549 = vpop.f32.mrb[0].mxu0
      %v1550 = vadd.f32 0.0, %v1549
      %v1551 = vpop.f32.mrb[0].mxu0
      %1552 = vmatprep.mubr.bf16.mxu0 0
      %1553 = vmatmul.mubr.bf16.gmra.mrb[0].mxu0 %v1458
      %v1554 = vpop.f32.mrb[0].mxu0
      %v1555 = vadd.f32 0.0, %v1554
      %v1556 = vpop.f32.mrb[0].mxu0
      %v1557 = vpop.f32.mrb[0].mxu0
      %v1558 = vadd.f32 0.0, %v1557
      %v1559 = vpop.f32.mrb[0].mxu0
      %1560 = vmatprep.mubr.bf16.mxu0 0
      %1561 = vmatmul.mubr.bf16.gmra.mrb[0].mxu0 %v1461
      %v1562 = vpop.f32.mrb[0].mxu0
      %v1563 = vadd.f32 0.0, %v1562
      %v1564 = vpop.f32.mrb[0].mxu0
      %v1565 = vpop.f32.mrb[0].mxu0
      %v1566 = vadd.f32 0.0, %v1565
      %v1567 = vpop.f32.mrb[0].mxu0
      %1568 = vmatprep.mubr.bf16.mxu0 0
      %1569 = vmatmul.mubr.bf16.gmra.mrb[0].mxu0 %v1464
      %v1570 = vpop.f32.mrb[0].mxu0
      %v1571 = vadd.f32 0.0, %v1570
      %v1572 = vpop.f32.mrb[0].mxu0
      %v1573 = vpop.f32.mrb[0].mxu0
      %v1574 = vadd.f32 0.0, %v1573
      %v1575 = vpop.f32.mrb[0].mxu0
      %1576 = vmatprep.mubr.bf16.mxu0 0
      %1577 = vmatmul.mubr.bf16.gmra.mrb[0].mxu0 %v1467
      %v1578 = vpop.f32.mrb[0].mxu0
      %v1579 = vadd.f32 0.0, %v1578
      %v1580 = vpop.f32.mrb[0].mxu0
      %v1581 = vpop.f32.mrb[0].mxu0
      %v1582 = vadd.f32 0.0, %v1581
      %v1583 = vpop.f32.mrb[0].mxu0
      %1584 = vmatprep.mubr.bf16.mxu0 0
      %1585 = vmatmul.mubr.bf16.gmra.mrb[0].mxu0 %v1470
      %v1586 = vpop.f32.mrb[0].mxu0
      %v1587 = vadd.f32 0.0, %v1586
      %v1588 = vpop.f32.mrb[0].mxu0
      %v1589 = vpop.f32.mrb[0].mxu0
      %v1590 = vadd.f32 0.0, %v1589
      %v1591 = vpop.f32.mrb[0].mxu0
      %1592 = vmatprep.mubr.bf16.mxu0 0
      %1593 = vmatmul.mubr.bf16.gmra.mrb[0].mxu0 %v1473
      %v1594 = vpop.f32.mrb[0].mxu0
      %v1595 = vadd.f32 0.0, %v1594
      %v1596 = vpop.f32.mrb[0].mxu0
      %v1597 = vpop.f32.mrb[0].mxu0
      %v1598 = vadd.f32 0.0, %v1597
      %v1599 = vpop.f32.mrb[0].mxu0
      %1600 = vmatprep.mubr.bf16.mxu0 0
      %1601 = vmatmul.mubr.bf16.gmra.mrb[0].mxu0 %v1476
      %v1602 = vpop.f32.mrb[0].mxu0
      %v1603 = vadd.f32 0.0, %v1602
      %v1604 = vpop.f32.mrb[0].mxu0
      %v1605 = vpop.f32.mrb[0].mxu0
      %v1606 = vadd.f32 0.0, %v1605
      %v1607 = vpop.f32.mrb[0].mxu0
      %1608 = vmatprep.mubr.bf16.mxu0 0
      %1609 = vmatmul.mubr.bf16.gmra.mrb[0].mxu0 %v1479
      %v1610 = vpop.f32.mrb[0].mxu0
      %v1611 = vadd.f32 0.0, %v1610
      %v1612 = vpop.f32.mrb[0].mxu0
      %v1613 = vpop.f32.mrb[0].mxu0
      %v1614 = vadd.f32 0.0, %v1613
      %v1615 = vpop.f32.mrb[0].mxu0
      %1616 = vmatprep.mubr.bf16.mxu0 0
      %1617 = vmatmul.mubr.bf16.gmra.mrb[0].mxu0 %v1482
      %v1618 = vpop.f32.mrb[0].mxu0
      %v1619 = vadd.f32 0.0, %v1618
      %v1620 = vpop.f32.mrb[0].mxu0
      %v1621 = vpop.f32.mrb[0].mxu0
      %v1622 = vadd.f32 0.0, %v1621
      %v1623 = vpop.f32.mrb[0].mxu0
      %1624 = vmatprep.mubr.bf16.mxu0 0
      %1625 = vmatmul.mubr.bf16.gmra.mrb[0].mxu0 %v1485
      %v1626 = vpop.f32.mrb[0].mxu0
      %v1627 = vadd.f32 0.0, %v1626
      %v1628 = vpop.f32.mrb[0].mxu0
      %v1629 = vpop.f32.mrb[0].mxu0
      %v1630 = vadd.f32 0.0, %v1629
      %v1631 = vpop.f32.mrb[0].mxu0
      %1632 = vmatprep.mubr.bf16.mxu0 0
      %1633 = vmatmul.mubr.bf16.gmra.mrb[0].mxu0 %v1488
      %v1634 = vpop.f32.mrb[0].mxu0
      %v1635 = vadd.f32 0.0, %v1634
      %v1636 = vpop.f32.mrb[0].mxu0
      %v1637 = vpop.f32.mrb[0].mxu0
      %v1638 = vadd.f32 0.0, %v1637
      %v1639 = vpop.f32.mrb[0].mxu0
      %1640 = vmatprep.mubr.bf16.mxu0 0
      %1641 = vmatmul.mubr.bf16.gmra.mrb[0].mxu0 %v1491
      %v1642 = vpop.f32.mrb[0].mxu0
      %v1643 = vadd.f32 0.0, %v1642
      %v1644 = vpop.f32.mrb[0].mxu0
      %v1645 = vpop.f32.mrb[0].mxu0
      %v1646 = vadd.f32 0.0, %v1645
      %v1647 = vpop.f32.mrb[0].mxu0
      %1648 = vmatprep.mubr.bf16.mxu0 0
      %1649 = vmatmul.mubr.bf16.gmra.mrb[0].mxu0 %v1494
      %v1650 = vpop.f32.mrb[0].mxu0
      %v1651 = vadd.f32 0.0, %v1650
      %v1652 = vpop.f32.mrb[0].mxu0
      %v1653 = vpop.f32.mrb[0].mxu0
      %v1654 = vadd.f32 0.0, %v1653
      %v1655 = vpop.f32.mrb[0].mxu0
      %1656 = vdwg.mxu0
      %v1657 = vadd.f32 %v1094, %v1531
      %v1658 = vadd.f32 %v1097, %v1534
      %v1659 = vadd.f32 %v1102, %v1539
      %v1660 = vadd.f32 %v1105, %v1542
      %v1661 = vadd.f32 %v1110, %v1547
      %v1662 = vadd.f32 %v1113, %v1550
      %v1663 = vadd.f32 %v1118, %v1555
      %v1664 = vadd.f32 %v1121, %v1558
      %v1665 = vadd.f32 %v1126, %v1563
      %v1666 = vadd.f32 %v1129, %v1566
      %v1667 = vadd.f32 %v1134, %v1571
      %v1668 = vadd.f32 %v1137, %v1574
      %v1669 = vadd.f32 %v1142, %v1579
      %v1670 = vadd.f32 %v1145, %v1582
      %v1671 = vadd.f32 %v1150, %v1587
      %v1672 = vadd.f32 %v1153, %v1590
      %v1673 = vadd.f32 %v1158, %v1595
      %v1674 = vadd.f32 %v1161, %v1598
      %v1675 = vadd.f32 %v1166, %v1603
      %v1676 = vadd.f32 %v1169, %v1606
      %v1677 = vadd.f32 %v1174, %v1611
      %v1678 = vadd.f32 %v1177, %v1614
      %v1679 = vadd.f32 %v1182, %v1619
      %v1680 = vadd.f32 %v1185, %v1622
      %v1681 = vadd.f32 %v1190, %v1627
      %v1682 = vadd.f32 %v1193, %v1630
      %v1683 = vadd.f32 %v1198, %v1635
      %v1684 = vadd.f32 %v1201, %v1638
      %v1685 = vadd.f32 %v1206, %v1643
      %v1686 = vadd.f32 %v1209, %v1646
      %v1687 = vadd.f32 %v1214, %v1651
      %v1688 = vadd.f32 %v1217, %v1654
      %s1689 = scalar_lea.vmem %s196, 12
      %v1690 = vld [vmem:[%s1689] sm:$0xf]
      %v1691 = vld [vmem:[%s1689 + $0x4] sm:$0xf]
      %v1692 = vld [vmem:[%s1689 + $0xc] sm:$0xf]
      %v1693 = vld [vmem:[%s1689 + $0x10] sm:$0xf]
      %v1694 = vld [vmem:[%s1689 + $0x18] sm:$0xf]
      %v1695 = vld [vmem:[%s1689 + $0x1c] sm:$0xf]
      %v1696 = vld [vmem:[%s1689 + $0x24] sm:$0xf]
      %v1697 = vld [vmem:[%s1689 + $0x28] sm:$0xf]
      %v1698 = vld [vmem:[%s1689 + $0x30] sm:$0xf]
      %v1699 = vld [vmem:[%s1689 + $0x34] sm:$0xf]
      %v1700 = vld [vmem:[%s1689 + $0x3c] sm:$0xf]
      %v1701 = vld [vmem:[%s1689 + $0x40] sm:$0xf]
      %v1702 = vld [vmem:[%s1689 + $0x48] sm:$0xf]
      %v1703 = vld [vmem:[%s1689 + $0x4c] sm:$0xf]
      %v1704 = vld [vmem:[%s1689 + $0x54] sm:$0xf]
      %v1705 = vld [vmem:[%s1689 + $0x58] sm:$0xf]
      %v1706 = vld [vmem:[%s1689 + $0x60] sm:$0xf]
      %v1707 = vld [vmem:[%s1689 + $0x64] sm:$0xf]
      %v1708 = vld [vmem:[%s1689 + $0x6c] sm:$0xf]
      %v1709 = vld [vmem:[%s1689 + $0x70] sm:$0xf]
      %v1710 = vld [vmem:[%s1689 + $0x78] sm:$0xf]
      %v1711 = vld [vmem:[%s1689 + $0x7c] sm:$0xf]
      %v1712 = vld [vmem:[%s1689 + $0x84] sm:$0xf]
      %v1713 = vld [vmem:[%s1689 + $0x88] sm:$0xf]
      %v1714 = vld [vmem:[%s1689 + $0x90] sm:$0xf]
      %v1715 = vld [vmem:[%s1689 + $0x94] sm:$0xf]
      %v1716 = vld [vmem:[%s1689 + $0x9c] sm:$0xf]
      %v1717 = vld [vmem:[%s1689 + $0xa0] sm:$0xf]
      %v1718 = vld [vmem:[%s1689 + $0xa8] sm:$0xf]
      %v1719 = vld [vmem:[%s1689 + $0xac] sm:$0xf]
      %v1720 = vld [vmem:[%s1689 + $0xb4] sm:$0xf]
      %v1721 = vld [vmem:[%s1689 + $0xb8] sm:$0xf]
      %s1722 = scalar_lea.vmem %s1, 48
      %v1723 = vld [vmem:[%s1722] sm:$0xf]
      %v1724 = vld [vmem:[%s1722 + $0x4] sm:$0xf]
      %v1725 = vld [vmem:[%s1722 + $0x8] sm:$0xf]
      %v1726 = vld [vmem:[%s1722 + $0xc] sm:$0xf]
      %v1759 = vunpack.c.l.b16 %v1690
      %v1760 = vunpack.c.l.b16 %v1691
      %v1761 = vunpack.c.l.b16 %v1692
      %v1762 = vunpack.c.l.b16 %v1693
      %v1763 = vunpack.c.l.b16 %v1694
      %v1764 = vunpack.c.l.b16 %v1695
      %v1765 = vunpack.c.l.b16 %v1696
      %v1766 = vunpack.c.l.b16 %v1697
      %v1767 = vunpack.c.l.b16 %v1698
      %v1768 = vunpack.c.l.b16 %v1699
      %v1769 = vunpack.c.l.b16 %v1700
      %v1770 = vunpack.c.l.b16 %v1701
      %v1771 = vunpack.c.l.b16 %v1702
      %v1772 = vunpack.c.l.b16 %v1703
      %v1773 = vunpack.c.l.b16 %v1704
      %v1774 = vunpack.c.l.b16 %v1705
      %v1775 = vunpack.c.l.b16 %v1706
      %v1776 = vunpack.c.l.b16 %v1707
      %v1777 = vunpack.c.l.b16 %v1708
      %v1778 = vunpack.c.l.b16 %v1709
      %v1779 = vunpack.c.l.b16 %v1710
      %v1780 = vunpack.c.l.b16 %v1711
      %v1781 = vunpack.c.l.b16 %v1712
      %v1782 = vunpack.c.l.b16 %v1713
      %v1783 = vunpack.c.l.b16 %v1714
      %v1784 = vunpack.c.l.b16 %v1715
      %v1785 = vunpack.c.l.b16 %v1716
      %v1786 = vunpack.c.l.b16 %v1717
      %v1787 = vunpack.c.l.b16 %v1718
      %v1788 = vunpack.c.l.b16 %v1719
      %v1789 = vunpack.c.l.b16 %v1720
      %v1790 = vunpack.c.l.b16 %v1721
      %v1791 = vpack.c.b16 %v1760, %v1759
      %v1792 = vpack.c.b16 %v1762, %v1761
      %v1793 = vpack.c.b16 %v1764, %v1763
      %v1794 = vpack.c.b16 %v1766, %v1765
      %v1795 = vpack.c.b16 %v1768, %v1767
      %v1796 = vpack.c.b16 %v1770, %v1769
      %v1797 = vpack.c.b16 %v1772, %v1771
      %v1798 = vpack.c.b16 %v1774, %v1773
      %v1799 = vpack.c.b16 %v1776, %v1775
      %v1800 = vpack.c.b16 %v1778, %v1777
      %v1801 = vpack.c.b16 %v1780, %v1779
      %v1802 = vpack.c.b16 %v1782, %v1781
      %v1803 = vpack.c.b16 %v1784, %v1783
      %v1804 = vpack.c.b16 %v1786, %v1785
      %v1805 = vpack.c.b16 %v1788, %v1787
      %v1806 = vpack.c.b16 %v1790, %v1789
      %v1811 = vunpack.c.l.b16 %v1723
      %v1812 = vunpack.c.l.b16 %v1724
      %v1813 = vunpack.c.l.b16 %v1725
      %v1814 = vunpack.c.l.b16 %v1726
      %v1815 = vpack.c.b16 %v1812, %v1811
      %v1816 = vpack.c.b16 %v1814, %v1813
      %v1820 = vsel %vm709, %v1791, 0
      %v1823 = vsel %vm709, %v1792, 0
      %v1826 = vsel %vm709, %v1793, 0
      %v1829 = vsel %vm709, %v1794, 0
      %v1832 = vsel %vm709, %v1795, 0
      %v1835 = vsel %vm709, %v1796, 0
      %v1838 = vsel %vm709, %v1797, 0
      %v1841 = vsel %vm709, %v1798, 0
      %v1844 = vsel %vm709, %v1799, 0
      %v1847 = vsel %vm709, %v1800, 0
      %v1850 = vsel %vm709, %v1801, 0
      %v1853 = vsel %vm709, %v1802, 0
      %v1856 = vsel %vm709, %v1803, 0
      %v1859 = vsel %vm709, %v1804, 0
      %v1862 = vsel %vm709, %v1805, 0
      %v1865 = vsel %vm709, %v1806, 0
      %1867 = vmatprep.subr.bf16.mxu0 0
      %1868 = vmatpush1.bf16.msra.mxu0 %v1815
      %1869 = vmatprep.subr.bf16.mxu0 0
      %1870 = vmatpush1.bf16.msra.mxu0 %v1816
      %1871 = vmatprep.subr.bf16.mxu0 0
      %1872 = vmatpush1.bf16.msra.mxu0 0
      %1873 = vmatprep.subr.bf16.mxu0 0
      %1874 = vmatpush1.bf16.msra.mxu0 0
      %1875 = vmatprep.subr.bf16.mxu0 0
      %1876 = vmatpush1.bf16.msra.mxu0 0
      %1877 = vmatprep.subr.bf16.mxu0 0
      %1878 = vmatpush1.bf16.msra.mxu0 0
      %1879 = vmatprep.subr.bf16.mxu0 0
      %1880 = vmatpush1.bf16.msra.mxu0 0
      %1881 = vmatprep.subr.bf16.mxu0 0
      %1882 = vmatpush1.bf16.msra.mxu0 0
      %1883 = vmatprep.subr.bf16.mxu0 0
      %1884 = vmatpush1.bf16.msra.mxu0 0
      %1885 = vmatprep.subr.bf16.mxu0 0
      %1886 = vmatpush1.bf16.msra.mxu0 0
      %1887 = vmatprep.subr.bf16.mxu0 0
      %1888 = vmatpush1.bf16.msra.mxu0 0
      %1889 = vmatprep.subr.bf16.mxu0 0
      %1890 = vmatpush1.bf16.msra.mxu0 0
      %1891 = vmatprep.subr.bf16.mxu0 0
      %1892 = vmatpush1.bf16.msra.mxu0 0
      %1893 = vmatprep.subr.bf16.mxu0 0
      %1894 = vmatpush1.bf16.msra.mxu0 0
      %1895 = vmatprep.subr.bf16.mxu0 0
      %1896 = vmatpush1.bf16.msra.mxu0 0
      %1897 = vmatprep.subr.bf16.mxu0 0
      %1898 = vmatpush1.bf16.msra.mxu0 0
      %1899 = vmatprep.mubr.bf16.mxu0 0
      %1900 = vmatmul.mubr.bf16.gmra.mrb[0].mxu0 %v1820
      %v1901 = vpop.f32.mrb[0].mxu0
      %v1902 = vadd.f32 0.0, %v1901
      %v1903 = vpop.f32.mrb[0].mxu0
      %v1904 = vpop.f32.mrb[0].mxu0
      %v1905 = vadd.f32 0.0, %v1904
      %v1906 = vpop.f32.mrb[0].mxu0
      %1907 = vmatprep.mubr.bf16.mxu0 0
      %1908 = vmatmul.mubr.bf16.gmra.mrb[0].mxu0 %v1823
      %v1909 = vpop.f32.mrb[0].mxu0
      %v1910 = vadd.f32 0.0, %v1909
      %v1911 = vpop.f32.mrb[0].mxu0
      %v1912 = vpop.f32.mrb[0].mxu0
      %v1913 = vadd.f32 0.0, %v1912
      %v1914 = vpop.f32.mrb[0].mxu0
      %1915 = vmatprep.mubr.bf16.mxu0 0
      %1916 = vmatmul.mubr.bf16.gmra.mrb[0].mxu0 %v1826
      %v1917 = vpop.f32.mrb[0].mxu0
      %v1918 = vadd.f32 0.0, %v1917
      %v1919 = vpop.f32.mrb[0].mxu0
      %v1920 = vpop.f32.mrb[0].mxu0
      %v1921 = vadd.f32 0.0, %v1920
      %v1922 = vpop.f32.mrb[0].mxu0
      %1923 = vmatprep.mubr.bf16.mxu0 0
      %1924 = vmatmul.mubr.bf16.gmra.mrb[0].mxu0 %v1829
      %v1925 = vpop.f32.mrb[0].mxu0
      %v1926 = vadd.f32 0.0, %v1925
      %v1927 = vpop.f32.mrb[0].mxu0
      %v1928 = vpop.f32.mrb[0].mxu0
      %v1929 = vadd.f32 0.0, %v1928
      %v1930 = vpop.f32.mrb[0].mxu0
      %1931 = vmatprep.mubr.bf16.mxu0 0
      %1932 = vmatmul.mubr.bf16.gmra.mrb[0].mxu0 %v1832
      %v1933 = vpop.f32.mrb[0].mxu0
      %v1934 = vadd.f32 0.0, %v1933
      %v1935 = vpop.f32.mrb[0].mxu0
      %v1936 = vpop.f32.mrb[0].mxu0
      %v1937 = vadd.f32 0.0, %v1936
      %v1938 = vpop.f32.mrb[0].mxu0
      %1939 = vmatprep.mubr.bf16.mxu0 0
      %1940 = vmatmul.mubr.bf16.gmra.mrb[0].mxu0 %v1835
      %v1941 = vpop.f32.mrb[0].mxu0
      %v1942 = vadd.f32 0.0, %v1941
      %v1943 = vpop.f32.mrb[0].mxu0
      %v1944 = vpop.f32.mrb[0].mxu0
      %v1945 = vadd.f32 0.0, %v1944
      %v1946 = vpop.f32.mrb[0].mxu0
      %1947 = vmatprep.mubr.bf16.mxu0 0
      %1948 = vmatmul.mubr.bf16.gmra.mrb[0].mxu0 %v1838
      %v1949 = vpop.f32.mrb[0].mxu0
      %v1950 = vadd.f32 0.0, %v1949
      %v1951 = vpop.f32.mrb[0].mxu0
      %v1952 = vpop.f32.mrb[0].mxu0
      %v1953 = vadd.f32 0.0, %v1952
      %v1954 = vpop.f32.mrb[0].mxu0
      %1955 = vmatprep.mubr.bf16.mxu0 0
      %1956 = vmatmul.mubr.bf16.gmra.mrb[0].mxu0 %v1841
      %v1957 = vpop.f32.mrb[0].mxu0
      %v1958 = vadd.f32 0.0, %v1957
      %v1959 = vpop.f32.mrb[0].mxu0
      %v1960 = vpop.f32.mrb[0].mxu0
      %v1961 = vadd.f32 0.0, %v1960
      %v1962 = vpop.f32.mrb[0].mxu0
      %1963 = vmatprep.mubr.bf16.mxu0 0
      %1964 = vmatmul.mubr.bf16.gmra.mrb[0].mxu0 %v1844
      %v1965 = vpop.f32.mrb[0].mxu0
      %v1966 = vadd.f32 0.0, %v1965
      %v1967 = vpop.f32.mrb[0].mxu0
      %v1968 = vpop.f32.mrb[0].mxu0
      %v1969 = vadd.f32 0.0, %v1968
      %v1970 = vpop.f32.mrb[0].mxu0
      %1971 = vmatprep.mubr.bf16.mxu0 0
      %1972 = vmatmul.mubr.bf16.gmra.mrb[0].mxu0 %v1847
      %v1973 = vpop.f32.mrb[0].mxu0
      %v1974 = vadd.f32 0.0, %v1973
      %v1975 = vpop.f32.mrb[0].mxu0
      %v1976 = vpop.f32.mrb[0].mxu0
      %v1977 = vadd.f32 0.0, %v1976
      %v1978 = vpop.f32.mrb[0].mxu0
      %1979 = vmatprep.mubr.bf16.mxu0 0
      %1980 = vmatmul.mubr.bf16.gmra.mrb[0].mxu0 %v1850
      %v1981 = vpop.f32.mrb[0].mxu0
      %v1982 = vadd.f32 0.0, %v1981
      %v1983 = vpop.f32.mrb[0].mxu0
      %v1984 = vpop.f32.mrb[0].mxu0
      %v1985 = vadd.f32 0.0, %v1984
      %v1986 = vpop.f32.mrb[0].mxu0
      %1987 = vmatprep.mubr.bf16.mxu0 0
      %1988 = vmatmul.mubr.bf16.gmra.mrb[0].mxu0 %v1853
      %v1989 = vpop.f32.mrb[0].mxu0
      %v1990 = vadd.f32 0.0, %v1989
      %v1991 = vpop.f32.mrb[0].mxu0
      %v1992 = vpop.f32.mrb[0].mxu0
      %v1993 = vadd.f32 0.0, %v1992
      %v1994 = vpop.f32.mrb[0].mxu0
      %1995 = vmatprep.mubr.bf16.mxu0 0
      %1996 = vmatmul.mubr.bf16.gmra.mrb[0].mxu0 %v1856
      %v1997 = vpop.f32.mrb[0].mxu0
      %v1998 = vadd.f32 0.0, %v1997
      %v1999 = vpop.f32.mrb[0].mxu0
      %v2000 = vpop.f32.mrb[0].mxu0
      %v2001 = vadd.f32 0.0, %v2000
      %v2002 = vpop.f32.mrb[0].mxu0
      %2003 = vmatprep.mubr.bf16.mxu0 0
      %2004 = vmatmul.mubr.bf16.gmra.mrb[0].mxu0 %v1859
      %v2005 = vpop.f32.mrb[0].mxu0
      %v2006 = vadd.f32 0.0, %v2005
      %v2007 = vpop.f32.mrb[0].mxu0
      %v2008 = vpop.f32.mrb[0].mxu0
      %v2009 = vadd.f32 0.0, %v2008
      %v2010 = vpop.f32.mrb[0].mxu0
      %2011 = vmatprep.mubr.bf16.mxu0 0
      %2012 = vmatmul.mubr.bf16.gmra.mrb[0].mxu0 %v1862
      %v2013 = vpop.f32.mrb[0].mxu0
      %v2014 = vadd.f32 0.0, %v2013
      %v2015 = vpop.f32.mrb[0].mxu0
      %v2016 = vpop.f32.mrb[0].mxu0
      %v2017 = vadd.f32 0.0, %v2016
      %v2018 = vpop.f32.mrb[0].mxu0
      %2019 = vmatprep.mubr.bf16.mxu0 0
      %2020 = vmatmul.mubr.bf16.gmra.mrb[0].mxu0 %v1865
      %v2021 = vpop.f32.mrb[0].mxu0
      %v2022 = vadd.f32 0.0, %v2021
      %v2023 = vpop.f32.mrb[0].mxu0
      %v2024 = vpop.f32.mrb[0].mxu0
      %v2025 = vadd.f32 0.0, %v2024
      %v2026 = vpop.f32.mrb[0].mxu0
      %2027 = vdwg.mxu0
      %v2028 = vadd.f32 %v1657, %v1902
      %v2029 = vadd.f32 %v1658, %v1905
      %v2030 = vadd.f32 %v1659, %v1910
      %v2031 = vadd.f32 %v1660, %v1913
      %v2032 = vadd.f32 %v1661, %v1918
      %v2033 = vadd.f32 %v1662, %v1921
      %v2034 = vadd.f32 %v1663, %v1926
      %v2035 = vadd.f32 %v1664, %v1929
      %v2036 = vadd.f32 %v1665, %v1934
      %v2037 = vadd.f32 %v1666, %v1937
      %v2038 = vadd.f32 %v1667, %v1942
      %v2039 = vadd.f32 %v1668, %v1945
      %v2040 = vadd.f32 %v1669, %v1950
      %v2041 = vadd.f32 %v1670, %v1953
      %v2042 = vadd.f32 %v1671, %v1958
      %v2043 = vadd.f32 %v1672, %v1961
      %v2044 = vadd.f32 %v1673, %v1966
      %v2045 = vadd.f32 %v1674, %v1969
      %v2046 = vadd.f32 %v1675, %v1974
      %v2047 = vadd.f32 %v1676, %v1977
      %v2048 = vadd.f32 %v1677, %v1982
      %v2049 = vadd.f32 %v1678, %v1985
      %v2050 = vadd.f32 %v1679, %v1990
      %v2051 = vadd.f32 %v1680, %v1993
      %v2052 = vadd.f32 %v1681, %v1998
      %v2053 = vadd.f32 %v1682, %v2001
      %v2054 = vadd.f32 %v1683, %v2006
      %v2055 = vadd.f32 %v1684, %v2009
      %v2056 = vadd.f32 %v1685, %v2014
      %v2057 = vadd.f32 %v1686, %v2017
      %v2058 = vadd.f32 %v1687, %v2022
      %v2059 = vadd.f32 %v1688, %v2025
      %v2060 = vld [vmem:[%s1689] sm:$0xf]
      %v2061 = vld [vmem:[%s1689 + $0x4] sm:$0xf]
      %v2062 = vld [vmem:[%s1689 + $0x8] sm:$0x1]
      %v2063 = vld [vmem:[%s1689 + $0xc] sm:$0xf]
      %v2064 = vld [vmem:[%s1689 + $0x10] sm:$0xf]
      %v2065 = vld [vmem:[%s1689 + $0x14] sm:$0x1]
      %v2066 = vld [vmem:[%s1689 + $0x18] sm:$0xf]
      %v2067 = vld [vmem:[%s1689 + $0x1c] sm:$0xf]
      %v2068 = vld [vmem:[%s1689 + $0x20] sm:$0x1]
      %v2069 = vld [vmem:[%s1689 + $0x24] sm:$0xf]
      %v2070 = vld [vmem:[%s1689 + $0x28] sm:$0xf]
      %v2071 = vld [vmem:[%s1689 + $0x2c] sm:$0x1]
      %v2072 = vld [vmem:[%s1689 + $0x30] sm:$0xf]
      %v2073 = vld [vmem:[%s1689 + $0x34] sm:$0xf]
      %v2074 = vld [vmem:[%s1689 + $0x38] sm:$0x1]
      %v2075 = vld [vmem:[%s1689 + $0x3c] sm:$0xf]
      %v2076 = vld [vmem:[%s1689 + $0x40] sm:$0xf]
      %v2077 = vld [vmem:[%s1689 + $0x44] sm:$0x1]
      %v2078 = vld [vmem:[%s1689 + $0x48] sm:$0xf]
      %v2079 = vld [vmem:[%s1689 + $0x4c] sm:$0xf]
      %v2080 = vld [vmem:[%s1689 + $0x50] sm:$0x1]
      %v2081 = vld [vmem:[%s1689 + $0x54] sm:$0xf]
      %v2082 = vld [vmem:[%s1689 + $0x58] sm:$0xf]
      %v2083 = vld [vmem:[%s1689 + $0x5c] sm:$0x1]
      %v2084 = vld [vmem:[%s1689 + $0x60] sm:$0xf]
      %v2085 = vld [vmem:[%s1689 + $0x64] sm:$0xf]
      %v2086 = vld [vmem:[%s1689 + $0x68] sm:$0x1]
      %v2087 = vld [vmem:[%s1689 + $0x6c] sm:$0xf]
      %v2088 = vld [vmem:[%s1689 + $0x70] sm:$0xf]
      %v2089 = vld [vmem:[%s1689 + $0x74] sm:$0x1]
      %v2090 = vld [vmem:[%s1689 + $0x78] sm:$0xf]
      %v2091 = vld [vmem:[%s1689 + $0x7c] sm:$0xf]
      %v2092 = vld [vmem:[%s1689 + $0x80] sm:$0x1]
      %v2093 = vld [vmem:[%s1689 + $0x84] sm:$0xf]
      %v2094 = vld [vmem:[%s1689 + $0x88] sm:$0xf]
      %v2095 = vld [vmem:[%s1689 + $0x8c] sm:$0x1]
      %v2096 = vld [vmem:[%s1689 + $0x90] sm:$0xf]
      %v2097 = vld [vmem:[%s1689 + $0x94] sm:$0xf]
      %v2098 = vld [vmem:[%s1689 + $0x98] sm:$0x1]
      %v2099 = vld [vmem:[%s1689 + $0x9c] sm:$0xf]
      %v2100 = vld [vmem:[%s1689 + $0xa0] sm:$0xf]
      %v2101 = vld [vmem:[%s1689 + $0xa4] sm:$0x1]
      %v2102 = vld [vmem:[%s1689 + $0xa8] sm:$0xf]
      %v2103 = vld [vmem:[%s1689 + $0xac] sm:$0xf]
      %v2104 = vld [vmem:[%s1689 + $0xb0] sm:$0x1]
      %v2105 = vld [vmem:[%s1689 + $0xb4] sm:$0xf]
      %v2106 = vld [vmem:[%s1689 + $0xb8] sm:$0xf]
      %v2107 = vld [vmem:[%s1689 + $0xbc] sm:$0x1]
      %v2109 = vshrl.u32 %v2060, 16
      %v2111 = vrot.slane %v2109, 4
      %v2112 = vshll.u32 %v2060, 16
      %v2114 = vrot.slane %v2112, 5
      %v2115 = vor.u32 %v2111, %v2114
      %v2116 = vrot.slane %v2115, 4
      %v2118 = vshll.u32 %v2061, 16
      %v2120 = vrot.slane %v2118, 5
      %v2121 = vsel %vm259, %v2116, %v2120
      %v2122 = vshrl.u32 %v2061, 16
      %v2124 = vrot.slane %v2122, 4
      %v2125 = vor.u32 %v2124, %v2120
      %v2126 = vrot.slane %v2125, 4
      %v2128 = vshll.u32 %v2062, 16
      %v2130 = vrot.slane %v2128, 5
      %v2131 = vsel %vm259, %v2126, %v2130
      %v2133 = vshrl.u32 %v2063, 16
      %v2135 = vrot.slane %v2133, 4
      %v2136 = vshll.u32 %v2063, 16
      %v2138 = vrot.slane %v2136, 5
      %v2139 = vor.u32 %v2135, %v2138
      %v2140 = vrot.slane %v2139, 4
      %v2142 = vshll.u32 %v2064, 16
      %v2144 = vrot.slane %v2142, 5
      %v2145 = vsel %vm259, %v2140, %v2144
      %v2146 = vshrl.u32 %v2064, 16
      %v2148 = vrot.slane %v2146, 4
      %v2149 = vor.u32 %v2148, %v2144
      %v2150 = vrot.slane %v2149, 4
      %v2152 = vshll.u32 %v2065, 16
      %v2154 = vrot.slane %v2152, 5
      %v2155 = vsel %vm259, %v2150, %v2154
      %v2157 = vshrl.u32 %v2066, 16
      %v2159 = vrot.slane %v2157, 4
      %v2160 = vshll.u32 %v2066, 16
      %v2162 = vrot.slane %v2160, 5
      %v2163 = vor.u32 %v2159, %v2162
      %v2164 = vrot.slane %v2163, 4
      %v2166 = vshll.u32 %v2067, 16
      %v2168 = vrot.slane %v2166, 5
      %v2169 = vsel %vm259, %v2164, %v2168
      %v2170 = vshrl.u32 %v2067, 16
      %v2172 = vrot.slane %v2170, 4
      %v2173 = vor.u32 %v2172, %v2168
      %v2174 = vrot.slane %v2173, 4
      %v2176 = vshll.u32 %v2068, 16
      %v2178 = vrot.slane %v2176, 5
      %v2179 = vsel %vm259, %v2174, %v2178
      %v2181 = vshrl.u32 %v2069, 16
      %v2183 = vrot.slane %v2181, 4
      %v2184 = vshll.u32 %v2069, 16
      %v2186 = vrot.slane %v2184, 5
      %v2187 = vor.u32 %v2183, %v2186
      %v2188 = vrot.slane %v2187, 4
      %v2190 = vshll.u32 %v2070, 16
      %v2192 = vrot.slane %v2190, 5
      %v2193 = vsel %vm259, %v2188, %v2192
      %v2194 = vshrl.u32 %v2070, 16
      %v2196 = vrot.slane %v2194, 4
      %v2197 = vor.u32 %v2196, %v2192
      %v2198 = vrot.slane %v2197, 4
      %v2200 = vshll.u32 %v2071, 16
      %v2202 = vrot.slane %v2200, 5
      %v2203 = vsel %vm259, %v2198, %v2202
      %v2205 = vshrl.u32 %v2072, 16
      %v2207 = vrot.slane %v2205, 4
      %v2208 = vshll.u32 %v2072, 16
      %v2210 = vrot.slane %v2208, 5
      %v2211 = vor.u32 %v2207, %v2210
      %v2212 = vrot.slane %v2211, 4
      %v2214 = vshll.u32 %v2073, 16
      %v2216 = vrot.slane %v2214, 5
      %v2217 = vsel %vm259, %v2212, %v2216
      %v2218 = vshrl.u32 %v2073, 16
      %v2220 = vrot.slane %v2218, 4
      %v2221 = vor.u32 %v2220, %v2216
      %v2222 = vrot.slane %v2221, 4
      %v2224 = vshll.u32 %v2074, 16
      %v2226 = vrot.slane %v2224, 5
      %v2227 = vsel %vm259, %v2222, %v2226
      %v2229 = vshrl.u32 %v2075, 16
      %v2231 = vrot.slane %v2229, 4
      %v2232 = vshll.u32 %v2075, 16
      %v2234 = vrot.slane %v2232, 5
      %v2235 = vor.u32 %v2231, %v2234
      %v2236 = vrot.slane %v2235, 4
      %v2238 = vshll.u32 %v2076, 16
      %v2240 = vrot.slane %v2238, 5
      %v2241 = vsel %vm259, %v2236, %v2240
      %v2242 = vshrl.u32 %v2076, 16
      %v2244 = vrot.slane %v2242, 4
      %v2245 = vor.u32 %v2244, %v2240
      %v2246 = vrot.slane %v2245, 4
      %v2248 = vshll.u32 %v2077, 16
      %v2250 = vrot.slane %v2248, 5
      %v2251 = vsel %vm259, %v2246, %v2250
      %v2253 = vshrl.u32 %v2078, 16
      %v2255 = vrot.slane %v2253, 4
      %v2256 = vshll.u32 %v2078, 16
      %v2258 = vrot.slane %v2256, 5
      %v2259 = vor.u32 %v2255, %v2258
      %v2260 = vrot.slane %v2259, 4
      %v2262 = vshll.u32 %v2079, 16
      %v2264 = vrot.slane %v2262, 5
      %v2265 = vsel %vm259, %v2260, %v2264
      %v2266 = vshrl.u32 %v2079, 16
      %v2268 = vrot.slane %v2266, 4
      %v2269 = vor.u32 %v2268, %v2264
      %v2270 = vrot.slane %v2269, 4
      %v2272 = vshll.u32 %v2080, 16
      %v2274 = vrot.slane %v2272, 5
      %v2275 = vsel %vm259, %v2270, %v2274
      %v2277 = vshrl.u32 %v2081, 16
      %v2279 = vrot.slane %v2277, 4
      %v2280 = vshll.u32 %v2081, 16
      %v2282 = vrot.slane %v2280, 5
      %v2283 = vor.u32 %v2279, %v2282
      %v2284 = vrot.slane %v2283, 4
      %v2286 = vshll.u32 %v2082, 16
      %v2288 = vrot.slane %v2286, 5
      %v2289 = vsel %vm259, %v2284, %v2288
      %v2290 = vshrl.u32 %v2082, 16
      %v2292 = vrot.slane %v2290, 4
      %v2293 = vor.u32 %v2292, %v2288
      %v2294 = vrot.slane %v2293, 4
      %v2296 = vshll.u32 %v2083, 16
      %v2298 = vrot.slane %v2296, 5
      %v2299 = vsel %vm259, %v2294, %v2298
      %v2301 = vshrl.u32 %v2084, 16
      %v2303 = vrot.slane %v2301, 4
      %v2304 = vshll.u32 %v2084, 16
      %v2306 = vrot.slane %v2304, 5
      %v2307 = vor.u32 %v2303, %v2306
      %v2308 = vrot.slane %v2307, 4
      %v2310 = vshll.u32 %v2085, 16
      %v2312 = vrot.slane %v2310, 5
      %v2313 = vsel %vm259, %v2308, %v2312
      %v2314 = vshrl.u32 %v2085, 16
      %v2316 = vrot.slane %v2314, 4
      %v2317 = vor.u32 %v2316, %v2312
      %v2318 = vrot.slane %v2317, 4
      %v2320 = vshll.u32 %v2086, 16
      %v2322 = vrot.slane %v2320, 5
      %v2323 = vsel %vm259, %v2318, %v2322
      %v2325 = vshrl.u32 %v2087, 16
      %v2327 = vrot.slane %v2325, 4
      %v2328 = vshll.u32 %v2087, 16
      %v2330 = vrot.slane %v2328, 5
      %v2331 = vor.u32 %v2327, %v2330
      %v2332 = vrot.slane %v2331, 4
      %v2334 = vshll.u32 %v2088, 16
      %v2336 = vrot.slane %v2334, 5
      %v2337 = vsel %vm259, %v2332, %v2336
      %v2338 = vshrl.u32 %v2088, 16
      %v2340 = vrot.slane %v2338, 4
      %v2341 = vor.u32 %v2340, %v2336
      %v2342 = vrot.slane %v2341, 4
      %v2344 = vshll.u32 %v2089, 16
      %v2346 = vrot.slane %v2344, 5
      %v2347 = vsel %vm259, %v2342, %v2346
      %v2349 = vshrl.u32 %v2090, 16
      %v2351 = vrot.slane %v2349, 4
      %v2352 = vshll.u32 %v2090, 16
      %v2354 = vrot.slane %v2352, 5
      %v2355 = vor.u32 %v2351, %v2354
      %v2356 = vrot.slane %v2355, 4
      %v2358 = vshll.u32 %v2091, 16
      %v2360 = vrot.slane %v2358, 5
      %v2361 = vsel %vm259, %v2356, %v2360
      %v2362 = vshrl.u32 %v2091, 16
      %v2364 = vrot.slane %v2362, 4
      %v2365 = vor.u32 %v2364, %v2360
      %v2366 = vrot.slane %v2365, 4
      %v2368 = vshll.u32 %v2092, 16
      %v2370 = vrot.slane %v2368, 5
      %v2371 = vsel %vm259, %v2366, %v2370
      %v2373 = vshrl.u32 %v2093, 16
      %v2375 = vrot.slane %v2373, 4
      %v2376 = vshll.u32 %v2093, 16
      %v2378 = vrot.slane %v2376, 5
      %v2379 = vor.u32 %v2375, %v2378
      %v2380 = vrot.slane %v2379, 4
      %v2382 = vshll.u32 %v2094, 16
      %v2384 = vrot.slane %v2382, 5
      %v2385 = vsel %vm259, %v2380, %v2384
      %v2386 = vshrl.u32 %v2094, 16
      %v2388 = vrot.slane %v2386, 4
      %v2389 = vor.u32 %v2388, %v2384
      %v2390 = vrot.slane %v2389, 4
      %v2392 = vshll.u32 %v2095, 16
      %v2394 = vrot.slane %v2392, 5
      %v2395 = vsel %vm259, %v2390, %v2394
      %v2397 = vshrl.u32 %v2096, 16
      %v2399 = vrot.slane %v2397, 4
      %v2400 = vshll.u32 %v2096, 16
      %v2402 = vrot.slane %v2400, 5
      %v2403 = vor.u32 %v2399, %v2402
      %v2404 = vrot.slane %v2403, 4
      %v2406 = vshll.u32 %v2097, 16
      %v2408 = vrot.slane %v2406, 5
      %v2409 = vsel %vm259, %v2404, %v2408
      %v2410 = vshrl.u32 %v2097, 16
      %v2412 = vrot.slane %v2410, 4
      %v2413 = vor.u32 %v2412, %v2408
      %v2414 = vrot.slane %v2413, 4
      %v2416 = vshll.u32 %v2098, 16
      %v2418 = vrot.slane %v2416, 5
      %v2419 = vsel %vm259, %v2414, %v2418
      %v2421 = vshrl.u32 %v2099, 16
      %v2423 = vrot.slane %v2421, 4
      %v2424 = vshll.u32 %v2099, 16
      %v2426 = vrot.slane %v2424, 5
      %v2427 = vor.u32 %v2423, %v2426
      %v2428 = vrot.slane %v2427, 4
      %v2430 = vshll.u32 %v2100, 16
      %v2432 = vrot.slane %v2430, 5
      %v2433 = vsel %vm259, %v2428, %v2432
      %v2434 = vshrl.u32 %v2100, 16
      %v2436 = vrot.slane %v2434, 4
      %v2437 = vor.u32 %v2436, %v2432
      %v2438 = vrot.slane %v2437, 4
      %v2440 = vshll.u32 %v2101, 16
      %v2442 = vrot.slane %v2440, 5
      %v2443 = vsel %vm259, %v2438, %v2442
      %v2445 = vshrl.u32 %v2102, 16
      %v2447 = vrot.slane %v2445, 4
      %v2448 = vshll.u32 %v2102, 16
      %v2450 = vrot.slane %v2448, 5
      %v2451 = vor.u32 %v2447, %v2450
      %v2452 = vrot.slane %v2451, 4
      %v2454 = vshll.u32 %v2103, 16
      %v2456 = vrot.slane %v2454, 5
      %v2457 = vsel %vm259, %v2452, %v2456
      %v2458 = vshrl.u32 %v2103, 16
      %v2460 = vrot.slane %v2458, 4
      %v2461 = vor.u32 %v2460, %v2456
      %v2462 = vrot.slane %v2461, 4
      %v2464 = vshll.u32 %v2104, 16
      %v2466 = vrot.slane %v2464, 5
      %v2467 = vsel %vm259, %v2462, %v2466
      %v2469 = vshrl.u32 %v2105, 16
      %v2471 = vrot.slane %v2469, 4
      %v2472 = vshll.u32 %v2105, 16
      %v2474 = vrot.slane %v2472, 5
      %v2475 = vor.u32 %v2471, %v2474
      %v2476 = vrot.slane %v2475, 4
      %v2478 = vshll.u32 %v2106, 16
      %v2480 = vrot.slane %v2478, 5
      %v2481 = vsel %vm259, %v2476, %v2480
      %v2482 = vshrl.u32 %v2106, 16
      %v2484 = vrot.slane %v2482, 4
      %v2485 = vor.u32 %v2484, %v2480
      %v2486 = vrot.slane %v2485, 4
      %v2488 = vshll.u32 %v2107, 16
      %v2490 = vrot.slane %v2488, 5
      %v2491 = vsel %vm259, %v2486, %v2490
      %s2492 = scalar_lea.vmem %s1, 64
      %v2493 = vld [vmem:[%s2492] sm:$0xf]
      %v2494 = vld [vmem:[%s2492 + $0x4] sm:$0xf]
      %v2495 = vld [vmem:[%s2492 + $0x8] sm:$0xf]
      %v2496 = vld [vmem:[%s2492 + $0xc] sm:$0xf]
      %v2497 = vunpack.c.l.b16 %v2121
      %v2498 = vunpack.c.l.b16 %v2131
      %v2499 = vunpack.c.l.b16 %v2145
      %v2500 = vunpack.c.l.b16 %v2155
      %v2501 = vunpack.c.l.b16 %v2169
      %v2502 = vunpack.c.l.b16 %v2179
      %v2503 = vunpack.c.l.b16 %v2193
      %v2504 = vunpack.c.l.b16 %v2203
      %v2505 = vunpack.c.l.b16 %v2217
      %v2506 = vunpack.c.l.b16 %v2227
      %v2507 = vunpack.c.l.b16 %v2241
      %v2508 = vunpack.c.l.b16 %v2251
      %v2509 = vunpack.c.l.b16 %v2265
      %v2510 = vunpack.c.l.b16 %v2275
      %v2511 = vunpack.c.l.b16 %v2289
      %v2512 = vunpack.c.l.b16 %v2299
      %v2513 = vunpack.c.l.b16 %v2313
      %v2514 = vunpack.c.l.b16 %v2323
      %v2515 = vunpack.c.l.b16 %v2337
      %v2516 = vunpack.c.l.b16 %v2347
      %v2517 = vunpack.c.l.b16 %v2361
      %v2518 = vunpack.c.l.b16 %v2371
      %v2519 = vunpack.c.l.b16 %v2385
      %v2520 = vunpack.c.l.b16 %v2395
      %v2521 = vunpack.c.l.b16 %v2409
      %v2522 = vunpack.c.l.b16 %v2419
      %v2523 = vunpack.c.l.b16 %v2433
      %v2524 = vunpack.c.l.b16 %v2443
      %v2525 = vunpack.c.l.b16 %v2457
      %v2526 = vunpack.c.l.b16 %v2467
      %v2527 = vunpack.c.l.b16 %v2481
      %v2528 = vunpack.c.l.b16 %v2491
      %v2529 = vpack.c.b16 %v2498, %v2497
      %v2530 = vpack.c.b16 %v2500, %v2499
      %v2531 = vpack.c.b16 %v2502, %v2501
      %v2532 = vpack.c.b16 %v2504, %v2503
      %v2533 = vpack.c.b16 %v2506, %v2505
      %v2534 = vpack.c.b16 %v2508, %v2507
      %v2535 = vpack.c.b16 %v2510, %v2509
      %v2536 = vpack.c.b16 %v2512, %v2511
      %v2537 = vpack.c.b16 %v2514, %v2513
      %v2538 = vpack.c.b16 %v2516, %v2515
      %v2539 = vpack.c.b16 %v2518, %v2517
      %v2540 = vpack.c.b16 %v2520, %v2519
      %v2541 = vpack.c.b16 %v2522, %v2521
      %v2542 = vpack.c.b16 %v2524, %v2523
      %v2543 = vpack.c.b16 %v2526, %v2525
      %v2544 = vpack.c.b16 %v2528, %v2527
      %v2549 = vunpack.c.l.b16 %v2493
      %v2550 = vunpack.c.l.b16 %v2494
      %v2551 = vunpack.c.l.b16 %v2495
      %v2552 = vunpack.c.l.b16 %v2496
      %v2553 = vpack.c.b16 %v2550, %v2549
      %v2554 = vpack.c.b16 %v2552, %v2551
      %v2558 = vsel %vm709, %v2529, 0
      %v2561 = vsel %vm709, %v2530, 0
      %v2564 = vsel %vm709, %v2531, 0
      %v2567 = vsel %vm709, %v2532, 0
      %v2570 = vsel %vm709, %v2533, 0
      %v2573 = vsel %vm709, %v2534, 0
      %v2576 = vsel %vm709, %v2535, 0
      %v2579 = vsel %vm709, %v2536, 0
      %v2582 = vsel %vm709, %v2537, 0
      %v2585 = vsel %vm709, %v2538, 0
      %v2588 = vsel %vm709, %v2539, 0
      %v2591 = vsel %vm709, %v2540, 0
      %v2594 = vsel %vm709, %v2541, 0
      %v2597 = vsel %vm709, %v2542, 0
      %v2600 = vsel %vm709, %v2543, 0
      %v2603 = vsel %vm709, %v2544, 0
      %2605 = vmatprep.subr.bf16.mxu0 0
      %2606 = vmatpush1.bf16.msra.mxu0 %v2553
      %2607 = vmatprep.subr.bf16.mxu0 0
      %2608 = vmatpush1.bf16.msra.mxu0 %v2554
      %2609 = vmatprep.subr.bf16.mxu0 0
      %2610 = vmatpush1.bf16.msra.mxu0 0
      %2611 = vmatprep.subr.bf16.mxu0 0
      %2612 = vmatpush1.bf16.msra.mxu0 0
      %2613 = vmatprep.subr.bf16.mxu0 0
      %2614 = vmatpush1.bf16.msra.mxu0 0
      %2615 = vmatprep.subr.bf16.mxu0 0
      %2616 = vmatpush1.bf16.msra.mxu0 0
      %2617 = vmatprep.subr.bf16.mxu0 0
      %2618 = vmatpush1.bf16.msra.mxu0 0
      %2619 = vmatprep.subr.bf16.mxu0 0
      %2620 = vmatpush1.bf16.msra.mxu0 0
      %2621 = vmatprep.subr.bf16.mxu0 0
      %2622 = vmatpush1.bf16.msra.mxu0 0
      %2623 = vmatprep.subr.bf16.mxu0 0
      %2624 = vmatpush1.bf16.msra.mxu0 0
      %2625 = vmatprep.subr.bf16.mxu0 0
      %2626 = vmatpush1.bf16.msra.mxu0 0
      %2627 = vmatprep.subr.bf16.mxu0 0
      %2628 = vmatpush1.bf16.msra.mxu0 0
      %2629 = vmatprep.subr.bf16.mxu0 0
      %2630 = vmatpush1.bf16.msra.mxu0 0
      %2631 = vmatprep.subr.bf16.mxu0 0
      %2632 = vmatpush1.bf16.msra.mxu0 0
      %2633 = vmatprep.subr.bf16.mxu0 0
      %2634 = vmatpush1.bf16.msra.mxu0 0
      %2635 = vmatprep.subr.bf16.mxu0 0
      %2636 = vmatpush1.bf16.msra.mxu0 0
      %2637 = vmatprep.mubr.bf16.mxu0 0
      %2638 = vmatmul.mubr.bf16.gmra.mrb[0].mxu0 %v2558
      %v2639 = vpop.f32.mrb[0].mxu0
      %v2640 = vadd.f32 0.0, %v2639
      %v2641 = vpop.f32.mrb[0].mxu0
      %v2642 = vpop.f32.mrb[0].mxu0
      %v2643 = vadd.f32 0.0, %v2642
      %v2644 = vpop.f32.mrb[0].mxu0
      %2645 = vmatprep.mubr.bf16.mxu0 0
      %2646 = vmatmul.mubr.bf16.gmra.mrb[0].mxu0 %v2561
      %v2647 = vpop.f32.mrb[0].mxu0
      %v2648 = vadd.f32 0.0, %v2647
      %v2649 = vpop.f32.mrb[0].mxu0
      %v2650 = vpop.f32.mrb[0].mxu0
      %v2651 = vadd.f32 0.0, %v2650
      %v2652 = vpop.f32.mrb[0].mxu0
      %2653 = vmatprep.mubr.bf16.mxu0 0
      %2654 = vmatmul.mubr.bf16.gmra.mrb[0].mxu0 %v2564
      %v2655 = vpop.f32.mrb[0].mxu0
      %v2656 = vadd.f32 0.0, %v2655
      %v2657 = vpop.f32.mrb[0].mxu0
      %v2658 = vpop.f32.mrb[0].mxu0
      %v2659 = vadd.f32 0.0, %v2658
      %v2660 = vpop.f32.mrb[0].mxu0
      %2661 = vmatprep.mubr.bf16.mxu0 0
      %2662 = vmatmul.mubr.bf16.gmra.mrb[0].mxu0 %v2567
      %v2663 = vpop.f32.mrb[0].mxu0
      %v2664 = vadd.f32 0.0, %v2663
      %v2665 = vpop.f32.mrb[0].mxu0
      %v2666 = vpop.f32.mrb[0].mxu0
      %v2667 = vadd.f32 0.0, %v2666
      %v2668 = vpop.f32.mrb[0].mxu0
      %2669 = vmatprep.mubr.bf16.mxu0 0
      %2670 = vmatmul.mubr.bf16.gmra.mrb[0].mxu0 %v2570
      %v2671 = vpop.f32.mrb[0].mxu0
      %v2672 = vadd.f32 0.0, %v2671
      %v2673 = vpop.f32.mrb[0].mxu0
      %v2674 = vpop.f32.mrb[0].mxu0
      %v2675 = vadd.f32 0.0, %v2674
      %v2676 = vpop.f32.mrb[0].mxu0
      %2677 = vmatprep.mubr.bf16.mxu0 0
      %2678 = vmatmul.mubr.bf16.gmra.mrb[0].mxu0 %v2573
      %v2679 = vpop.f32.mrb[0].mxu0
      %v2680 = vadd.f32 0.0, %v2679
      %v2681 = vpop.f32.mrb[0].mxu0
      %v2682 = vpop.f32.mrb[0].mxu0
      %v2683 = vadd.f32 0.0, %v2682
      %v2684 = vpop.f32.mrb[0].mxu0
      %2685 = vmatprep.mubr.bf16.mxu0 0
      %2686 = vmatmul.mubr.bf16.gmra.mrb[0].mxu0 %v2576
      %v2687 = vpop.f32.mrb[0].mxu0
      %v2688 = vadd.f32 0.0, %v2687
      %v2689 = vpop.f32.mrb[0].mxu0
      %v2690 = vpop.f32.mrb[0].mxu0
      %v2691 = vadd.f32 0.0, %v2690
      %v2692 = vpop.f32.mrb[0].mxu0
      %2693 = vmatprep.mubr.bf16.mxu0 0
      %2694 = vmatmul.mubr.bf16.gmra.mrb[0].mxu0 %v2579
      %v2695 = vpop.f32.mrb[0].mxu0
      %v2696 = vadd.f32 0.0, %v2695
      %v2697 = vpop.f32.mrb[0].mxu0
      %v2698 = vpop.f32.mrb[0].mxu0
      %v2699 = vadd.f32 0.0, %v2698
      %v2700 = vpop.f32.mrb[0].mxu0
      %2701 = vmatprep.mubr.bf16.mxu0 0
      %2702 = vmatmul.mubr.bf16.gmra.mrb[0].mxu0 %v2582
      %v2703 = vpop.f32.mrb[0].mxu0
      %v2704 = vadd.f32 0.0, %v2703
      %v2705 = vpop.f32.mrb[0].mxu0
      %v2706 = vpop.f32.mrb[0].mxu0
      %v2707 = vadd.f32 0.0, %v2706
      %v2708 = vpop.f32.mrb[0].mxu0
      %2709 = vmatprep.mubr.bf16.mxu0 0
      %2710 = vmatmul.mubr.bf16.gmra.mrb[0].mxu0 %v2585
      %v2711 = vpop.f32.mrb[0].mxu0
      %v2712 = vadd.f32 0.0, %v2711
      %v2713 = vpop.f32.mrb[0].mxu0
      %v2714 = vpop.f32.mrb[0].mxu0
      %v2715 = vadd.f32 0.0, %v2714
      %v2716 = vpop.f32.mrb[0].mxu0
      %2717 = vmatprep.mubr.bf16.mxu0 0
      %2718 = vmatmul.mubr.bf16.gmra.mrb[0].mxu0 %v2588
      %v2719 = vpop.f32.mrb[0].mxu0
      %v2720 = vadd.f32 0.0, %v2719
      %v2721 = vpop.f32.mrb[0].mxu0
      %v2722 = vpop.f32.mrb[0].mxu0
      %v2723 = vadd.f32 0.0, %v2722
      %v2724 = vpop.f32.mrb[0].mxu0
      %2725 = vmatprep.mubr.bf16.mxu0 0
      %2726 = vmatmul.mubr.bf16.gmra.mrb[0].mxu0 %v2591
      %v2727 = vpop.f32.mrb[0].mxu0
      %v2728 = vadd.f32 0.0, %v2727
      %v2729 = vpop.f32.mrb[0].mxu0
      %v2730 = vpop.f32.mrb[0].mxu0
      %v2731 = vadd.f32 0.0, %v2730
      %v2732 = vpop.f32.mrb[0].mxu0
      %2733 = vmatprep.mubr.bf16.mxu0 0
      %2734 = vmatmul.mubr.bf16.gmra.mrb[0].mxu0 %v2594
      %v2735 = vpop.f32.mrb[0].mxu0
      %v2736 = vadd.f32 0.0, %v2735
      %v2737 = vpop.f32.mrb[0].mxu0
      %v2738 = vpop.f32.mrb[0].mxu0
      %v2739 = vadd.f32 0.0, %v2738
      %v2740 = vpop.f32.mrb[0].mxu0
      %2741 = vmatprep.mubr.bf16.mxu0 0
      %2742 = vmatmul.mubr.bf16.gmra.mrb[0].mxu0 %v2597
      %v2743 = vpop.f32.mrb[0].mxu0
      %v2744 = vadd.f32 0.0, %v2743
      %v2745 = vpop.f32.mrb[0].mxu0
      %v2746 = vpop.f32.mrb[0].mxu0
      %v2747 = vadd.f32 0.0, %v2746
      %v2748 = vpop.f32.mrb[0].mxu0
      %2749 = vmatprep.mubr.bf16.mxu0 0
      %2750 = vmatmul.mubr.bf16.gmra.mrb[0].mxu0 %v2600
      %v2751 = vpop.f32.mrb[0].mxu0
      %v2752 = vadd.f32 0.0, %v2751
      %v2753 = vpop.f32.mrb[0].mxu0
      %v2754 = vpop.f32.mrb[0].mxu0
      %v2755 = vadd.f32 0.0, %v2754
      %v2756 = vpop.f32.mrb[0].mxu0
      %2757 = vmatprep.mubr.bf16.mxu0 0
      %2758 = vmatmul.mubr.bf16.gmra.mrb[0].mxu0 %v2603
      %v2759 = vpop.f32.mrb[0].mxu0
      %v2760 = vadd.f32 0.0, %v2759
      %v2761 = vpop.f32.mrb[0].mxu0
      %v2762 = vpop.f32.mrb[0].mxu0
      %v2763 = vadd.f32 0.0, %v2762
      %v2764 = vpop.f32.mrb[0].mxu0
      %2765 = vdwg.mxu0
      %v2766 = vadd.f32 %v2028, %v2640
      %v2767 = vadd.f32 %v2029, %v2643
      %v2768 = vadd.f32 %v2030, %v2648
      %v2769 = vadd.f32 %v2031, %v2651
      %v2770 = vadd.f32 %v2032, %v2656
      %v2771 = vadd.f32 %v2033, %v2659
      %v2772 = vadd.f32 %v2034, %v2664
      %v2773 = vadd.f32 %v2035, %v2667
      %v2774 = vadd.f32 %v2036, %v2672
      %v2775 = vadd.f32 %v2037, %v2675
      %v2776 = vadd.f32 %v2038, %v2680
      %v2777 = vadd.f32 %v2039, %v2683
      %v2778 = vadd.f32 %v2040, %v2688
      %v2779 = vadd.f32 %v2041, %v2691
      %v2780 = vadd.f32 %v2042, %v2696
      %v2781 = vadd.f32 %v2043, %v2699
      %v2782 = vadd.f32 %v2044, %v2704
      %v2783 = vadd.f32 %v2045, %v2707
      %v2784 = vadd.f32 %v2046, %v2712
      %v2785 = vadd.f32 %v2047, %v2715
      %v2786 = vadd.f32 %v2048, %v2720
      %v2787 = vadd.f32 %v2049, %v2723
      %v2788 = vadd.f32 %v2050, %v2728
      %v2789 = vadd.f32 %v2051, %v2731
      %v2790 = vadd.f32 %v2052, %v2736
      %v2791 = vadd.f32 %v2053, %v2739
      %v2792 = vadd.f32 %v2054, %v2744
      %v2793 = vadd.f32 %v2055, %v2747
      %v2794 = vadd.f32 %v2056, %v2752
      %v2795 = vadd.f32 %v2057, %v2755
      %v2796 = vadd.f32 %v2058, %v2760
      %v2797 = vadd.f32 %v2059, %v2763
      %v2798 = vld [vmem:[%s1689] sm:$0xe]
      %v2799 = vld [vmem:[%s1689 + $0xc] sm:$0xe]
      %v2800 = vld [vmem:[%s1689 + $0x18] sm:$0xe]
      %v2801 = vld [vmem:[%s1689 + $0x24] sm:$0xe]
      %v2802 = vld [vmem:[%s1689 + $0x30] sm:$0xe]
      %v2803 = vld [vmem:[%s1689 + $0x3c] sm:$0xe]
      %v2804 = vld [vmem:[%s1689 + $0x48] sm:$0xe]
      %v2805 = vld [vmem:[%s1689 + $0x54] sm:$0xe]
      %v2806 = vld [vmem:[%s1689 + $0x60] sm:$0xe]
      %v2807 = vld [vmem:[%s1689 + $0x6c] sm:$0xe]
      %v2808 = vld [vmem:[%s1689 + $0x78] sm:$0xe]
      %v2809 = vld [vmem:[%s1689 + $0x84] sm:$0xe]
      %v2810 = vld [vmem:[%s1689 + $0x90] sm:$0xe]
      %v2811 = vld [vmem:[%s1689 + $0x9c] sm:$0xe]
      %v2812 = vld [vmem:[%s1689 + $0xa8] sm:$0xe]
      %v2813 = vld [vmem:[%s1689 + $0xb4] sm:$0xe]
      %v2862 = vrot.slane %v2798, 5
      %v2863 = vrot.slane %v2862, 4
      %v2864 = vrot.slane %v2061, 5
      %v2865 = vsel %vm1270, %v2863, %v2864
      %v2866 = vrot.slane %v2864, 4
      %v2867 = vrot.slane %v2062, 5
      %v2868 = vsel %vm1270, %v2866, %v2867
      %v2869 = vrot.slane %v2799, 5
      %v2870 = vrot.slane %v2869, 4
      %v2871 = vrot.slane %v2064, 5
      %v2872 = vsel %vm1270, %v2870, %v2871
      %v2873 = vrot.slane %v2871, 4
      %v2874 = vrot.slane %v2065, 5
      %v2875 = vsel %vm1270, %v2873, %v2874
      %v2876 = vrot.slane %v2800, 5
      %v2877 = vrot.slane %v2876, 4
      %v2878 = vrot.slane %v2067, 5
      %v2879 = vsel %vm1270, %v2877, %v2878
      %v2880 = vrot.slane %v2878, 4
      %v2881 = vrot.slane %v2068, 5
      %v2882 = vsel %vm1270, %v2880, %v2881
      %v2883 = vrot.slane %v2801, 5
      %v2884 = vrot.slane %v2883, 4
      %v2885 = vrot.slane %v2070, 5
      %v2886 = vsel %vm1270, %v2884, %v2885
      %v2887 = vrot.slane %v2885, 4
      %v2888 = vrot.slane %v2071, 5
      %v2889 = vsel %vm1270, %v2887, %v2888
      %v2890 = vrot.slane %v2802, 5
      %v2891 = vrot.slane %v2890, 4
      %v2892 = vrot.slane %v2073, 5
      %v2893 = vsel %vm1270, %v2891, %v2892
      %v2894 = vrot.slane %v2892, 4
      %v2895 = vrot.slane %v2074, 5
      %v2896 = vsel %vm1270, %v2894, %v2895
      %v2897 = vrot.slane %v2803, 5
      %v2898 = vrot.slane %v2897, 4
      %v2899 = vrot.slane %v2076, 5
      %v2900 = vsel %vm1270, %v2898, %v2899
      %v2901 = vrot.slane %v2899, 4
      %v2902 = vrot.slane %v2077, 5
      %v2903 = vsel %vm1270, %v2901, %v2902
      %v2904 = vrot.slane %v2804, 5
      %v2905 = vrot.slane %v2904, 4
      %v2906 = vrot.slane %v2079, 5
      %v2907 = vsel %vm1270, %v2905, %v2906
      %v2908 = vrot.slane %v2906, 4
      %v2909 = vrot.slane %v2080, 5
      %v2910 = vsel %vm1270, %v2908, %v2909
      %v2911 = vrot.slane %v2805, 5
      %v2912 = vrot.slane %v2911, 4
      %v2913 = vrot.slane %v2082, 5
      %v2914 = vsel %vm1270, %v2912, %v2913
      %v2915 = vrot.slane %v2913, 4
      %v2916 = vrot.slane %v2083, 5
      %v2917 = vsel %vm1270, %v2915, %v2916
      %v2918 = vrot.slane %v2806, 5
      %v2919 = vrot.slane %v2918, 4
      %v2920 = vrot.slane %v2085, 5
      %v2921 = vsel %vm1270, %v2919, %v2920
      %v2922 = vrot.slane %v2920, 4
      %v2923 = vrot.slane %v2086, 5
      %v2924 = vsel %vm1270, %v2922, %v2923
      %v2925 = vrot.slane %v2807, 5
      %v2926 = vrot.slane %v2925, 4
      %v2927 = vrot.slane %v2088, 5
      %v2928 = vsel %vm1270, %v2926, %v2927
      %v2929 = vrot.slane %v2927, 4
      %v2930 = vrot.slane %v2089, 5
      %v2931 = vsel %vm1270, %v2929, %v2930
      %v2932 = vrot.slane %v2808, 5
      %v2933 = vrot.slane %v2932, 4
      %v2934 = vrot.slane %v2091, 5
      %v2935 = vsel %vm1270, %v2933, %v2934
      %v2936 = vrot.slane %v2934, 4
      %v2937 = vrot.slane %v2092, 5
      %v2938 = vsel %vm1270, %v2936, %v2937
      %v2939 = vrot.slane %v2809, 5
      %v2940 = vrot.slane %v2939, 4
      %v2941 = vrot.slane %v2094, 5
      %v2942 = vsel %vm1270, %v2940, %v2941
      %v2943 = vrot.slane %v2941, 4
      %v2944 = vrot.slane %v2095, 5
      %v2945 = vsel %vm1270, %v2943, %v2944
      %v2946 = vrot.slane %v2810, 5
      %v2947 = vrot.slane %v2946, 4
      %v2948 = vrot.slane %v2097, 5
      %v2949 = vsel %vm1270, %v2947, %v2948
      %v2950 = vrot.slane %v2948, 4
      %v2951 = vrot.slane %v2098, 5
      %v2952 = vsel %vm1270, %v2950, %v2951
      %v2953 = vrot.slane %v2811, 5
      %v2954 = vrot.slane %v2953, 4
      %v2955 = vrot.slane %v2100, 5
      %v2956 = vsel %vm1270, %v2954, %v2955
      %v2957 = vrot.slane %v2955, 4
      %v2958 = vrot.slane %v2101, 5
      %v2959 = vsel %vm1270, %v2957, %v2958
      %v2960 = vrot.slane %v2812, 5
      %v2961 = vrot.slane %v2960, 4
      %v2962 = vrot.slane %v2103, 5
      %v2963 = vsel %vm1270, %v2961, %v2962
      %v2964 = vrot.slane %v2962, 4
      %v2965 = vrot.slane %v2104, 5
      %v2966 = vsel %vm1270, %v2964, %v2965
      %v2967 = vrot.slane %v2813, 5
      %v2968 = vrot.slane %v2967, 4
      %v2969 = vrot.slane %v2106, 5
      %v2970 = vsel %vm1270, %v2968, %v2969
      %v2971 = vrot.slane %v2969, 4
      %v2972 = vrot.slane %v2107, 5
      %v2973 = vsel %vm1270, %v2971, %v2972
      %s2974 = scalar_lea.vmem %s1, 80
      %v2975 = vld [vmem:[%s2974] sm:$0xf]
      %v2976 = vld [vmem:[%s2974 + $0x4] sm:$0xf]
      %v2977 = vld [vmem:[%s2974 + $0x8] sm:$0xf]
      %v2978 = vld [vmem:[%s2974 + $0xc] sm:$0xf]
      %v2979 = vunpack.c.l.b16 %v2865
      %v2980 = vunpack.c.l.b16 %v2868
      %v2981 = vunpack.c.l.b16 %v2872
      %v2982 = vunpack.c.l.b16 %v2875
      %v2983 = vunpack.c.l.b16 %v2879
      %v2984 = vunpack.c.l.b16 %v2882
      %v2985 = vunpack.c.l.b16 %v2886
      %v2986 = vunpack.c.l.b16 %v2889
      %v2987 = vunpack.c.l.b16 %v2893
      %v2988 = vunpack.c.l.b16 %v2896
      %v2989 = vunpack.c.l.b16 %v2900
      %v2990 = vunpack.c.l.b16 %v2903
      %v2991 = vunpack.c.l.b16 %v2907
      %v2992 = vunpack.c.l.b16 %v2910
      %v2993 = vunpack.c.l.b16 %v2914
      %v2994 = vunpack.c.l.b16 %v2917
      %v2995 = vunpack.c.l.b16 %v2921
      %v2996 = vunpack.c.l.b16 %v2924
      %v2997 = vunpack.c.l.b16 %v2928
      %v2998 = vunpack.c.l.b16 %v2931
      %v2999 = vunpack.c.l.b16 %v2935
      %v3000 = vunpack.c.l.b16 %v2938
      %v3001 = vunpack.c.l.b16 %v2942
      %v3002 = vunpack.c.l.b16 %v2945
      %v3003 = vunpack.c.l.b16 %v2949
      %v3004 = vunpack.c.l.b16 %v2952
      %v3005 = vunpack.c.l.b16 %v2956
      %v3006 = vunpack.c.l.b16 %v2959
      %v3007 = vunpack.c.l.b16 %v2963
      %v3008 = vunpack.c.l.b16 %v2966
      %v3009 = vunpack.c.l.b16 %v2970
      %v3010 = vunpack.c.l.b16 %v2973
      %v3011 = vpack.c.b16 %v2980, %v2979
      %v3012 = vpack.c.b16 %v2982, %v2981
      %v3013 = vpack.c.b16 %v2984, %v2983
      %v3014 = vpack.c.b16 %v2986, %v2985
      %v3015 = vpack.c.b16 %v2988, %v2987
      %v3016 = vpack.c.b16 %v2990, %v2989
      %v3017 = vpack.c.b16 %v2992, %v2991
      %v3018 = vpack.c.b16 %v2994, %v2993
      %v3019 = vpack.c.b16 %v2996, %v2995
      %v3020 = vpack.c.b16 %v2998, %v2997
      %v3021 = vpack.c.b16 %v3000, %v2999
      %v3022 = vpack.c.b16 %v3002, %v3001
      %v3023 = vpack.c.b16 %v3004, %v3003
      %v3024 = vpack.c.b16 %v3006, %v3005
      %v3025 = vpack.c.b16 %v3008, %v3007
      %v3026 = vpack.c.b16 %v3010, %v3009
      %v3031 = vunpack.c.l.b16 %v2975
      %v3032 = vunpack.c.l.b16 %v2976
      %v3033 = vunpack.c.l.b16 %v2977
      %v3034 = vunpack.c.l.b16 %v2978
      %v3035 = vpack.c.b16 %v3032, %v3031
      %v3036 = vpack.c.b16 %v3034, %v3033
      %v3040 = vsel %vm709, %v3011, 0
      %v3043 = vsel %vm709, %v3012, 0
      %v3046 = vsel %vm709, %v3013, 0
      %v3049 = vsel %vm709, %v3014, 0
      %v3052 = vsel %vm709, %v3015, 0
      %v3055 = vsel %vm709, %v3016, 0
      %v3058 = vsel %vm709, %v3017, 0
      %v3061 = vsel %vm709, %v3018, 0
      %v3064 = vsel %vm709, %v3019, 0
      %v3067 = vsel %vm709, %v3020, 0
      %v3070 = vsel %vm709, %v3021, 0
      %v3073 = vsel %vm709, %v3022, 0
      %v3076 = vsel %vm709, %v3023, 0
      %v3079 = vsel %vm709, %v3024, 0
      %v3082 = vsel %vm709, %v3025, 0
      %v3085 = vsel %vm709, %v3026, 0
      %3087 = vmatprep.subr.bf16.mxu0 0
      %3088 = vmatpush1.bf16.msra.mxu0 %v3035
      %3089 = vmatprep.subr.bf16.mxu0 0
      %3090 = vmatpush1.bf16.msra.mxu0 %v3036
      %3091 = vmatprep.subr.bf16.mxu0 0
      %3092 = vmatpush1.bf16.msra.mxu0 0
      %3093 = vmatprep.subr.bf16.mxu0 0
      %3094 = vmatpush1.bf16.msra.mxu0 0
      %3095 = vmatprep.subr.bf16.mxu0 0
      %3096 = vmatpush1.bf16.msra.mxu0 0
      %3097 = vmatprep.subr.bf16.mxu0 0
      %3098 = vmatpush1.bf16.msra.mxu0 0
      %3099 = vmatprep.subr.bf16.mxu0 0
      %3100 = vmatpush1.bf16.msra.mxu0 0
      %3101 = vmatprep.subr.bf16.mxu0 0
      %3102 = vmatpush1.bf16.msra.mxu0 0
      %3103 = vmatprep.subr.bf16.mxu0 0
      %3104 = vmatpush1.bf16.msra.mxu0 0
      %3105 = vmatprep.subr.bf16.mxu0 0
      %3106 = vmatpush1.bf16.msra.mxu0 0
      %3107 = vmatprep.subr.bf16.mxu0 0
      %3108 = vmatpush1.bf16.msra.mxu0 0
      %3109 = vmatprep.subr.bf16.mxu0 0
      %3110 = vmatpush1.bf16.msra.mxu0 0
      %3111 = vmatprep.subr.bf16.mxu0 0
      %3112 = vmatpush1.bf16.msra.mxu0 0
      %3113 = vmatprep.subr.bf16.mxu0 0
      %3114 = vmatpush1.bf16.msra.mxu0 0
      %3115 = vmatprep.subr.bf16.mxu0 0
      %3116 = vmatpush1.bf16.msra.mxu0 0
      %3117 = vmatprep.subr.bf16.mxu0 0
      %3118 = vmatpush1.bf16.msra.mxu0 0
      %3119 = vmatprep.mubr.bf16.mxu0 0
      %3120 = vmatmul.mubr.bf16.gmra.mrb[0].mxu0 %v3040
      %v3121 = vpop.f32.mrb[0].mxu0
      %v3122 = vadd.f32 0.0, %v3121
      %v3123 = vpop.f32.mrb[0].mxu0
      %v3124 = vpop.f32.mrb[0].mxu0
      %v3125 = vadd.f32 0.0, %v3124
      %v3126 = vpop.f32.mrb[0].mxu0
      %3127 = vmatprep.mubr.bf16.mxu0 0
      %3128 = vmatmul.mubr.bf16.gmra.mrb[0].mxu0 %v3043
      %v3129 = vpop.f32.mrb[0].mxu0
      %v3130 = vadd.f32 0.0, %v3129
      %v3131 = vpop.f32.mrb[0].mxu0
      %v3132 = vpop.f32.mrb[0].mxu0
      %v3133 = vadd.f32 0.0, %v3132
      %v3134 = vpop.f32.mrb[0].mxu0
      %3135 = vmatprep.mubr.bf16.mxu0 0
      %3136 = vmatmul.mubr.bf16.gmra.mrb[0].mxu0 %v3046
      %v3137 = vpop.f32.mrb[0].mxu0
      %v3138 = vadd.f32 0.0, %v3137
      %v3139 = vpop.f32.mrb[0].mxu0
      %v3140 = vpop.f32.mrb[0].mxu0
      %v3141 = vadd.f32 0.0, %v3140
      %v3142 = vpop.f32.mrb[0].mxu0
      %3143 = vmatprep.mubr.bf16.mxu0 0
      %3144 = vmatmul.mubr.bf16.gmra.mrb[0].mxu0 %v3049
      %v3145 = vpop.f32.mrb[0].mxu0
      %v3146 = vadd.f32 0.0, %v3145
      %v3147 = vpop.f32.mrb[0].mxu0
      %v3148 = vpop.f32.mrb[0].mxu0
      %v3149 = vadd.f32 0.0, %v3148
      %v3150 = vpop.f32.mrb[0].mxu0
      %3151 = vmatprep.mubr.bf16.mxu0 0
      %3152 = vmatmul.mubr.bf16.gmra.mrb[0].mxu0 %v3052
      %v3153 = vpop.f32.mrb[0].mxu0
      %v3154 = vadd.f32 0.0, %v3153
      %v3155 = vpop.f32.mrb[0].mxu0
      %v3156 = vpop.f32.mrb[0].mxu0
      %v3157 = vadd.f32 0.0, %v3156
      %v3158 = vpop.f32.mrb[0].mxu0
      %3159 = vmatprep.mubr.bf16.mxu0 0
      %3160 = vmatmul.mubr.bf16.gmra.mrb[0].mxu0 %v3055
      %v3161 = vpop.f32.mrb[0].mxu0
      %v3162 = vadd.f32 0.0, %v3161
      %v3163 = vpop.f32.mrb[0].mxu0
      %v3164 = vpop.f32.mrb[0].mxu0
      %v3165 = vadd.f32 0.0, %v3164
      %v3166 = vpop.f32.mrb[0].mxu0
      %3167 = vmatprep.mubr.bf16.mxu0 0
      %3168 = vmatmul.mubr.bf16.gmra.mrb[0].mxu0 %v3058
      %v3169 = vpop.f32.mrb[0].mxu0
      %v3170 = vadd.f32 0.0, %v3169
      %v3171 = vpop.f32.mrb[0].mxu0
      %v3172 = vpop.f32.mrb[0].mxu0
      %v3173 = vadd.f32 0.0, %v3172
      %v3174 = vpop.f32.mrb[0].mxu0
      %3175 = vmatprep.mubr.bf16.mxu0 0
      %3176 = vmatmul.mubr.bf16.gmra.mrb[0].mxu0 %v3061
      %v3177 = vpop.f32.mrb[0].mxu0
      %v3178 = vadd.f32 0.0, %v3177
      %v3179 = vpop.f32.mrb[0].mxu0
      %v3180 = vpop.f32.mrb[0].mxu0
      %v3181 = vadd.f32 0.0, %v3180
      %v3182 = vpop.f32.mrb[0].mxu0
      %3183 = vmatprep.mubr.bf16.mxu0 0
      %3184 = vmatmul.mubr.bf16.gmra.mrb[0].mxu0 %v3064
      %v3185 = vpop.f32.mrb[0].mxu0
      %v3186 = vadd.f32 0.0, %v3185
      %v3187 = vpop.f32.mrb[0].mxu0
      %v3188 = vpop.f32.mrb[0].mxu0
      %v3189 = vadd.f32 0.0, %v3188
      %v3190 = vpop.f32.mrb[0].mxu0
      %3191 = vmatprep.mubr.bf16.mxu0 0
      %3192 = vmatmul.mubr.bf16.gmra.mrb[0].mxu0 %v3067
      %v3193 = vpop.f32.mrb[0].mxu0
      %v3194 = vadd.f32 0.0, %v3193
      %v3195 = vpop.f32.mrb[0].mxu0
      %v3196 = vpop.f32.mrb[0].mxu0
      %v3197 = vadd.f32 0.0, %v3196
      %v3198 = vpop.f32.mrb[0].mxu0
      %3199 = vmatprep.mubr.bf16.mxu0 0
      %3200 = vmatmul.mubr.bf16.gmra.mrb[0].mxu0 %v3070
      %v3201 = vpop.f32.mrb[0].mxu0
      %v3202 = vadd.f32 0.0, %v3201
      %v3203 = vpop.f32.mrb[0].mxu0
      %v3204 = vpop.f32.mrb[0].mxu0
      %v3205 = vadd.f32 0.0, %v3204
      %v3206 = vpop.f32.mrb[0].mxu0
      %3207 = vmatprep.mubr.bf16.mxu0 0
      %3208 = vmatmul.mubr.bf16.gmra.mrb[0].mxu0 %v3073
      %v3209 = vpop.f32.mrb[0].mxu0
      %v3210 = vadd.f32 0.0, %v3209
      %v3211 = vpop.f32.mrb[0].mxu0
      %v3212 = vpop.f32.mrb[0].mxu0
      %v3213 = vadd.f32 0.0, %v3212
      %v3214 = vpop.f32.mrb[0].mxu0
      %3215 = vmatprep.mubr.bf16.mxu0 0
      %3216 = vmatmul.mubr.bf16.gmra.mrb[0].mxu0 %v3076
      %v3217 = vpop.f32.mrb[0].mxu0
      %v3218 = vadd.f32 0.0, %v3217
      %v3219 = vpop.f32.mrb[0].mxu0
      %v3220 = vpop.f32.mrb[0].mxu0
      %v3221 = vadd.f32 0.0, %v3220
      %v3222 = vpop.f32.mrb[0].mxu0
      %3223 = vmatprep.mubr.bf16.mxu0 0
      %3224 = vmatmul.mubr.bf16.gmra.mrb[0].mxu0 %v3079
      %v3225 = vpop.f32.mrb[0].mxu0
      %v3226 = vadd.f32 0.0, %v3225
      %v3227 = vpop.f32.mrb[0].mxu0
      %v3228 = vpop.f32.mrb[0].mxu0
      %v3229 = vadd.f32 0.0, %v3228
      %v3230 = vpop.f32.mrb[0].mxu0
      %3231 = vmatprep.mubr.bf16.mxu0 0
      %3232 = vmatmul.mubr.bf16.gmra.mrb[0].mxu0 %v3082
      %v3233 = vpop.f32.mrb[0].mxu0
      %v3234 = vadd.f32 0.0, %v3233
      %v3235 = vpop.f32.mrb[0].mxu0
      %v3236 = vpop.f32.mrb[0].mxu0
      %v3237 = vadd.f32 0.0, %v3236
      %v3238 = vpop.f32.mrb[0].mxu0
      %3239 = vmatprep.mubr.bf16.mxu0 0
      %3240 = vmatmul.mubr.bf16.gmra.mrb[0].mxu0 %v3085
      %v3241 = vpop.f32.mrb[0].mxu0
      %v3242 = vadd.f32 0.0, %v3241
      %v3243 = vpop.f32.mrb[0].mxu0
      %v3244 = vpop.f32.mrb[0].mxu0
      %v3245 = vadd.f32 0.0, %v3244
      %v3246 = vpop.f32.mrb[0].mxu0
      %3247 = vdwg.mxu0
      %v3248 = vadd.f32 %v2766, %v3122
      %v3249 = vadd.f32 %v2767, %v3125
      %v3250 = vadd.f32 %v2768, %v3130
      %v3251 = vadd.f32 %v2769, %v3133
      %v3252 = vadd.f32 %v2770, %v3138
      %v3253 = vadd.f32 %v2771, %v3141
      %v3254 = vadd.f32 %v2772, %v3146
      %v3255 = vadd.f32 %v2773, %v3149
      %v3256 = vadd.f32 %v2774, %v3154
      %v3257 = vadd.f32 %v2775, %v3157
      %v3258 = vadd.f32 %v2776, %v3162
      %v3259 = vadd.f32 %v2777, %v3165
      %v3260 = vadd.f32 %v2778, %v3170
      %v3261 = vadd.f32 %v2779, %v3173
      %v3262 = vadd.f32 %v2780, %v3178
      %v3263 = vadd.f32 %v2781, %v3181
      %v3264 = vadd.f32 %v2782, %v3186
      %v3265 = vadd.f32 %v2783, %v3189
      %v3266 = vadd.f32 %v2784, %v3194
      %v3267 = vadd.f32 %v2785, %v3197
      %v3268 = vadd.f32 %v2786, %v3202
      %v3269 = vadd.f32 %v2787, %v3205
      %v3270 = vadd.f32 %v2788, %v3210
      %v3271 = vadd.f32 %v2789, %v3213
      %v3272 = vadd.f32 %v2790, %v3218
      %v3273 = vadd.f32 %v2791, %v3221
      %v3274 = vadd.f32 %v2792, %v3226
      %v3275 = vadd.f32 %v2793, %v3229
      %v3276 = vadd.f32 %v2794, %v3234
      %v3277 = vadd.f32 %v2795, %v3237
      %v3278 = vadd.f32 %v2796, %v3242
      %v3279 = vadd.f32 %v2797, %v3245
      %s3280 = scalar_lea.vmem %s196, 24
      %v3281 = vld [vmem:[%s3280] sm:$0xf]
      %v3282 = vld [vmem:[%s3280 + $0x4] sm:$0xf]
      %v3283 = vld [vmem:[%s3280 + $0xc] sm:$0xf]
      %v3284 = vld [vmem:[%s3280 + $0x10] sm:$0xf]
      %v3285 = vld [vmem:[%s3280 + $0x18] sm:$0xf]
      %v3286 = vld [vmem:[%s3280 + $0x1c] sm:$0xf]
      %v3287 = vld [vmem:[%s3280 + $0x24] sm:$0xf]
      %v3288 = vld [vmem:[%s3280 + $0x28] sm:$0xf]
      %v3289 = vld [vmem:[%s3280 + $0x30] sm:$0xf]
      %v3290 = vld [vmem:[%s3280 + $0x34] sm:$0xf]
      %v3291 = vld [vmem:[%s3280 + $0x3c] sm:$0xf]
      %v3292 = vld [vmem:[%s3280 + $0x40] sm:$0xf]
      %v3293 = vld [vmem:[%s3280 + $0x48] sm:$0xf]
      %v3294 = vld [vmem:[%s3280 + $0x4c] sm:$0xf]
      %v3295 = vld [vmem:[%s3280 + $0x54] sm:$0xf]
      %v3296 = vld [vmem:[%s3280 + $0x58] sm:$0xf]
      %v3297 = vld [vmem:[%s3280 + $0x60] sm:$0xf]
      %v3298 = vld [vmem:[%s3280 + $0x64] sm:$0xf]
      %v3299 = vld [vmem:[%s3280 + $0x6c] sm:$0xf]
      %v3300 = vld [vmem:[%s3280 + $0x70] sm:$0xf]
      %v3301 = vld [vmem:[%s3280 + $0x78] sm:$0xf]
      %v3302 = vld [vmem:[%s3280 + $0x7c] sm:$0xf]
      %v3303 = vld [vmem:[%s3280 + $0x84] sm:$0xf]
      %v3304 = vld [vmem:[%s3280 + $0x88] sm:$0xf]
      %v3305 = vld [vmem:[%s3280 + $0x90] sm:$0xf]
      %v3306 = vld [vmem:[%s3280 + $0x94] sm:$0xf]
      %v3307 = vld [vmem:[%s3280 + $0x9c] sm:$0xf]
      %v3308 = vld [vmem:[%s3280 + $0xa0] sm:$0xf]
      %v3309 = vld [vmem:[%s3280 + $0xa8] sm:$0xf]
      %v3310 = vld [vmem:[%s3280 + $0xac] sm:$0xf]
      %v3311 = vld [vmem:[%s3280 + $0xb4] sm:$0xf]
      %v3312 = vld [vmem:[%s3280 + $0xb8] sm:$0xf]
      %s3313 = scalar_lea.vmem %s1, 96
      %v3314 = vld [vmem:[%s3313] sm:$0xf]
      %v3315 = vld [vmem:[%s3313 + $0x4] sm:$0xf]
      %v3316 = vld [vmem:[%s3313 + $0x8] sm:$0xf]
      %v3317 = vld [vmem:[%s3313 + $0xc] sm:$0xf]
      %v3350 = vunpack.c.l.b16 %v3281
      %v3351 = vunpack.c.l.b16 %v3282
      %v3352 = vunpack.c.l.b16 %v3283
      %v3353 = vunpack.c.l.b16 %v3284
      %v3354 = vunpack.c.l.b16 %v3285
      %v3355 = vunpack.c.l.b16 %v3286
      %v3356 = vunpack.c.l.b16 %v3287
      %v3357 = vunpack.c.l.b16 %v3288
      %v3358 = vunpack.c.l.b16 %v3289
      %v3359 = vunpack.c.l.b16 %v3290
      %v3360 = vunpack.c.l.b16 %v3291
      %v3361 = vunpack.c.l.b16 %v3292
      %v3362 = vunpack.c.l.b16 %v3293
      %v3363 = vunpack.c.l.b16 %v3294
      %v3364 = vunpack.c.l.b16 %v3295
      %v3365 = vunpack.c.l.b16 %v3296
      %v3366 = vunpack.c.l.b16 %v3297
      %v3367 = vunpack.c.l.b16 %v3298
      %v3368 = vunpack.c.l.b16 %v3299
      %v3369 = vunpack.c.l.b16 %v3300
      %v3370 = vunpack.c.l.b16 %v3301
      %v3371 = vunpack.c.l.b16 %v3302
      %v3372 = vunpack.c.l.b16 %v3303
      %v3373 = vunpack.c.l.b16 %v3304
      %v3374 = vunpack.c.l.b16 %v3305
      %v3375 = vunpack.c.l.b16 %v3306
      %v3376 = vunpack.c.l.b16 %v3307
      %v3377 = vunpack.c.l.b16 %v3308
      %v3378 = vunpack.c.l.b16 %v3309
      %v3379 = vunpack.c.l.b16 %v3310
      %v3380 = vunpack.c.l.b16 %v3311
      %v3381 = vunpack.c.l.b16 %v3312
      %v3382 = vpack.c.b16 %v3351, %v3350
      %v3383 = vpack.c.b16 %v3353, %v3352
      %v3384 = vpack.c.b16 %v3355, %v3354
      %v3385 = vpack.c.b16 %v3357, %v3356
      %v3386 = vpack.c.b16 %v3359, %v3358
      %v3387 = vpack.c.b16 %v3361, %v3360
      %v3388 = vpack.c.b16 %v3363, %v3362
      %v3389 = vpack.c.b16 %v3365, %v3364
      %v3390 = vpack.c.b16 %v3367, %v3366
      %v3391 = vpack.c.b16 %v3369, %v3368
      %v3392 = vpack.c.b16 %v3371, %v3370
      %v3393 = vpack.c.b16 %v3373, %v3372
      %v3394 = vpack.c.b16 %v3375, %v3374
      %v3395 = vpack.c.b16 %v3377, %v3376
      %v3396 = vpack.c.b16 %v3379, %v3378
      %v3397 = vpack.c.b16 %v3381, %v3380
      %v3402 = vunpack.c.l.b16 %v3314
      %v3403 = vunpack.c.l.b16 %v3315
      %v3404 = vunpack.c.l.b16 %v3316
      %v3405 = vunpack.c.l.b16 %v3317
      %v3406 = vpack.c.b16 %v3403, %v3402
      %v3407 = vpack.c.b16 %v3405, %v3404
      %v3411 = vsel %vm709, %v3382, 0
      %v3414 = vsel %vm709, %v3383, 0
      %v3417 = vsel %vm709, %v3384, 0
      %v3420 = vsel %vm709, %v3385, 0
      %v3423 = vsel %vm709, %v3386, 0
      %v3426 = vsel %vm709, %v3387, 0
      %v3429 = vsel %vm709, %v3388, 0
      %v3432 = vsel %vm709, %v3389, 0
      %v3435 = vsel %vm709, %v3390, 0
      %v3438 = vsel %vm709, %v3391, 0
      %v3441 = vsel %vm709, %v3392, 0
      %v3444 = vsel %vm709, %v3393, 0
      %v3447 = vsel %vm709, %v3394, 0
      %v3450 = vsel %vm709, %v3395, 0
      %v3453 = vsel %vm709, %v3396, 0
      %v3456 = vsel %vm709, %v3397, 0
      %3458 = vmatprep.subr.bf16.mxu0 0
      %3459 = vmatpush1.bf16.msra.mxu0 %v3406
      %3460 = vmatprep.subr.bf16.mxu0 0
      %3461 = vmatpush1.bf16.msra.mxu0 %v3407
      %3462 = vmatprep.subr.bf16.mxu0 0
      %3463 = vmatpush1.bf16.msra.mxu0 0
      %3464 = vmatprep.subr.bf16.mxu0 0
      %3465 = vmatpush1.bf16.msra.mxu0 0
      %3466 = vmatprep.subr.bf16.mxu0 0
      %3467 = vmatpush1.bf16.msra.mxu0 0
      %3468 = vmatprep.subr.bf16.mxu0 0
      %3469 = vmatpush1.bf16.msra.mxu0 0
      %3470 = vmatprep.subr.bf16.mxu0 0
      %3471 = vmatpush1.bf16.msra.mxu0 0
      %3472 = vmatprep.subr.bf16.mxu0 0
      %3473 = vmatpush1.bf16.msra.mxu0 0
      %3474 = vmatprep.subr.bf16.mxu0 0
      %3475 = vmatpush1.bf16.msra.mxu0 0
      %3476 = vmatprep.subr.bf16.mxu0 0
      %3477 = vmatpush1.bf16.msra.mxu0 0
      %3478 = vmatprep.subr.bf16.mxu0 0
      %3479 = vmatpush1.bf16.msra.mxu0 0
      %3480 = vmatprep.subr.bf16.mxu0 0
      %3481 = vmatpush1.bf16.msra.mxu0 0
      %3482 = vmatprep.subr.bf16.mxu0 0
      %3483 = vmatpush1.bf16.msra.mxu0 0
      %3484 = vmatprep.subr.bf16.mxu0 0
      %3485 = vmatpush1.bf16.msra.mxu0 0
      %3486 = vmatprep.subr.bf16.mxu0 0
      %3487 = vmatpush1.bf16.msra.mxu0 0
      %3488 = vmatprep.subr.bf16.mxu0 0
      %3489 = vmatpush1.bf16.msra.mxu0 0
      %3490 = vmatprep.mubr.bf16.mxu0 0
      %3491 = vmatmul.mubr.bf16.gmra.mrb[0].mxu0 %v3411
      %v3492 = vpop.f32.mrb[0].mxu0
      %v3493 = vadd.f32 0.0, %v3492
      %v3494 = vpop.f32.mrb[0].mxu0
      %v3495 = vpop.f32.mrb[0].mxu0
      %v3496 = vadd.f32 0.0, %v3495
      %v3497 = vpop.f32.mrb[0].mxu0
      %3498 = vmatprep.mubr.bf16.mxu0 0
      %3499 = vmatmul.mubr.bf16.gmra.mrb[0].mxu0 %v3414
      %v3500 = vpop.f32.mrb[0].mxu0
      %v3501 = vadd.f32 0.0, %v3500
      %v3502 = vpop.f32.mrb[0].mxu0
      %v3503 = vpop.f32.mrb[0].mxu0
      %v3504 = vadd.f32 0.0, %v3503
      %v3505 = vpop.f32.mrb[0].mxu0
      %3506 = vmatprep.mubr.bf16.mxu0 0
      %3507 = vmatmul.mubr.bf16.gmra.mrb[0].mxu0 %v3417
      %v3508 = vpop.f32.mrb[0].mxu0
      %v3509 = vadd.f32 0.0, %v3508
      %v3510 = vpop.f32.mrb[0].mxu0
      %v3511 = vpop.f32.mrb[0].mxu0
      %v3512 = vadd.f32 0.0, %v3511
      %v3513 = vpop.f32.mrb[0].mxu0
      %3514 = vmatprep.mubr.bf16.mxu0 0
      %3515 = vmatmul.mubr.bf16.gmra.mrb[0].mxu0 %v3420
      %v3516 = vpop.f32.mrb[0].mxu0
      %v3517 = vadd.f32 0.0, %v3516
      %v3518 = vpop.f32.mrb[0].mxu0
      %v3519 = vpop.f32.mrb[0].mxu0
      %v3520 = vadd.f32 0.0, %v3519
      %v3521 = vpop.f32.mrb[0].mxu0
      %3522 = vmatprep.mubr.bf16.mxu0 0
      %3523 = vmatmul.mubr.bf16.gmra.mrb[0].mxu0 %v3423
      %v3524 = vpop.f32.mrb[0].mxu0
      %v3525 = vadd.f32 0.0, %v3524
      %v3526 = vpop.f32.mrb[0].mxu0
      %v3527 = vpop.f32.mrb[0].mxu0
      %v3528 = vadd.f32 0.0, %v3527
      %v3529 = vpop.f32.mrb[0].mxu0
      %3530 = vmatprep.mubr.bf16.mxu0 0
      %3531 = vmatmul.mubr.bf16.gmra.mrb[0].mxu0 %v3426
      %v3532 = vpop.f32.mrb[0].mxu0
      %v3533 = vadd.f32 0.0, %v3532
      %v3534 = vpop.f32.mrb[0].mxu0
      %v3535 = vpop.f32.mrb[0].mxu0
      %v3536 = vadd.f32 0.0, %v3535
      %v3537 = vpop.f32.mrb[0].mxu0
      %3538 = vmatprep.mubr.bf16.mxu0 0
      %3539 = vmatmul.mubr.bf16.gmra.mrb[0].mxu0 %v3429
      %v3540 = vpop.f32.mrb[0].mxu0
      %v3541 = vadd.f32 0.0, %v3540
      %v3542 = vpop.f32.mrb[0].mxu0
      %v3543 = vpop.f32.mrb[0].mxu0
      %v3544 = vadd.f32 0.0, %v3543
      %v3545 = vpop.f32.mrb[0].mxu0
      %3546 = vmatprep.mubr.bf16.mxu0 0
      %3547 = vmatmul.mubr.bf16.gmra.mrb[0].mxu0 %v3432
      %v3548 = vpop.f32.mrb[0].mxu0
      %v3549 = vadd.f32 0.0, %v3548
      %v3550 = vpop.f32.mrb[0].mxu0
      %v3551 = vpop.f32.mrb[0].mxu0
      %v3552 = vadd.f32 0.0, %v3551
      %v3553 = vpop.f32.mrb[0].mxu0
      %3554 = vmatprep.mubr.bf16.mxu0 0
      %3555 = vmatmul.mubr.bf16.gmra.mrb[0].mxu0 %v3435
      %v3556 = vpop.f32.mrb[0].mxu0
      %v3557 = vadd.f32 0.0, %v3556
      %v3558 = vpop.f32.mrb[0].mxu0
      %v3559 = vpop.f32.mrb[0].mxu0
      %v3560 = vadd.f32 0.0, %v3559
      %v3561 = vpop.f32.mrb[0].mxu0
      %3562 = vmatprep.mubr.bf16.mxu0 0
      %3563 = vmatmul.mubr.bf16.gmra.mrb[0].mxu0 %v3438
      %v3564 = vpop.f32.mrb[0].mxu0
      %v3565 = vadd.f32 0.0, %v3564
      %v3566 = vpop.f32.mrb[0].mxu0
      %v3567 = vpop.f32.mrb[0].mxu0
      %v3568 = vadd.f32 0.0, %v3567
      %v3569 = vpop.f32.mrb[0].mxu0
      %3570 = vmatprep.mubr.bf16.mxu0 0
      %3571 = vmatmul.mubr.bf16.gmra.mrb[0].mxu0 %v3441
      %v3572 = vpop.f32.mrb[0].mxu0
      %v3573 = vadd.f32 0.0, %v3572
      %v3574 = vpop.f32.mrb[0].mxu0
      %v3575 = vpop.f32.mrb[0].mxu0
      %v3576 = vadd.f32 0.0, %v3575
      %v3577 = vpop.f32.mrb[0].mxu0
      %3578 = vmatprep.mubr.bf16.mxu0 0
      %3579 = vmatmul.mubr.bf16.gmra.mrb[0].mxu0 %v3444
      %v3580 = vpop.f32.mrb[0].mxu0
      %v3581 = vadd.f32 0.0, %v3580
      %v3582 = vpop.f32.mrb[0].mxu0
      %v3583 = vpop.f32.mrb[0].mxu0
      %v3584 = vadd.f32 0.0, %v3583
      %v3585 = vpop.f32.mrb[0].mxu0
      %3586 = vmatprep.mubr.bf16.mxu0 0
      %3587 = vmatmul.mubr.bf16.gmra.mrb[0].mxu0 %v3447
      %v3588 = vpop.f32.mrb[0].mxu0
      %v3589 = vadd.f32 0.0, %v3588
      %v3590 = vpop.f32.mrb[0].mxu0
      %v3591 = vpop.f32.mrb[0].mxu0
      %v3592 = vadd.f32 0.0, %v3591
      %v3593 = vpop.f32.mrb[0].mxu0
      %3594 = vmatprep.mubr.bf16.mxu0 0
      %3595 = vmatmul.mubr.bf16.gmra.mrb[0].mxu0 %v3450
      %v3596 = vpop.f32.mrb[0].mxu0
      %v3597 = vadd.f32 0.0, %v3596
      %v3598 = vpop.f32.mrb[0].mxu0
      %v3599 = vpop.f32.mrb[0].mxu0
      %v3600 = vadd.f32 0.0, %v3599
      %v3601 = vpop.f32.mrb[0].mxu0
      %3602 = vmatprep.mubr.bf16.mxu0 0
      %3603 = vmatmul.mubr.bf16.gmra.mrb[0].mxu0 %v3453
      %v3604 = vpop.f32.mrb[0].mxu0
      %v3605 = vadd.f32 0.0, %v3604
      %v3606 = vpop.f32.mrb[0].mxu0
      %v3607 = vpop.f32.mrb[0].mxu0
      %v3608 = vadd.f32 0.0, %v3607
      %v3609 = vpop.f32.mrb[0].mxu0
      %3610 = vmatprep.mubr.bf16.mxu0 0
      %3611 = vmatmul.mubr.bf16.gmra.mrb[0].mxu0 %v3456
      %v3612 = vpop.f32.mrb[0].mxu0
      %v3613 = vadd.f32 0.0, %v3612
      %v3614 = vpop.f32.mrb[0].mxu0
      %v3615 = vpop.f32.mrb[0].mxu0
      %v3616 = vadd.f32 0.0, %v3615
      %v3617 = vpop.f32.mrb[0].mxu0
      %3618 = vdwg.mxu0
      %v3619 = vadd.f32 %v3248, %v3493
      %v3620 = vadd.f32 %v3249, %v3496
      %v3621 = vadd.f32 %v3250, %v3501
      %v3622 = vadd.f32 %v3251, %v3504
      %v3623 = vadd.f32 %v3252, %v3509
      %v3624 = vadd.f32 %v3253, %v3512
      %v3625 = vadd.f32 %v3254, %v3517
      %v3626 = vadd.f32 %v3255, %v3520
      %v3627 = vadd.f32 %v3256, %v3525
      %v3628 = vadd.f32 %v3257, %v3528
      %v3629 = vadd.f32 %v3258, %v3533
      %v3630 = vadd.f32 %v3259, %v3536
      %v3631 = vadd.f32 %v3260, %v3541
      %v3632 = vadd.f32 %v3261, %v3544
      %v3633 = vadd.f32 %v3262, %v3549
      %v3634 = vadd.f32 %v3263, %v3552
      %v3635 = vadd.f32 %v3264, %v3557
      %v3636 = vadd.f32 %v3265, %v3560
      %v3637 = vadd.f32 %v3266, %v3565
      %v3638 = vadd.f32 %v3267, %v3568
      %v3639 = vadd.f32 %v3268, %v3573
      %v3640 = vadd.f32 %v3269, %v3576
      %v3641 = vadd.f32 %v3270, %v3581
      %v3642 = vadd.f32 %v3271, %v3584
      %v3643 = vadd.f32 %v3272, %v3589
      %v3644 = vadd.f32 %v3273, %v3592
      %v3645 = vadd.f32 %v3274, %v3597
      %v3646 = vadd.f32 %v3275, %v3600
      %v3647 = vadd.f32 %v3276, %v3605
      %v3648 = vadd.f32 %v3277, %v3608
      %v3649 = vadd.f32 %v3278, %v3613
      %v3650 = vadd.f32 %v3279, %v3616
      %v3651 = vld [vmem:[%s3280] sm:$0xf]
      %v3652 = vld [vmem:[%s3280 + $0x4] sm:$0xf]
      %v3653 = vld [vmem:[%s3280 + $0x8] sm:$0x1]
      %v3654 = vld [vmem:[%s3280 + $0xc] sm:$0xf]
      %v3655 = vld [vmem:[%s3280 + $0x10] sm:$0xf]
      %v3656 = vld [vmem:[%s3280 + $0x14] sm:$0x1]
      %v3657 = vld [vmem:[%s3280 + $0x18] sm:$0xf]
      %v3658 = vld [vmem:[%s3280 + $0x1c] sm:$0xf]
      %v3659 = vld [vmem:[%s3280 + $0x20] sm:$0x1]
      %v3660 = vld [vmem:[%s3280 + $0x24] sm:$0xf]
      %v3661 = vld [vmem:[%s3280 + $0x28] sm:$0xf]
      %v3662 = vld [vmem:[%s3280 + $0x2c] sm:$0x1]
      %v3663 = vld [vmem:[%s3280 + $0x30] sm:$0xf]
      %v3664 = vld [vmem:[%s3280 + $0x34] sm:$0xf]
      %v3665 = vld [vmem:[%s3280 + $0x38] sm:$0x1]
      %v3666 = vld [vmem:[%s3280 + $0x3c] sm:$0xf]
      %v3667 = vld [vmem:[%s3280 + $0x40] sm:$0xf]
      %v3668 = vld [vmem:[%s3280 + $0x44] sm:$0x1]
      %v3669 = vld [vmem:[%s3280 + $0x48] sm:$0xf]
      %v3670 = vld [vmem:[%s3280 + $0x4c] sm:$0xf]
      %v3671 = vld [vmem:[%s3280 + $0x50] sm:$0x1]
      %v3672 = vld [vmem:[%s3280 + $0x54] sm:$0xf]
      %v3673 = vld [vmem:[%s3280 + $0x58] sm:$0xf]
      %v3674 = vld [vmem:[%s3280 + $0x5c] sm:$0x1]
      %v3675 = vld [vmem:[%s3280 + $0x60] sm:$0xf]
      %v3676 = vld [vmem:[%s3280 + $0x64] sm:$0xf]
      %v3677 = vld [vmem:[%s3280 + $0x68] sm:$0x1]
      %v3678 = vld [vmem:[%s3280 + $0x6c] sm:$0xf]
      %v3679 = vld [vmem:[%s3280 + $0x70] sm:$0xf]
      %v3680 = vld [vmem:[%s3280 + $0x74] sm:$0x1]
      %v3681 = vld [vmem:[%s3280 + $0x78] sm:$0xf]
      %v3682 = vld [vmem:[%s3280 + $0x7c] sm:$0xf]
      %v3683 = vld [vmem:[%s3280 + $0x80] sm:$0x1]
      %v3684 = vld [vmem:[%s3280 + $0x84] sm:$0xf]
      %v3685 = vld [vmem:[%s3280 + $0x88] sm:$0xf]
      %v3686 = vld [vmem:[%s3280 + $0x8c] sm:$0x1]
      %v3687 = vld [vmem:[%s3280 + $0x90] sm:$0xf]
      %v3688 = vld [vmem:[%s3280 + $0x94] sm:$0xf]
      %v3689 = vld [vmem:[%s3280 + $0x98] sm:$0x1]
      %v3690 = vld [vmem:[%s3280 + $0x9c] sm:$0xf]
      %v3691 = vld [vmem:[%s3280 + $0xa0] sm:$0xf]
      %v3692 = vld [vmem:[%s3280 + $0xa4] sm:$0x1]
      %v3693 = vld [vmem:[%s3280 + $0xa8] sm:$0xf]
      %v3694 = vld [vmem:[%s3280 + $0xac] sm:$0xf]
      %v3695 = vld [vmem:[%s3280 + $0xb0] sm:$0x1]
      %v3696 = vld [vmem:[%s3280 + $0xb4] sm:$0xf]
      %v3697 = vld [vmem:[%s3280 + $0xb8] sm:$0xf]
      %v3698 = vld [vmem:[%s3280 + $0xbc] sm:$0x1]
      %v3700 = vshrl.u32 %v3651, 16
      %v3702 = vrot.slane %v3700, 4
      %v3703 = vshll.u32 %v3651, 16
      %v3705 = vrot.slane %v3703, 5
      %v3706 = vor.u32 %v3702, %v3705
      %v3707 = vrot.slane %v3706, 4
      %v3709 = vshll.u32 %v3652, 16
      %v3711 = vrot.slane %v3709, 5
      %v3712 = vsel %vm259, %v3707, %v3711
      %v3713 = vshrl.u32 %v3652, 16
      %v3715 = vrot.slane %v3713, 4
      %v3716 = vor.u32 %v3715, %v3711
      %v3717 = vrot.slane %v3716, 4
      %v3719 = vshll.u32 %v3653, 16
      %v3721 = vrot.slane %v3719, 5
      %v3722 = vsel %vm259, %v3717, %v3721
      %v3724 = vshrl.u32 %v3654, 16
      %v3726 = vrot.slane %v3724, 4
      %v3727 = vshll.u32 %v3654, 16
      %v3729 = vrot.slane %v3727, 5
      %v3730 = vor.u32 %v3726, %v3729
      %v3731 = vrot.slane %v3730, 4
      %v3733 = vshll.u32 %v3655, 16
      %v3735 = vrot.slane %v3733, 5
      %v3736 = vsel %vm259, %v3731, %v3735
      %v3737 = vshrl.u32 %v3655, 16
      %v3739 = vrot.slane %v3737, 4
      %v3740 = vor.u32 %v3739, %v3735
      %v3741 = vrot.slane %v3740, 4
      %v3743 = vshll.u32 %v3656, 16
      %v3745 = vrot.slane %v3743, 5
      %v3746 = vsel %vm259, %v3741, %v3745
      %v3748 = vshrl.u32 %v3657, 16
      %v3750 = vrot.slane %v3748, 4
      %v3751 = vshll.u32 %v3657, 16
      %v3753 = vrot.slane %v3751, 5
      %v3754 = vor.u32 %v3750, %v3753
      %v3755 = vrot.slane %v3754, 4
      %v3757 = vshll.u32 %v3658, 16
      %v3759 = vrot.slane %v3757, 5
      %v3760 = vsel %vm259, %v3755, %v3759
      %v3761 = vshrl.u32 %v3658, 16
      %v3763 = vrot.slane %v3761, 4
      %v3764 = vor.u32 %v3763, %v3759
      %v3765 = vrot.slane %v3764, 4
      %v3767 = vshll.u32 %v3659, 16
      %v3769 = vrot.slane %v3767, 5
      %v3770 = vsel %vm259, %v3765, %v3769
      %v3772 = vshrl.u32 %v3660, 16
      %v3774 = vrot.slane %v3772, 4
      %v3775 = vshll.u32 %v3660, 16
      %v3777 = vrot.slane %v3775, 5
      %v3778 = vor.u32 %v3774, %v3777
      %v3779 = vrot.slane %v3778, 4
      %v3781 = vshll.u32 %v3661, 16
      %v3783 = vrot.slane %v3781, 5
      %v3784 = vsel %vm259, %v3779, %v3783
      %v3785 = vshrl.u32 %v3661, 16
      %v3787 = vrot.slane %v3785, 4
      %v3788 = vor.u32 %v3787, %v3783
      %v3789 = vrot.slane %v3788, 4
      %v3791 = vshll.u32 %v3662, 16
      %v3793 = vrot.slane %v3791, 5
      %v3794 = vsel %vm259, %v3789, %v3793
      %v3796 = vshrl.u32 %v3663, 16
      %v3798 = vrot.slane %v3796, 4
      %v3799 = vshll.u32 %v3663, 16
      %v3801 = vrot.slane %v3799, 5
      %v3802 = vor.u32 %v3798, %v3801
      %v3803 = vrot.slane %v3802, 4
      %v3805 = vshll.u32 %v3664, 16
      %v3807 = vrot.slane %v3805, 5
      %v3808 = vsel %vm259, %v3803, %v3807
      %v3809 = vshrl.u32 %v3664, 16
      %v3811 = vrot.slane %v3809, 4
      %v3812 = vor.u32 %v3811, %v3807
      %v3813 = vrot.slane %v3812, 4
      %v3815 = vshll.u32 %v3665, 16
      %v3817 = vrot.slane %v3815, 5
      %v3818 = vsel %vm259, %v3813, %v3817
      %v3820 = vshrl.u32 %v3666, 16
      %v3822 = vrot.slane %v3820, 4
      %v3823 = vshll.u32 %v3666, 16
      %v3825 = vrot.slane %v3823, 5
      %v3826 = vor.u32 %v3822, %v3825
      %v3827 = vrot.slane %v3826, 4
      %v3829 = vshll.u32 %v3667, 16
      %v3831 = vrot.slane %v3829, 5
      %v3832 = vsel %vm259, %v3827, %v3831
      %v3833 = vshrl.u32 %v3667, 16
      %v3835 = vrot.slane %v3833, 4
      %v3836 = vor.u32 %v3835, %v3831
      %v3837 = vrot.slane %v3836, 4
      %v3839 = vshll.u32 %v3668, 16
      %v3841 = vrot.slane %v3839, 5
      %v3842 = vsel %vm259, %v3837, %v3841
      %v3844 = vshrl.u32 %v3669, 16
      %v3846 = vrot.slane %v3844, 4
      %v3847 = vshll.u32 %v3669, 16
      %v3849 = vrot.slane %v3847, 5
      %v3850 = vor.u32 %v3846, %v3849
      %v3851 = vrot.slane %v3850, 4
      %v3853 = vshll.u32 %v3670, 16
      %v3855 = vrot.slane %v3853, 5
      %v3856 = vsel %vm259, %v3851, %v3855
      %v3857 = vshrl.u32 %v3670, 16
      %v3859 = vrot.slane %v3857, 4
      %v3860 = vor.u32 %v3859, %v3855
      %v3861 = vrot.slane %v3860, 4
      %v3863 = vshll.u32 %v3671, 16
      %v3865 = vrot.slane %v3863, 5
      %v3866 = vsel %vm259, %v3861, %v3865
      %v3868 = vshrl.u32 %v3672, 16
      %v3870 = vrot.slane %v3868, 4
      %v3871 = vshll.u32 %v3672, 16
      %v3873 = vrot.slane %v3871, 5
      %v3874 = vor.u32 %v3870, %v3873
      %v3875 = vrot.slane %v3874, 4
      %v3877 = vshll.u32 %v3673, 16
      %v3879 = vrot.slane %v3877, 5
      %v3880 = vsel %vm259, %v3875, %v3879
      %v3881 = vshrl.u32 %v3673, 16
      %v3883 = vrot.slane %v3881, 4
      %v3884 = vor.u32 %v3883, %v3879
      %v3885 = vrot.slane %v3884, 4
      %v3887 = vshll.u32 %v3674, 16
      %v3889 = vrot.slane %v3887, 5
      %v3890 = vsel %vm259, %v3885, %v3889
      %v3892 = vshrl.u32 %v3675, 16
      %v3894 = vrot.slane %v3892, 4
      %v3895 = vshll.u32 %v3675, 16
      %v3897 = vrot.slane %v3895, 5
      %v3898 = vor.u32 %v3894, %v3897
      %v3899 = vrot.slane %v3898, 4
      %v3901 = vshll.u32 %v3676, 16
      %v3903 = vrot.slane %v3901, 5
      %v3904 = vsel %vm259, %v3899, %v3903
      %v3905 = vshrl.u32 %v3676, 16
      %v3907 = vrot.slane %v3905, 4
      %v3908 = vor.u32 %v3907, %v3903
      %v3909 = vrot.slane %v3908, 4
      %v3911 = vshll.u32 %v3677, 16
      %v3913 = vrot.slane %v3911, 5
      %v3914 = vsel %vm259, %v3909, %v3913
      %v3916 = vshrl.u32 %v3678, 16
      %v3918 = vrot.slane %v3916, 4
      %v3919 = vshll.u32 %v3678, 16
      %v3921 = vrot.slane %v3919, 5
      %v3922 = vor.u32 %v3918, %v3921
      %v3923 = vrot.slane %v3922, 4
      %v3925 = vshll.u32 %v3679, 16
      %v3927 = vrot.slane %v3925, 5
      %v3928 = vsel %vm259, %v3923, %v3927
      %v3929 = vshrl.u32 %v3679, 16
      %v3931 = vrot.slane %v3929, 4
      %v3932 = vor.u32 %v3931, %v3927
      %v3933 = vrot.slane %v3932, 4
      %v3935 = vshll.u32 %v3680, 16
      %v3937 = vrot.slane %v3935, 5
      %v3938 = vsel %vm259, %v3933, %v3937
      %v3940 = vshrl.u32 %v3681, 16
      %v3942 = vrot.slane %v3940, 4
      %v3943 = vshll.u32 %v3681, 16
      %v3945 = vrot.slane %v3943, 5
      %v3946 = vor.u32 %v3942, %v3945
      %v3947 = vrot.slane %v3946, 4
      %v3949 = vshll.u32 %v3682, 16
      %v3951 = vrot.slane %v3949, 5
      %v3952 = vsel %vm259, %v3947, %v3951
      %v3953 = vshrl.u32 %v3682, 16
      %v3955 = vrot.slane %v3953, 4
      %v3956 = vor.u32 %v3955, %v3951
      %v3957 = vrot.slane %v3956, 4
      %v3959 = vshll.u32 %v3683, 16
      %v3961 = vrot.slane %v3959, 5
      %v3962 = vsel %vm259, %v3957, %v3961
      %v3964 = vshrl.u32 %v3684, 16
      %v3966 = vrot.slane %v3964, 4
      %v3967 = vshll.u32 %v3684, 16
      %v3969 = vrot.slane %v3967, 5
      %v3970 = vor.u32 %v3966, %v3969
      %v3971 = vrot.slane %v3970, 4
      %v3973 = vshll.u32 %v3685, 16
      %v3975 = vrot.slane %v3973, 5
      %v3976 = vsel %vm259, %v3971, %v3975
      %v3977 = vshrl.u32 %v3685, 16
      %v3979 = vrot.slane %v3977, 4
      %v3980 = vor.u32 %v3979, %v3975
      %v3981 = vrot.slane %v3980, 4
      %v3983 = vshll.u32 %v3686, 16
      %v3985 = vrot.slane %v3983, 5
      %v3986 = vsel %vm259, %v3981, %v3985
      %v3988 = vshrl.u32 %v3687, 16
      %v3990 = vrot.slane %v3988, 4
      %v3991 = vshll.u32 %v3687, 16
      %v3993 = vrot.slane %v3991, 5
      %v3994 = vor.u32 %v3990, %v3993
      %v3995 = vrot.slane %v3994, 4
      %v3997 = vshll.u32 %v3688, 16
      %v3999 = vrot.slane %v3997, 5
      %v4000 = vsel %vm259, %v3995, %v3999
      %v4001 = vshrl.u32 %v3688, 16
      %v4003 = vrot.slane %v4001, 4
      %v4004 = vor.u32 %v4003, %v3999
      %v4005 = vrot.slane %v4004, 4
      %v4007 = vshll.u32 %v3689, 16
      %v4009 = vrot.slane %v4007, 5
      %v4010 = vsel %vm259, %v4005, %v4009
      %v4012 = vshrl.u32 %v3690, 16
      %v4014 = vrot.slane %v4012, 4
      %v4015 = vshll.u32 %v3690, 16
      %v4017 = vrot.slane %v4015, 5
      %v4018 = vor.u32 %v4014, %v4017
      %v4019 = vrot.slane %v4018, 4
      %v4021 = vshll.u32 %v3691, 16
      %v4023 = vrot.slane %v4021, 5
      %v4024 = vsel %vm259, %v4019, %v4023
      %v4025 = vshrl.u32 %v3691, 16
      %v4027 = vrot.slane %v4025, 4
      %v4028 = vor.u32 %v4027, %v4023
      %v4029 = vrot.slane %v4028, 4
      %v4031 = vshll.u32 %v3692, 16
      %v4033 = vrot.slane %v4031, 5
      %v4034 = vsel %vm259, %v4029, %v4033
      %v4036 = vshrl.u32 %v3693, 16
      %v4038 = vrot.slane %v4036, 4
      %v4039 = vshll.u32 %v3693, 16
      %v4041 = vrot.slane %v4039, 5
      %v4042 = vor.u32 %v4038, %v4041
      %v4043 = vrot.slane %v4042, 4
      %v4045 = vshll.u32 %v3694, 16
      %v4047 = vrot.slane %v4045, 5
      %v4048 = vsel %vm259, %v4043, %v4047
      %v4049 = vshrl.u32 %v3694, 16
      %v4051 = vrot.slane %v4049, 4
      %v4052 = vor.u32 %v4051, %v4047
      %v4053 = vrot.slane %v4052, 4
      %v4055 = vshll.u32 %v3695, 16
      %v4057 = vrot.slane %v4055, 5
      %v4058 = vsel %vm259, %v4053, %v4057
      %v4060 = vshrl.u32 %v3696, 16
      %v4062 = vrot.slane %v4060, 4
      %v4063 = vshll.u32 %v3696, 16
      %v4065 = vrot.slane %v4063, 5
      %v4066 = vor.u32 %v4062, %v4065
      %v4067 = vrot.slane %v4066, 4
      %v4069 = vshll.u32 %v3697, 16
      %v4071 = vrot.slane %v4069, 5
      %v4072 = vsel %vm259, %v4067, %v4071
      %v4073 = vshrl.u32 %v3697, 16
      %v4075 = vrot.slane %v4073, 4
      %v4076 = vor.u32 %v4075, %v4071
      %v4077 = vrot.slane %v4076, 4
      %v4079 = vshll.u32 %v3698, 16
      %v4081 = vrot.slane %v4079, 5
      %v4082 = vsel %vm259, %v4077, %v4081
      %s4083 = scalar_lea.vmem %s1, 112
      %v4084 = vld [vmem:[%s4083] sm:$0xf]
      %v4085 = vld [vmem:[%s4083 + $0x4] sm:$0xf]
      %v4086 = vld [vmem:[%s4083 + $0x8] sm:$0xf]
      %v4087 = vld [vmem:[%s4083 + $0xc] sm:$0xf]
      %v4088 = vunpack.c.l.b16 %v3712
      %v4089 = vunpack.c.l.b16 %v3722
      %v4090 = vunpack.c.l.b16 %v3736
      %v4091 = vunpack.c.l.b16 %v3746
      %v4092 = vunpack.c.l.b16 %v3760
      %v4093 = vunpack.c.l.b16 %v3770
      %v4094 = vunpack.c.l.b16 %v3784
      %v4095 = vunpack.c.l.b16 %v3794
      %v4096 = vunpack.c.l.b16 %v3808
      %v4097 = vunpack.c.l.b16 %v3818
      %v4098 = vunpack.c.l.b16 %v3832
      %v4099 = vunpack.c.l.b16 %v3842
      %v4100 = vunpack.c.l.b16 %v3856
      %v4101 = vunpack.c.l.b16 %v3866
      %v4102 = vunpack.c.l.b16 %v3880
      %v4103 = vunpack.c.l.b16 %v3890
      %v4104 = vunpack.c.l.b16 %v3904
      %v4105 = vunpack.c.l.b16 %v3914
      %v4106 = vunpack.c.l.b16 %v3928
      %v4107 = vunpack.c.l.b16 %v3938
      %v4108 = vunpack.c.l.b16 %v3952
      %v4109 = vunpack.c.l.b16 %v3962
      %v4110 = vunpack.c.l.b16 %v3976
      %v4111 = vunpack.c.l.b16 %v3986
      %v4112 = vunpack.c.l.b16 %v4000
      %v4113 = vunpack.c.l.b16 %v4010
      %v4114 = vunpack.c.l.b16 %v4024
      %v4115 = vunpack.c.l.b16 %v4034
      %v4116 = vunpack.c.l.b16 %v4048
      %v4117 = vunpack.c.l.b16 %v4058
      %v4118 = vunpack.c.l.b16 %v4072
      %v4119 = vunpack.c.l.b16 %v4082
      %v4120 = vpack.c.b16 %v4089, %v4088
      %v4121 = vpack.c.b16 %v4091, %v4090
      %v4122 = vpack.c.b16 %v4093, %v4092
      %v4123 = vpack.c.b16 %v4095, %v4094
      %v4124 = vpack.c.b16 %v4097, %v4096
      %v4125 = vpack.c.b16 %v4099, %v4098
      %v4126 = vpack.c.b16 %v4101, %v4100
      %v4127 = vpack.c.b16 %v4103, %v4102
      %v4128 = vpack.c.b16 %v4105, %v4104
      %v4129 = vpack.c.b16 %v4107, %v4106
      %v4130 = vpack.c.b16 %v4109, %v4108
      %v4131 = vpack.c.b16 %v4111, %v4110
      %v4132 = vpack.c.b16 %v4113, %v4112
      %v4133 = vpack.c.b16 %v4115, %v4114
      %v4134 = vpack.c.b16 %v4117, %v4116
      %v4135 = vpack.c.b16 %v4119, %v4118
      %v4140 = vunpack.c.l.b16 %v4084
      %v4141 = vunpack.c.l.b16 %v4085
      %v4142 = vunpack.c.l.b16 %v4086
      %v4143 = vunpack.c.l.b16 %v4087
      %v4144 = vpack.c.b16 %v4141, %v4140
      %v4145 = vpack.c.b16 %v4143, %v4142
      %v4149 = vsel %vm709, %v4120, 0
      %v4152 = vsel %vm709, %v4121, 0
      %v4155 = vsel %vm709, %v4122, 0
      %v4158 = vsel %vm709, %v4123, 0
      %v4161 = vsel %vm709, %v4124, 0
      %v4164 = vsel %vm709, %v4125, 0
      %v4167 = vsel %vm709, %v4126, 0
      %v4170 = vsel %vm709, %v4127, 0
      %v4173 = vsel %vm709, %v4128, 0
      %v4176 = vsel %vm709, %v4129, 0
      %v4179 = vsel %vm709, %v4130, 0
      %v4182 = vsel %vm709, %v4131, 0
      %v4185 = vsel %vm709, %v4132, 0
      %v4188 = vsel %vm709, %v4133, 0
      %v4191 = vsel %vm709, %v4134, 0
      %v4194 = vsel %vm709, %v4135, 0
      %4196 = vmatprep.subr.bf16.mxu0 0
      %4197 = vmatpush1.bf16.msra.mxu0 %v4144
      %4198 = vmatprep.subr.bf16.mxu0 0
      %4199 = vmatpush1.bf16.msra.mxu0 %v4145
      %4200 = vmatprep.subr.bf16.mxu0 0
      %4201 = vmatpush1.bf16.msra.mxu0 0
      %4202 = vmatprep.subr.bf16.mxu0 0
      %4203 = vmatpush1.bf16.msra.mxu0 0
      %4204 = vmatprep.subr.bf16.mxu0 0
      %4205 = vmatpush1.bf16.msra.mxu0 0
      %4206 = vmatprep.subr.bf16.mxu0 0
      %4207 = vmatpush1.bf16.msra.mxu0 0
      %4208 = vmatprep.subr.bf16.mxu0 0
      %4209 = vmatpush1.bf16.msra.mxu0 0
      %4210 = vmatprep.subr.bf16.mxu0 0
      %4211 = vmatpush1.bf16.msra.mxu0 0
      %4212 = vmatprep.subr.bf16.mxu0 0
      %4213 = vmatpush1.bf16.msra.mxu0 0
      %4214 = vmatprep.subr.bf16.mxu0 0
      %4215 = vmatpush1.bf16.msra.mxu0 0
      %4216 = vmatprep.subr.bf16.mxu0 0
      %4217 = vmatpush1.bf16.msra.mxu0 0
      %4218 = vmatprep.subr.bf16.mxu0 0
      %4219 = vmatpush1.bf16.msra.mxu0 0
      %4220 = vmatprep.subr.bf16.mxu0 0
      %4221 = vmatpush1.bf16.msra.mxu0 0
      %4222 = vmatprep.subr.bf16.mxu0 0
      %4223 = vmatpush1.bf16.msra.mxu0 0
      %4224 = vmatprep.subr.bf16.mxu0 0
      %4225 = vmatpush1.bf16.msra.mxu0 0
      %4226 = vmatprep.subr.bf16.mxu0 0
      %4227 = vmatpush1.bf16.msra.mxu0 0
      %4228 = vmatprep.mubr.bf16.mxu0 0
      %4229 = vmatmul.mubr.bf16.gmra.mrb[0].mxu0 %v4149
      %v4230 = vpop.f32.mrb[0].mxu0
      %v4231 = vadd.f32 0.0, %v4230
      %v4232 = vpop.f32.mrb[0].mxu0
      %v4233 = vpop.f32.mrb[0].mxu0
      %v4234 = vadd.f32 0.0, %v4233
      %v4235 = vpop.f32.mrb[0].mxu0
      %4236 = vmatprep.mubr.bf16.mxu0 0
      %4237 = vmatmul.mubr.bf16.gmra.mrb[0].mxu0 %v4152
      %v4238 = vpop.f32.mrb[0].mxu0
      %v4239 = vadd.f32 0.0, %v4238
      %v4240 = vpop.f32.mrb[0].mxu0
      %v4241 = vpop.f32.mrb[0].mxu0
      %v4242 = vadd.f32 0.0, %v4241
      %v4243 = vpop.f32.mrb[0].mxu0
      %4244 = vmatprep.mubr.bf16.mxu0 0
      %4245 = vmatmul.mubr.bf16.gmra.mrb[0].mxu0 %v4155
      %v4246 = vpop.f32.mrb[0].mxu0
      %v4247 = vadd.f32 0.0, %v4246
      %v4248 = vpop.f32.mrb[0].mxu0
      %v4249 = vpop.f32.mrb[0].mxu0
      %v4250 = vadd.f32 0.0, %v4249
      %v4251 = vpop.f32.mrb[0].mxu0
      %4252 = vmatprep.mubr.bf16.mxu0 0
      %4253 = vmatmul.mubr.bf16.gmra.mrb[0].mxu0 %v4158
      %v4254 = vpop.f32.mrb[0].mxu0
      %v4255 = vadd.f32 0.0, %v4254
      %v4256 = vpop.f32.mrb[0].mxu0
      %v4257 = vpop.f32.mrb[0].mxu0
      %v4258 = vadd.f32 0.0, %v4257
      %v4259 = vpop.f32.mrb[0].mxu0
      %4260 = vmatprep.mubr.bf16.mxu0 0
      %4261 = vmatmul.mubr.bf16.gmra.mrb[0].mxu0 %v4161
      %v4262 = vpop.f32.mrb[0].mxu0
      %v4263 = vadd.f32 0.0, %v4262
      %v4264 = vpop.f32.mrb[0].mxu0
      %v4265 = vpop.f32.mrb[0].mxu0
      %v4266 = vadd.f32 0.0, %v4265
      %v4267 = vpop.f32.mrb[0].mxu0
      %4268 = vmatprep.mubr.bf16.mxu0 0
      %4269 = vmatmul.mubr.bf16.gmra.mrb[0].mxu0 %v4164
      %v4270 = vpop.f32.mrb[0].mxu0
      %v4271 = vadd.f32 0.0, %v4270
      %v4272 = vpop.f32.mrb[0].mxu0
      %v4273 = vpop.f32.mrb[0].mxu0
      %v4274 = vadd.f32 0.0, %v4273
      %v4275 = vpop.f32.mrb[0].mxu0
      %4276 = vmatprep.mubr.bf16.mxu0 0
      %4277 = vmatmul.mubr.bf16.gmra.mrb[0].mxu0 %v4167
      %v4278 = vpop.f32.mrb[0].mxu0
      %v4279 = vadd.f32 0.0, %v4278
      %v4280 = vpop.f32.mrb[0].mxu0
      %v4281 = vpop.f32.mrb[0].mxu0
      %v4282 = vadd.f32 0.0, %v4281
      %v4283 = vpop.f32.mrb[0].mxu0
      %4284 = vmatprep.mubr.bf16.mxu0 0
      %4285 = vmatmul.mubr.bf16.gmra.mrb[0].mxu0 %v4170
      %v4286 = vpop.f32.mrb[0].mxu0
      %v4287 = vadd.f32 0.0, %v4286
      %v4288 = vpop.f32.mrb[0].mxu0
      %v4289 = vpop.f32.mrb[0].mxu0
      %v4290 = vadd.f32 0.0, %v4289
      %v4291 = vpop.f32.mrb[0].mxu0
      %4292 = vmatprep.mubr.bf16.mxu0 0
      %4293 = vmatmul.mubr.bf16.gmra.mrb[0].mxu0 %v4173
      %v4294 = vpop.f32.mrb[0].mxu0
      %v4295 = vadd.f32 0.0, %v4294
      %v4296 = vpop.f32.mrb[0].mxu0
      %v4297 = vpop.f32.mrb[0].mxu0
      %v4298 = vadd.f32 0.0, %v4297
      %v4299 = vpop.f32.mrb[0].mxu0
      %4300 = vmatprep.mubr.bf16.mxu0 0
      %4301 = vmatmul.mubr.bf16.gmra.mrb[0].mxu0 %v4176
      %v4302 = vpop.f32.mrb[0].mxu0
      %v4303 = vadd.f32 0.0, %v4302
      %v4304 = vpop.f32.mrb[0].mxu0
      %v4305 = vpop.f32.mrb[0].mxu0
      %v4306 = vadd.f32 0.0, %v4305
      %v4307 = vpop.f32.mrb[0].mxu0
      %4308 = vmatprep.mubr.bf16.mxu0 0
      %4309 = vmatmul.mubr.bf16.gmra.mrb[0].mxu0 %v4179
      %v4310 = vpop.f32.mrb[0].mxu0
      %v4311 = vadd.f32 0.0, %v4310
      %v4312 = vpop.f32.mrb[0].mxu0
      %v4313 = vpop.f32.mrb[0].mxu0
      %v4314 = vadd.f32 0.0, %v4313
      %v4315 = vpop.f32.mrb[0].mxu0
      %4316 = vmatprep.mubr.bf16.mxu0 0
      %4317 = vmatmul.mubr.bf16.gmra.mrb[0].mxu0 %v4182
      %v4318 = vpop.f32.mrb[0].mxu0
      %v4319 = vadd.f32 0.0, %v4318
      %v4320 = vpop.f32.mrb[0].mxu0
      %v4321 = vpop.f32.mrb[0].mxu0
      %v4322 = vadd.f32 0.0, %v4321
      %v4323 = vpop.f32.mrb[0].mxu0
      %4324 = vmatprep.mubr.bf16.mxu0 0
      %4325 = vmatmul.mubr.bf16.gmra.mrb[0].mxu0 %v4185
      %v4326 = vpop.f32.mrb[0].mxu0
      %v4327 = vadd.f32 0.0, %v4326
      %v4328 = vpop.f32.mrb[0].mxu0
      %v4329 = vpop.f32.mrb[0].mxu0
      %v4330 = vadd.f32 0.0, %v4329
      %v4331 = vpop.f32.mrb[0].mxu0
      %4332 = vmatprep.mubr.bf16.mxu0 0
      %4333 = vmatmul.mubr.bf16.gmra.mrb[0].mxu0 %v4188
      %v4334 = vpop.f32.mrb[0].mxu0
      %v4335 = vadd.f32 0.0, %v4334
      %v4336 = vpop.f32.mrb[0].mxu0
      %v4337 = vpop.f32.mrb[0].mxu0
      %v4338 = vadd.f32 0.0, %v4337
      %v4339 = vpop.f32.mrb[0].mxu0
      %4340 = vmatprep.mubr.bf16.mxu0 0
      %4341 = vmatmul.mubr.bf16.gmra.mrb[0].mxu0 %v4191
      %v4342 = vpop.f32.mrb[0].mxu0
      %v4343 = vadd.f32 0.0, %v4342
      %v4344 = vpop.f32.mrb[0].mxu0
      %v4345 = vpop.f32.mrb[0].mxu0
      %v4346 = vadd.f32 0.0, %v4345
      %v4347 = vpop.f32.mrb[0].mxu0
      %4348 = vmatprep.mubr.bf16.mxu0 0
      %4349 = vmatmul.mubr.bf16.gmra.mrb[0].mxu0 %v4194
      %v4350 = vpop.f32.mrb[0].mxu0
      %v4351 = vadd.f32 0.0, %v4350
      %v4352 = vpop.f32.mrb[0].mxu0
      %v4353 = vpop.f32.mrb[0].mxu0
      %v4354 = vadd.f32 0.0, %v4353
      %v4355 = vpop.f32.mrb[0].mxu0
      %4356 = vdwg.mxu0
      %v4357 = vadd.f32 %v3619, %v4231
      %v4358 = vadd.f32 %v3620, %v4234
      %v4359 = vadd.f32 %v3621, %v4239
      %v4360 = vadd.f32 %v3622, %v4242
      %v4361 = vadd.f32 %v3623, %v4247
      %v4362 = vadd.f32 %v3624, %v4250
      %v4363 = vadd.f32 %v3625, %v4255
      %v4364 = vadd.f32 %v3626, %v4258
      %v4365 = vadd.f32 %v3627, %v4263
      %v4366 = vadd.f32 %v3628, %v4266
      %v4367 = vadd.f32 %v3629, %v4271
      %v4368 = vadd.f32 %v3630, %v4274
      %v4369 = vadd.f32 %v3631, %v4279
      %v4370 = vadd.f32 %v3632, %v4282
      %v4371 = vadd.f32 %v3633, %v4287
      %v4372 = vadd.f32 %v3634, %v4290
      %v4373 = vadd.f32 %v3635, %v4295
      %v4374 = vadd.f32 %v3636, %v4298
      %v4375 = vadd.f32 %v3637, %v4303
      %v4376 = vadd.f32 %v3638, %v4306
      %v4377 = vadd.f32 %v3639, %v4311
      %v4378 = vadd.f32 %v3640, %v4314
      %v4379 = vadd.f32 %v3641, %v4319
      %v4380 = vadd.f32 %v3642, %v4322
      %v4381 = vadd.f32 %v3643, %v4327
      %v4382 = vadd.f32 %v3644, %v4330
      %v4383 = vadd.f32 %v3645, %v4335
      %v4384 = vadd.f32 %v3646, %v4338
      %v4385 = vadd.f32 %v3647, %v4343
      %v4386 = vadd.f32 %v3648, %v4346
      %v4387 = vadd.f32 %v3649, %v4351
      %v4388 = vadd.f32 %v3650, %v4354
      %v4389 = vld [vmem:[%s3280] sm:$0xe]
      %v4390 = vld [vmem:[%s3280 + $0xc] sm:$0xe]
      %v4391 = vld [vmem:[%s3280 + $0x18] sm:$0xe]
      %v4392 = vld [vmem:[%s3280 + $0x24] sm:$0xe]
      %v4393 = vld [vmem:[%s3280 + $0x30] sm:$0xe]
      %v4394 = vld [vmem:[%s3280 + $0x3c] sm:$0xe]
      %v4395 = vld [vmem:[%s3280 + $0x48] sm:$0xe]
      %v4396 = vld [vmem:[%s3280 + $0x54] sm:$0xe]
      %v4397 = vld [vmem:[%s3280 + $0x60] sm:$0xe]
      %v4398 = vld [vmem:[%s3280 + $0x6c] sm:$0xe]
      %v4399 = vld [vmem:[%s3280 + $0x78] sm:$0xe]
      %v4400 = vld [vmem:[%s3280 + $0x84] sm:$0xe]
      %v4401 = vld [vmem:[%s3280 + $0x90] sm:$0xe]
      %v4402 = vld [vmem:[%s3280 + $0x9c] sm:$0xe]
      %v4403 = vld [vmem:[%s3280 + $0xa8] sm:$0xe]
      %v4404 = vld [vmem:[%s3280 + $0xb4] sm:$0xe]
      %v4453 = vrot.slane %v4389, 5
      %v4454 = vrot.slane %v4453, 4
      %v4455 = vrot.slane %v3652, 5
      %v4456 = vsel %vm1270, %v4454, %v4455
      %v4457 = vrot.slane %v4455, 4
      %v4458 = vrot.slane %v3653, 5
      %v4459 = vsel %vm1270, %v4457, %v4458
      %v4460 = vrot.slane %v4390, 5
      %v4461 = vrot.slane %v4460, 4
      %v4462 = vrot.slane %v3655, 5
      %v4463 = vsel %vm1270, %v4461, %v4462
      %v4464 = vrot.slane %v4462, 4
      %v4465 = vrot.slane %v3656, 5
      %v4466 = vsel %vm1270, %v4464, %v4465
      %v4467 = vrot.slane %v4391, 5
      %v4468 = vrot.slane %v4467, 4
      %v4469 = vrot.slane %v3658, 5
      %v4470 = vsel %vm1270, %v4468, %v4469
      %v4471 = vrot.slane %v4469, 4
      %v4472 = vrot.slane %v3659, 5
      %v4473 = vsel %vm1270, %v4471, %v4472
      %v4474 = vrot.slane %v4392, 5
      %v4475 = vrot.slane %v4474, 4
      %v4476 = vrot.slane %v3661, 5
      %v4477 = vsel %vm1270, %v4475, %v4476
      %v4478 = vrot.slane %v4476, 4
      %v4479 = vrot.slane %v3662, 5
      %v4480 = vsel %vm1270, %v4478, %v4479
      %v4481 = vrot.slane %v4393, 5
      %v4482 = vrot.slane %v4481, 4
      %v4483 = vrot.slane %v3664, 5
      %v4484 = vsel %vm1270, %v4482, %v4483
      %v4485 = vrot.slane %v4483, 4
      %v4486 = vrot.slane %v3665, 5
      %v4487 = vsel %vm1270, %v4485, %v4486
      %v4488 = vrot.slane %v4394, 5
      %v4489 = vrot.slane %v4488, 4
      %v4490 = vrot.slane %v3667, 5
      %v4491 = vsel %vm1270, %v4489, %v4490
      %v4492 = vrot.slane %v4490, 4
      %v4493 = vrot.slane %v3668, 5
      %v4494 = vsel %vm1270, %v4492, %v4493
      %v4495 = vrot.slane %v4395, 5
      %v4496 = vrot.slane %v4495, 4
      %v4497 = vrot.slane %v3670, 5
      %v4498 = vsel %vm1270, %v4496, %v4497
      %v4499 = vrot.slane %v4497, 4
      %v4500 = vrot.slane %v3671, 5
      %v4501 = vsel %vm1270, %v4499, %v4500
      %v4502 = vrot.slane %v4396, 5
      %v4503 = vrot.slane %v4502, 4
      %v4504 = vrot.slane %v3673, 5
      %v4505 = vsel %vm1270, %v4503, %v4504
      %v4506 = vrot.slane %v4504, 4
      %v4507 = vrot.slane %v3674, 5
      %v4508 = vsel %vm1270, %v4506, %v4507
      %v4509 = vrot.slane %v4397, 5
      %v4510 = vrot.slane %v4509, 4
      %v4511 = vrot.slane %v3676, 5
      %v4512 = vsel %vm1270, %v4510, %v4511
      %v4513 = vrot.slane %v4511, 4
      %v4514 = vrot.slane %v3677, 5
      %v4515 = vsel %vm1270, %v4513, %v4514
      %v4516 = vrot.slane %v4398, 5
      %v4517 = vrot.slane %v4516, 4
      %v4518 = vrot.slane %v3679, 5
      %v4519 = vsel %vm1270, %v4517, %v4518
      %v4520 = vrot.slane %v4518, 4
      %v4521 = vrot.slane %v3680, 5
      %v4522 = vsel %vm1270, %v4520, %v4521
      %v4523 = vrot.slane %v4399, 5
      %v4524 = vrot.slane %v4523, 4
      %v4525 = vrot.slane %v3682, 5
      %v4526 = vsel %vm1270, %v4524, %v4525
      %v4527 = vrot.slane %v4525, 4
      %v4528 = vrot.slane %v3683, 5
      %v4529 = vsel %vm1270, %v4527, %v4528
      %v4530 = vrot.slane %v4400, 5
      %v4531 = vrot.slane %v4530, 4
      %v4532 = vrot.slane %v3685, 5
      %v4533 = vsel %vm1270, %v4531, %v4532
      %v4534 = vrot.slane %v4532, 4
      %v4535 = vrot.slane %v3686, 5
      %v4536 = vsel %vm1270, %v4534, %v4535
      %v4537 = vrot.slane %v4401, 5
      %v4538 = vrot.slane %v4537, 4
      %v4539 = vrot.slane %v3688, 5
      %v4540 = vsel %vm1270, %v4538, %v4539
      %v4541 = vrot.slane %v4539, 4
      %v4542 = vrot.slane %v3689, 5
      %v4543 = vsel %vm1270, %v4541, %v4542
      %v4544 = vrot.slane %v4402, 5
      %v4545 = vrot.slane %v4544, 4
      %v4546 = vrot.slane %v3691, 5
      %v4547 = vsel %vm1270, %v4545, %v4546
      %v4548 = vrot.slane %v4546, 4
      %v4549 = vrot.slane %v3692, 5
      %v4550 = vsel %vm1270, %v4548, %v4549
      %v4551 = vrot.slane %v4403, 5
      %v4552 = vrot.slane %v4551, 4
      %v4553 = vrot.slane %v3694, 5
      %v4554 = vsel %vm1270, %v4552, %v4553
      %v4555 = vrot.slane %v4553, 4
      %v4556 = vrot.slane %v3695, 5
      %v4557 = vsel %vm1270, %v4555, %v4556
      %v4558 = vrot.slane %v4404, 5
      %v4559 = vrot.slane %v4558, 4
      %v4560 = vrot.slane %v3697, 5
      %v4561 = vsel %vm1270, %v4559, %v4560
      %v4562 = vrot.slane %v4560, 4
      %v4563 = vrot.slane %v3698, 5
      %v4564 = vsel %vm1270, %v4562, %v4563
      %s4565 = scalar_lea.vmem %s1, 128
      %v4566 = vld [vmem:[%s4565] sm:$0xf]
      %v4567 = vld [vmem:[%s4565 + $0x4] sm:$0xf]
      %v4568 = vld [vmem:[%s4565 + $0x8] sm:$0xf]
      %v4569 = vld [vmem:[%s4565 + $0xc] sm:$0xf]
      %v4570 = vunpack.c.l.b16 %v4456
      %v4571 = vunpack.c.l.b16 %v4459
      %v4572 = vunpack.c.l.b16 %v4463
      %v4573 = vunpack.c.l.b16 %v4466
      %v4574 = vunpack.c.l.b16 %v4470
      %v4575 = vunpack.c.l.b16 %v4473
      %v4576 = vunpack.c.l.b16 %v4477
      %v4577 = vunpack.c.l.b16 %v4480
      %v4578 = vunpack.c.l.b16 %v4484
      %v4579 = vunpack.c.l.b16 %v4487
      %v4580 = vunpack.c.l.b16 %v4491
      %v4581 = vunpack.c.l.b16 %v4494
      %v4582 = vunpack.c.l.b16 %v4498
      %v4583 = vunpack.c.l.b16 %v4501
      %v4584 = vunpack.c.l.b16 %v4505
      %v4585 = vunpack.c.l.b16 %v4508
      %v4586 = vunpack.c.l.b16 %v4512
      %v4587 = vunpack.c.l.b16 %v4515
      %v4588 = vunpack.c.l.b16 %v4519
      %v4589 = vunpack.c.l.b16 %v4522
      %v4590 = vunpack.c.l.b16 %v4526
      %v4591 = vunpack.c.l.b16 %v4529
      %v4592 = vunpack.c.l.b16 %v4533
      %v4593 = vunpack.c.l.b16 %v4536
      %v4594 = vunpack.c.l.b16 %v4540
      %v4595 = vunpack.c.l.b16 %v4543
      %v4596 = vunpack.c.l.b16 %v4547
      %v4597 = vunpack.c.l.b16 %v4550
      %v4598 = vunpack.c.l.b16 %v4554
      %v4599 = vunpack.c.l.b16 %v4557
      %v4600 = vunpack.c.l.b16 %v4561
      %v4601 = vunpack.c.l.b16 %v4564
      %v4602 = vpack.c.b16 %v4571, %v4570
      %v4603 = vpack.c.b16 %v4573, %v4572
      %v4604 = vpack.c.b16 %v4575, %v4574
      %v4605 = vpack.c.b16 %v4577, %v4576
      %v4606 = vpack.c.b16 %v4579, %v4578
      %v4607 = vpack.c.b16 %v4581, %v4580
      %v4608 = vpack.c.b16 %v4583, %v4582
      %v4609 = vpack.c.b16 %v4585, %v4584
      %v4610 = vpack.c.b16 %v4587, %v4586
      %v4611 = vpack.c.b16 %v4589, %v4588
      %v4612 = vpack.c.b16 %v4591, %v4590
      %v4613 = vpack.c.b16 %v4593, %v4592
      %v4614 = vpack.c.b16 %v4595, %v4594
      %v4615 = vpack.c.b16 %v4597, %v4596
      %v4616 = vpack.c.b16 %v4599, %v4598
      %v4617 = vpack.c.b16 %v4601, %v4600
      %v4622 = vunpack.c.l.b16 %v4566
      %v4623 = vunpack.c.l.b16 %v4567
      %v4624 = vunpack.c.l.b16 %v4568
      %v4625 = vunpack.c.l.b16 %v4569
      %v4626 = vpack.c.b16 %v4623, %v4622
      %v4627 = vpack.c.b16 %v4625, %v4624
      %v4631 = vsel %vm709, %v4602, 0
      %v4634 = vsel %vm709, %v4603, 0
      %v4637 = vsel %vm709, %v4604, 0
      %v4640 = vsel %vm709, %v4605, 0
      %v4643 = vsel %vm709, %v4606, 0
      %v4646 = vsel %vm709, %v4607, 0
      %v4649 = vsel %vm709, %v4608, 0
      %v4652 = vsel %vm709, %v4609, 0
      %v4655 = vsel %vm709, %v4610, 0
      %v4658 = vsel %vm709, %v4611, 0
      %v4661 = vsel %vm709, %v4612, 0
      %v4664 = vsel %vm709, %v4613, 0
      %v4667 = vsel %vm709, %v4614, 0
      %v4670 = vsel %vm709, %v4615, 0
      %v4673 = vsel %vm709, %v4616, 0
      %v4676 = vsel %vm709, %v4617, 0
      %4678 = vmatprep.subr.bf16.mxu0 0
      %4679 = vmatpush1.bf16.msra.mxu0 %v4626
      %4680 = vmatprep.subr.bf16.mxu0 0
      %4681 = vmatpush1.bf16.msra.mxu0 %v4627
      %4682 = vmatprep.subr.bf16.mxu0 0
      %4683 = vmatpush1.bf16.msra.mxu0 0
      %4684 = vmatprep.subr.bf16.mxu0 0
      %4685 = vmatpush1.bf16.msra.mxu0 0
      %4686 = vmatprep.subr.bf16.mxu0 0
      %4687 = vmatpush1.bf16.msra.mxu0 0
      %4688 = vmatprep.subr.bf16.mxu0 0
      %4689 = vmatpush1.bf16.msra.mxu0 0
      %4690 = vmatprep.subr.bf16.mxu0 0
      %4691 = vmatpush1.bf16.msra.mxu0 0
      %4692 = vmatprep.subr.bf16.mxu0 0
      %4693 = vmatpush1.bf16.msra.mxu0 0
      %4694 = vmatprep.subr.bf16.mxu0 0
      %4695 = vmatpush1.bf16.msra.mxu0 0
      %4696 = vmatprep.subr.bf16.mxu0 0
      %4697 = vmatpush1.bf16.msra.mxu0 0
      %4698 = vmatprep.subr.bf16.mxu0 0
      %4699 = vmatpush1.bf16.msra.mxu0 0
      %4700 = vmatprep.subr.bf16.mxu0 0
      %4701 = vmatpush1.bf16.msra.mxu0 0
      %4702 = vmatprep.subr.bf16.mxu0 0
      %4703 = vmatpush1.bf16.msra.mxu0 0
      %4704 = vmatprep.subr.bf16.mxu0 0
      %4705 = vmatpush1.bf16.msra.mxu0 0
      %4706 = vmatprep.subr.bf16.mxu0 0
      %4707 = vmatpush1.bf16.msra.mxu0 0
      %4708 = vmatprep.subr.bf16.mxu0 0
      %4709 = vmatpush1.bf16.msra.mxu0 0
      %4710 = vmatprep.mubr.bf16.mxu0 0
      %4711 = vmatmul.mubr.bf16.gmra.mrb[0].mxu0 %v4631
      %v4712 = vpop.f32.mrb[0].mxu0
      %v4713 = vadd.f32 0.0, %v4712
      %v4714 = vpop.f32.mrb[0].mxu0
      %v4715 = vpop.f32.mrb[0].mxu0
      %v4716 = vadd.f32 0.0, %v4715
      %v4717 = vpop.f32.mrb[0].mxu0
      %4718 = vmatprep.mubr.bf16.mxu0 0
      %4719 = vmatmul.mubr.bf16.gmra.mrb[0].mxu0 %v4634
      %v4720 = vpop.f32.mrb[0].mxu0
      %v4721 = vadd.f32 0.0, %v4720
      %v4722 = vpop.f32.mrb[0].mxu0
      %v4723 = vpop.f32.mrb[0].mxu0
      %v4724 = vadd.f32 0.0, %v4723
      %v4725 = vpop.f32.mrb[0].mxu0
      %4726 = vmatprep.mubr.bf16.mxu0 0
      %4727 = vmatmul.mubr.bf16.gmra.mrb[0].mxu0 %v4637
      %v4728 = vpop.f32.mrb[0].mxu0
      %v4729 = vadd.f32 0.0, %v4728
      %v4730 = vpop.f32.mrb[0].mxu0
      %v4731 = vpop.f32.mrb[0].mxu0
      %v4732 = vadd.f32 0.0, %v4731
      %v4733 = vpop.f32.mrb[0].mxu0
      %4734 = vmatprep.mubr.bf16.mxu0 0
      %4735 = vmatmul.mubr.bf16.gmra.mrb[0].mxu0 %v4640
      %v4736 = vpop.f32.mrb[0].mxu0
      %v4737 = vadd.f32 0.0, %v4736
      %v4738 = vpop.f32.mrb[0].mxu0
      %v4739 = vpop.f32.mrb[0].mxu0
      %v4740 = vadd.f32 0.0, %v4739
      %v4741 = vpop.f32.mrb[0].mxu0
      %4742 = vmatprep.mubr.bf16.mxu0 0
      %4743 = vmatmul.mubr.bf16.gmra.mrb[0].mxu0 %v4643
      %v4744 = vpop.f32.mrb[0].mxu0
      %v4745 = vadd.f32 0.0, %v4744
      %v4746 = vpop.f32.mrb[0].mxu0
      %v4747 = vpop.f32.mrb[0].mxu0
      %v4748 = vadd.f32 0.0, %v4747
      %v4749 = vpop.f32.mrb[0].mxu0
      %4750 = vmatprep.mubr.bf16.mxu0 0
      %4751 = vmatmul.mubr.bf16.gmra.mrb[0].mxu0 %v4646
      %v4752 = vpop.f32.mrb[0].mxu0
      %v4753 = vadd.f32 0.0, %v4752
      %v4754 = vpop.f32.mrb[0].mxu0
      %v4755 = vpop.f32.mrb[0].mxu0
      %v4756 = vadd.f32 0.0, %v4755
      %v4757 = vpop.f32.mrb[0].mxu0
      %4758 = vmatprep.mubr.bf16.mxu0 0
      %4759 = vmatmul.mubr.bf16.gmra.mrb[0].mxu0 %v4649
      %v4760 = vpop.f32.mrb[0].mxu0
      %v4761 = vadd.f32 0.0, %v4760
      %v4762 = vpop.f32.mrb[0].mxu0
      %v4763 = vpop.f32.mrb[0].mxu0
      %v4764 = vadd.f32 0.0, %v4763
      %v4765 = vpop.f32.mrb[0].mxu0
      %4766 = vmatprep.mubr.bf16.mxu0 0
      %4767 = vmatmul.mubr.bf16.gmra.mrb[0].mxu0 %v4652
      %v4768 = vpop.f32.mrb[0].mxu0
      %v4769 = vadd.f32 0.0, %v4768
      %v4770 = vpop.f32.mrb[0].mxu0
      %v4771 = vpop.f32.mrb[0].mxu0
      %v4772 = vadd.f32 0.0, %v4771
      %v4773 = vpop.f32.mrb[0].mxu0
      %4774 = vmatprep.mubr.bf16.mxu0 0
      %4775 = vmatmul.mubr.bf16.gmra.mrb[0].mxu0 %v4655
      %v4776 = vpop.f32.mrb[0].mxu0
      %v4777 = vadd.f32 0.0, %v4776
      %v4778 = vpop.f32.mrb[0].mxu0
      %v4779 = vpop.f32.mrb[0].mxu0
      %v4780 = vadd.f32 0.0, %v4779
      %v4781 = vpop.f32.mrb[0].mxu0
      %4782 = vmatprep.mubr.bf16.mxu0 0
      %4783 = vmatmul.mubr.bf16.gmra.mrb[0].mxu0 %v4658
      %v4784 = vpop.f32.mrb[0].mxu0
      %v4785 = vadd.f32 0.0, %v4784
      %v4786 = vpop.f32.mrb[0].mxu0
      %v4787 = vpop.f32.mrb[0].mxu0
      %v4788 = vadd.f32 0.0, %v4787
      %v4789 = vpop.f32.mrb[0].mxu0
      %4790 = vmatprep.mubr.bf16.mxu0 0
      %4791 = vmatmul.mubr.bf16.gmra.mrb[0].mxu0 %v4661
      %v4792 = vpop.f32.mrb[0].mxu0
      %v4793 = vadd.f32 0.0, %v4792
      %v4794 = vpop.f32.mrb[0].mxu0
      %v4795 = vpop.f32.mrb[0].mxu0
      %v4796 = vadd.f32 0.0, %v4795
      %v4797 = vpop.f32.mrb[0].mxu0
      %4798 = vmatprep.mubr.bf16.mxu0 0
      %4799 = vmatmul.mubr.bf16.gmra.mrb[0].mxu0 %v4664
      %v4800 = vpop.f32.mrb[0].mxu0
      %v4801 = vadd.f32 0.0, %v4800
      %v4802 = vpop.f32.mrb[0].mxu0
      %v4803 = vpop.f32.mrb[0].mxu0
      %v4804 = vadd.f32 0.0, %v4803
      %v4805 = vpop.f32.mrb[0].mxu0
      %4806 = vmatprep.mubr.bf16.mxu0 0
      %4807 = vmatmul.mubr.bf16.gmra.mrb[0].mxu0 %v4667
      %v4808 = vpop.f32.mrb[0].mxu0
      %v4809 = vadd.f32 0.0, %v4808
      %v4810 = vpop.f32.mrb[0].mxu0
      %v4811 = vpop.f32.mrb[0].mxu0
      %v4812 = vadd.f32 0.0, %v4811
      %v4813 = vpop.f32.mrb[0].mxu0
      %4814 = vmatprep.mubr.bf16.mxu0 0
      %4815 = vmatmul.mubr.bf16.gmra.mrb[0].mxu0 %v4670
      %v4816 = vpop.f32.mrb[0].mxu0
      %v4817 = vadd.f32 0.0, %v4816
      %v4818 = vpop.f32.mrb[0].mxu0
      %v4819 = vpop.f32.mrb[0].mxu0
      %v4820 = vadd.f32 0.0, %v4819
      %v4821 = vpop.f32.mrb[0].mxu0
      %4822 = vmatprep.mubr.bf16.mxu0 0
      %4823 = vmatmul.mubr.bf16.gmra.mrb[0].mxu0 %v4673
      %v4824 = vpop.f32.mrb[0].mxu0
      %v4825 = vadd.f32 0.0, %v4824
      %v4826 = vpop.f32.mrb[0].mxu0
      %v4827 = vpop.f32.mrb[0].mxu0
      %v4828 = vadd.f32 0.0, %v4827
      %v4829 = vpop.f32.mrb[0].mxu0
      %4830 = vmatprep.mubr.bf16.mxu0 0
      %4831 = vmatmul.mubr.bf16.gmra.mrb[0].mxu0 %v4676
      %v4832 = vpop.f32.mrb[0].mxu0
      %v4833 = vadd.f32 0.0, %v4832
      %v4834 = vpop.f32.mrb[0].mxu0
      %v4835 = vpop.f32.mrb[0].mxu0
      %v4836 = vadd.f32 0.0, %v4835
      %v4837 = vpop.f32.mrb[0].mxu0
      %4838 = vdwg.mxu0
      %v4839 = vadd.f32 %v4357, %v4713
      %v4840 = vadd.f32 %v4358, %v4716
      %v4841 = vadd.f32 %v4359, %v4721
      %v4842 = vadd.f32 %v4360, %v4724
      %v4843 = vadd.f32 %v4361, %v4729
      %v4844 = vadd.f32 %v4362, %v4732
      %v4845 = vadd.f32 %v4363, %v4737
      %v4846 = vadd.f32 %v4364, %v4740
      %v4847 = vadd.f32 %v4365, %v4745
      %v4848 = vadd.f32 %v4366, %v4748
      %v4849 = vadd.f32 %v4367, %v4753
      %v4850 = vadd.f32 %v4368, %v4756
      %v4851 = vadd.f32 %v4369, %v4761
      %v4852 = vadd.f32 %v4370, %v4764
      %v4853 = vadd.f32 %v4371, %v4769
      %v4854 = vadd.f32 %v4372, %v4772
      %v4855 = vadd.f32 %v4373, %v4777
      %v4856 = vadd.f32 %v4374, %v4780
      %v4857 = vadd.f32 %v4375, %v4785
      %v4858 = vadd.f32 %v4376, %v4788
      %v4859 = vadd.f32 %v4377, %v4793
      %v4860 = vadd.f32 %v4378, %v4796
      %v4861 = vadd.f32 %v4379, %v4801
      %v4862 = vadd.f32 %v4380, %v4804
      %v4863 = vadd.f32 %v4381, %v4809
      %v4864 = vadd.f32 %v4382, %v4812
      %v4865 = vadd.f32 %v4383, %v4817
      %v4866 = vadd.f32 %v4384, %v4820
      %v4867 = vadd.f32 %v4385, %v4825
      %v4868 = vadd.f32 %v4386, %v4828
      %v4869 = vadd.f32 %v4387, %v4833
      %v4870 = vadd.f32 %v4388, %v4836
      %v4871 = vld [vmem:[%s2] sm:$0x1]
      %v4873 = vlaneseq
      %v4874 = vshrl.u32 %v4873, 7
      %v4875 = vsub.s32 0, %v4874
      %v4876 = vrot.slane %v4871, %v4875
      %v4878 = vmul.f32 %v4839, %v4876
      %v4879 = vmul.f32 %v4840, %v4876
      %v4880 = vmul.f32 %v4841, %v4876
      %v4881 = vmul.f32 %v4842, %v4876
      %v4882 = vmul.f32 %v4843, %v4876
      %v4883 = vmul.f32 %v4844, %v4876
      %v4884 = vmul.f32 %v4845, %v4876
      %v4885 = vmul.f32 %v4846, %v4876
      %v4886 = vmul.f32 %v4847, %v4876
      %v4887 = vmul.f32 %v4848, %v4876
      %v4888 = vmul.f32 %v4849, %v4876
      %v4889 = vmul.f32 %v4850, %v4876
      %v4890 = vmul.f32 %v4851, %v4876
      %v4891 = vmul.f32 %v4852, %v4876
      %v4892 = vmul.f32 %v4853, %v4876
      %v4893 = vmul.f32 %v4854, %v4876
      %v4894 = vmul.f32 %v4855, %v4876
      %v4895 = vmul.f32 %v4856, %v4876
      %v4896 = vmul.f32 %v4857, %v4876
      %v4897 = vmul.f32 %v4858, %v4876
      %v4898 = vmul.f32 %v4859, %v4876
      %v4899 = vmul.f32 %v4860, %v4876
      %v4900 = vmul.f32 %v4861, %v4876
      %v4901 = vmul.f32 %v4862, %v4876
      %v4902 = vmul.f32 %v4863, %v4876
      %v4903 = vmul.f32 %v4864, %v4876
      %v4904 = vmul.f32 %v4865, %v4876
      %v4905 = vmul.f32 %v4866, %v4876
      %v4906 = vmul.f32 %v4867, %v4876
      %v4907 = vmul.f32 %v4868, %v4876
      %v4908 = vmul.f32 %v4869, %v4876
      %v4909 = vmul.f32 %v4870, %v4876
      %v4910 = vld [vmem:[%s3] sm:$0x1]
      %v4912 = vlaneseq
      %v4913 = vshrl.u32 %v4912, 7
      %v4914 = vsub.s32 0, %v4913
      %v4915 = vrot.slane %v4910, %v4914
      %v4917 = vadd.f32 %v4878, %v4915
      %v4918 = vadd.f32 %v4879, %v4915
      %v4919 = vadd.f32 %v4880, %v4915
      %v4920 = vadd.f32 %v4881, %v4915
      %v4921 = vadd.f32 %v4882, %v4915
      %v4922 = vadd.f32 %v4883, %v4915
      %v4923 = vadd.f32 %v4884, %v4915
      %v4924 = vadd.f32 %v4885, %v4915
      %v4925 = vadd.f32 %v4886, %v4915
      %v4926 = vadd.f32 %v4887, %v4915
      %v4927 = vadd.f32 %v4888, %v4915
      %v4928 = vadd.f32 %v4889, %v4915
      %v4929 = vadd.f32 %v4890, %v4915
      %v4930 = vadd.f32 %v4891, %v4915
      %v4931 = vadd.f32 %v4892, %v4915
      %v4932 = vadd.f32 %v4893, %v4915
      %v4933 = vadd.f32 %v4894, %v4915
      %v4934 = vadd.f32 %v4895, %v4915
      %v4935 = vadd.f32 %v4896, %v4915
      %v4936 = vadd.f32 %v4897, %v4915
      %v4937 = vadd.f32 %v4898, %v4915
      %v4938 = vadd.f32 %v4899, %v4915
      %v4939 = vadd.f32 %v4900, %v4915
      %v4940 = vadd.f32 %v4901, %v4915
      %v4941 = vadd.f32 %v4902, %v4915
      %v4942 = vadd.f32 %v4903, %v4915
      %v4943 = vadd.f32 %v4904, %v4915
      %v4944 = vadd.f32 %v4905, %v4915
      %v4945 = vadd.f32 %v4906, %v4915
      %v4946 = vadd.f32 %v4907, %v4915
      %v4947 = vadd.f32 %v4908, %v4915
      %v4948 = vadd.f32 %v4909, %v4915
      %v4949 = vmax.f32 %v4917, 0.0
      %v4950 = vmax.f32 %v4918, 0.0
      %v4951 = vmax.f32 %v4919, 0.0
      %v4952 = vmax.f32 %v4920, 0.0
      %v4953 = vmax.f32 %v4921, 0.0
      %v4954 = vmax.f32 %v4922, 0.0
      %v4955 = vmax.f32 %v4923, 0.0
      %v4956 = vmax.f32 %v4924, 0.0
      %v4957 = vmax.f32 %v4925, 0.0
      %v4958 = vmax.f32 %v4926, 0.0
      %v4959 = vmax.f32 %v4927, 0.0
      %v4960 = vmax.f32 %v4928, 0.0
      %v4961 = vmax.f32 %v4929, 0.0
      %v4962 = vmax.f32 %v4930, 0.0
      %v4963 = vmax.f32 %v4931, 0.0
      %v4964 = vmax.f32 %v4932, 0.0
      %v4965 = vmax.f32 %v4933, 0.0
      %v4966 = vmax.f32 %v4934, 0.0
      %v4967 = vmax.f32 %v4935, 0.0
      %v4968 = vmax.f32 %v4936, 0.0
      %v4969 = vmax.f32 %v4937, 0.0
      %v4970 = vmax.f32 %v4938, 0.0
      %v4971 = vmax.f32 %v4939, 0.0
      %v4972 = vmax.f32 %v4940, 0.0
      %v4973 = vmax.f32 %v4941, 0.0
      %v4974 = vmax.f32 %v4942, 0.0
      %v4975 = vmax.f32 %v4943, 0.0
      %v4976 = vmax.f32 %v4944, 0.0
      %v4977 = vmax.f32 %v4945, 0.0
      %v4978 = vmax.f32 %v4946, 0.0
      %v4979 = vmax.f32 %v4947, 0.0
      %v4980 = vmax.f32 %v4948, 0.0
      %v4981 = vpack.c.bf16 %v4950, %v4949
      %v4982 = vpack.c.bf16 %v4952, %v4951
      %v4983 = vpack.c.bf16 %v4954, %v4953
      %v4984 = vpack.c.bf16 %v4956, %v4955
      %v4985 = vpack.c.bf16 %v4958, %v4957
      %v4986 = vpack.c.bf16 %v4960, %v4959
      %v4987 = vpack.c.bf16 %v4962, %v4961
      %v4988 = vpack.c.bf16 %v4964, %v4963
      %v4989 = vpack.c.bf16 %v4966, %v4965
      %v4990 = vpack.c.bf16 %v4968, %v4967
      %v4991 = vpack.c.bf16 %v4970, %v4969
      %v4992 = vpack.c.bf16 %v4972, %v4971
      %v4993 = vpack.c.bf16 %v4974, %v4973
      %v4994 = vpack.c.bf16 %v4976, %v4975
      %v4995 = vpack.c.bf16 %v4978, %v4977
      %v4996 = vpack.c.bf16 %v4980, %v4979
      %v5013 = vunpack.c.l.b16 %v4981
      %v5014 = vunpack.c.h.b16 %v4981
      %v5015 = vunpack.c.l.b16 %v4982
      %v5016 = vunpack.c.h.b16 %v4982
      %v5017 = vunpack.c.l.b16 %v4983
      %v5018 = vunpack.c.h.b16 %v4983
      %v5019 = vunpack.c.l.b16 %v4984
      %v5020 = vunpack.c.h.b16 %v4984
      %v5021 = vunpack.c.l.b16 %v4985
      %v5022 = vunpack.c.h.b16 %v4985
      %v5023 = vunpack.c.l.b16 %v4986
      %v5024 = vunpack.c.h.b16 %v4986
      %v5025 = vunpack.c.l.b16 %v4987
      %v5026 = vunpack.c.h.b16 %v4987
      %v5027 = vunpack.c.l.b16 %v4988
      %v5028 = vunpack.c.h.b16 %v4988
      %v5029 = vunpack.c.l.b16 %v4989
      %v5030 = vunpack.c.h.b16 %v4989
      %v5031 = vunpack.c.l.b16 %v4990
      %v5032 = vunpack.c.h.b16 %v4990
      %v5033 = vunpack.c.l.b16 %v4991
      %v5034 = vunpack.c.h.b16 %v4991
      %v5035 = vunpack.c.l.b16 %v4992
      %v5036 = vunpack.c.h.b16 %v4992
      %v5037 = vunpack.c.l.b16 %v4993
      %v5038 = vunpack.c.h.b16 %v4993
      %v5039 = vunpack.c.l.b16 %v4994
      %v5040 = vunpack.c.h.b16 %v4994
      %v5041 = vunpack.c.l.b16 %v4995
      %v5042 = vunpack.c.h.b16 %v4995
      %v5043 = vunpack.c.l.b16 %v4996
      %v5044 = vunpack.c.h.b16 %v4996
      %v5045 = vpack.c.b16 %v5013, %v5013
      %v5046 = vpack.c.b16 %v5014, %v5014
      %v5047 = vpack.c.b16 %v5015, %v5015
      %v5048 = vpack.c.b16 %v5016, %v5016
      %v5049 = vpack.c.b16 %v5017, %v5017
      %v5050 = vpack.c.b16 %v5018, %v5018
      %v5051 = vpack.c.b16 %v5019, %v5019
      %v5052 = vpack.c.b16 %v5020, %v5020
      %v5053 = vpack.c.b16 %v5021, %v5021
      %v5054 = vpack.c.b16 %v5022, %v5022
      %v5055 = vpack.c.b16 %v5023, %v5023
      %v5056 = vpack.c.b16 %v5024, %v5024
      %v5057 = vpack.c.b16 %v5025, %v5025
      %v5058 = vpack.c.b16 %v5026, %v5026
      %v5059 = vpack.c.b16 %v5027, %v5027
      %v5060 = vpack.c.b16 %v5028, %v5028
      %v5061 = vpack.c.b16 %v5029, %v5029
      %v5062 = vpack.c.b16 %v5030, %v5030
      %v5063 = vpack.c.b16 %v5031, %v5031
      %v5064 = vpack.c.b16 %v5032, %v5032
      %v5065 = vpack.c.b16 %v5033, %v5033
      %v5066 = vpack.c.b16 %v5034, %v5034
      %v5067 = vpack.c.b16 %v5035, %v5035
      %v5068 = vpack.c.b16 %v5036, %v5036
      %v5069 = vpack.c.b16 %v5037, %v5037
      %v5070 = vpack.c.b16 %v5038, %v5038
      %v5071 = vpack.c.b16 %v5039, %v5039
      %v5072 = vpack.c.b16 %v5040, %v5040
      %v5073 = vpack.c.b16 %v5041, %v5041
      %v5074 = vpack.c.b16 %v5042, %v5042
      %v5075 = vpack.c.b16 %v5043, %v5043
      %v5076 = vpack.c.b16 %v5044, %v5044
      %vm5109 = vcmask 257024
      %5110 = vst.msk [vmem:[%s202] sm:$0xf] %vm5109, %v5045
      %5111 = vst.msk [vmem:[%s202 + $0x4] sm:$0xf] %vm5109, %v5046
      %5112 = vst.msk [vmem:[%s202 + $0x8] sm:$0xf] %vm5109, %v5047
      %5113 = vst.msk [vmem:[%s202 + $0xc] sm:$0xf] %vm5109, %v5048
      %5114 = vst.msk [vmem:[%s202 + $0x10] sm:$0xf] %vm5109, %v5049
      %5115 = vst.msk [vmem:[%s202 + $0x14] sm:$0xf] %vm5109, %v5050
      %5116 = vst.msk [vmem:[%s202 + $0x18] sm:$0xf] %vm5109, %v5051
      %5117 = vst.msk [vmem:[%s202 + $0x1c] sm:$0xf] %vm5109, %v5052
      %5118 = vst.msk [vmem:[%s202 + $0x20] sm:$0xf] %vm5109, %v5053
      %5119 = vst.msk [vmem:[%s202 + $0x24] sm:$0xf] %vm5109, %v5054
      %5120 = vst.msk [vmem:[%s202 + $0x28] sm:$0xf] %vm5109, %v5055
      %5121 = vst.msk [vmem:[%s202 + $0x2c] sm:$0xf] %vm5109, %v5056
      %5122 = vst.msk [vmem:[%s202 + $0x30] sm:$0xf] %vm5109, %v5057
      %5123 = vst.msk [vmem:[%s202 + $0x34] sm:$0xf] %vm5109, %v5058
      %5124 = vst.msk [vmem:[%s202 + $0x38] sm:$0xf] %vm5109, %v5059
      %5125 = vst.msk [vmem:[%s202 + $0x3c] sm:$0xf] %vm5109, %v5060
      %5126 = vst.msk [vmem:[%s202 + $0x40] sm:$0xf] %vm5109, %v5061
      %5127 = vst.msk [vmem:[%s202 + $0x44] sm:$0xf] %vm5109, %v5062
      %5128 = vst.msk [vmem:[%s202 + $0x48] sm:$0xf] %vm5109, %v5063
      %5129 = vst.msk [vmem:[%s202 + $0x4c] sm:$0xf] %vm5109, %v5064
      %5130 = vst.msk [vmem:[%s202 + $0x50] sm:$0xf] %vm5109, %v5065
      %5131 = vst.msk [vmem:[%s202 + $0x54] sm:$0xf] %vm5109, %v5066
      %5132 = vst.msk [vmem:[%s202 + $0x58] sm:$0xf] %vm5109, %v5067
      %5133 = vst.msk [vmem:[%s202 + $0x5c] sm:$0xf] %vm5109, %v5068
      %5134 = vst.msk [vmem:[%s202 + $0x60] sm:$0xf] %vm5109, %v5069
      %5135 = vst.msk [vmem:[%s202 + $0x64] sm:$0xf] %vm5109, %v5070
      %5136 = vst.msk [vmem:[%s202 + $0x68] sm:$0xf] %vm5109, %v5071
      %5137 = vst.msk [vmem:[%s202 + $0x6c] sm:$0xf] %vm5109, %v5072
      %5138 = vst.msk [vmem:[%s202 + $0x70] sm:$0xf] %vm5109, %v5073
      %5139 = vst.msk [vmem:[%s202 + $0x74] sm:$0xf] %vm5109, %v5074
      %5140 = vst.msk [vmem:[%s202 + $0x78] sm:$0xf] %vm5109, %v5075
      %5141 = vst.msk [vmem:[%s202 + $0x7c] sm:$0xf] %vm5109, %v5076
      %s5142 = smul.u32 32, %s15
      %p5143 = scmp.lt.s32.totalorder %s5142, 63
      %s5144 = scalar_select %p5143, %s5142, 63
      %s5145 = smul.addr %s5144, 4
      %s5146 = scalar_lea.vmem %s4, %s5145
      // Predicated region
      $region37: #{res_forward.4} parent=35 // pred_check
        %p5147 = pneg %p122
      $region38: #{res_forward.4} parent=35 // pred_check_branch
        %5149 = sbr.rel (%p5147) target = $region40
      $region39: #{res_forward.4} parent=35 // pred_region
        %s5150 = smul.u32 32, %s15
      $region40: #{res_forward.4} parent=35 // pred_fallthru
        _
    $region36: #{res_forward.4} parent=5 // pred_fallthru
      _
    %p5151 = scmp.le.s32.totalorder 2, %s10
    // Predicated region
    $region41: #{res_forward.4} parent=5 // pred_check
      %p5152 = pneg %p5151
    $region42: #{res_forward.4} parent=5 // pred_check_branch
      %5154 = sbr.rel (%p5152) target = $region44
    $region43: #{res_forward.4} parent=5 // pred_region
      %s5155 = ssub.s32 %s10, 2
      // Predicated region
      $region45: #{res_forward.4} parent=43 // pred_check
        %p5156 = pneg %p128
      $region46: #{res_forward.4} parent=43 // pred_check_branch
        %5158 = sbr.rel (%p5156) target = $region48
      $region47: #{res_forward.4} parent=43 // pred_region
        %s5159 = smul.u32 32, %s16
        %p5160 = scmp.lt.s32.totalorder %s5159, 63
        %s5161 = scalar_select %p5160, %s5159, 63
        %s5162 = smul.addr %s5161, 4
        %s5163 = scalar_lea.vmem %s4, %s5162
      $region48: #{res_forward.4} parent=43 // pred_fallthru
        _
    $region44: #{res_forward.4} parent=5 // pred_fallthru
      _
  $region6: #{res_forward.4} parent=0 // loop_footer
    %s14 = sadd.s32 1, %s10
  $region7: #{res_forward.4} parent=0 // loop_footer_branch
    %9 = sbr.rel target = $region3
  $region8: #{res_forward.4} parent=0 // loop_exit
    _

</llo_original>
